<compile_context>
chip_gen: v7x
topology: tpu7x:2x2x1
jax: 0.10.0
libtpu: 0.0.40
codegen_flags: <defaults>
</compile_context>

<pallas_src>
import jax
import jax.numpy as jnp
import numpy as np
from jax.experimental import pallas as pl
from jax.experimental.pallas import tpu as pltpu


# ----------------------------------------------------------------------------
# Fused kernel: one batch tile of Bt images end-to-end.
# ----------------------------------------------------------------------------
def _lenet_kernel(x_ref, w1_ref, b1_ref, w2_ref, b2_ref,
                  wf1_ref, bf1_ref, wf2_ref, bf2_ref, wf3_ref, bf3_ref,
                  o_ref):
    bt = x_ref.shape[1]                                   # batch tile (multiple of 8)
    x = x_ref[...]                                        # (28, Bt, 128) f32, lanes 28..127 zero

    # ---- conv1 (1->6, 3x3, valid) + ReLU: ONE stacked-K MXU matmul -----------
    # rows = (out_h, b); K = 3*128 (kh-shifted rows in aligned 128-lane slabs);
    # N = 256 (26 out_w * 6 out_ch in lanes 0..155, rest zero).
    lhs1 = jnp.concatenate([x[kh:kh + 26] for kh in range(3)], axis=-1)
    lhs1 = lhs1.reshape(26 * bt, 384).astype(jnp.bfloat16)
    h1 = jnp.dot(lhs1, w1_ref[...], preferred_element_type=jnp.float32)
    h1 = jnp.maximum(h1 + b1_ref[...], 0.0)               # (26*Bt, 256) f32

    # ---- 2x2/2 max-pool: H via paired sublane slabs, W via XLU lane roll -----
    h1 = h1.reshape(13, 2 * bt, 256)
    h1 = jnp.maximum(h1[:, :bt, :], h1[:, bt:, :])        # (13, Bt, 256)  H pooled
    h1 = jnp.maximum(h1, pltpu.roll(h1, 256 - 6, 2))      # lane l <- max(l, l+6)
    # valid pooled lanes: 12*t + c (t in [0,13), c in [0,6)); dead lanes zeroed in W2.

    # ---- conv2 (6->16, 3x3, valid) + ReLU: ONE stacked-K MXU matmul ----------
    lhs2 = jnp.concatenate([h1[kh:kh + 11] for kh in range(3)], axis=-1)
    lhs2 = lhs2.reshape(11 * bt, 768).astype(jnp.bfloat16)
    h2 = jnp.dot(lhs2, w2_ref[...], preferred_element_type=jnp.float32)
    h2 = jnp.maximum(h2 + b2_ref[...], 0.0)               # (11*Bt, 256) f32

    # ---- 2x2/2 max-pool (floor mode: out row/col 10 dropped) -----------------
    h2 = h2[:10 * bt].reshape(5, 2 * bt, 256)
    h2 = jnp.maximum(h2[:, :bt, :], h2[:, bt:, :])        # (5, Bt, 256)
    h2 = jnp.maximum(h2, pltpu.roll(h2, 256 - 16, 2))     # lane l <- max(l, l+16)
    # valid pooled lanes: 32*t + c (t in [0,5), c in [0,16)); dead lanes zeroed in WF1.

    # ---- fc1 (400->120, padded to 128): flatten folded into ONE K=1280 matmul
    lhs3 = jnp.concatenate([h2[i] for i in range(5)], axis=-1)   # (Bt, 1280) f32
    h = jnp.dot(lhs3.astype(jnp.bfloat16), wf1_ref[...],
                preferred_element_type=jnp.float32) + bf1_ref[...]
    h = jnp.maximum(h, 0.0)                                # (Bt, 128) f32

    # ---- fc2 (120->84, padded) + ReLU; fc3 (84->10, padded) ------------------
    h = jnp.dot(h.astype(jnp.bfloat16), wf2_ref[...],
                preferred_element_type=jnp.float32) + bf2_ref[...]
    h = jnp.maximum(h, 0.0)
    logits = jnp.dot(h.astype(jnp.bfloat16), wf3_ref[...],
                     preferred_element_type=jnp.float32) + bf3_ref[...]
    # padded logit lanes carry a -1e30 bias (f32) so they vanish in the softmax.

    # ---- log_softmax over the 10 real classes (padded lanes -> exp == 0) -----
    m = jnp.max(logits, axis=1, keepdims=True)
    z = logits - m
    lse = jnp.log(jnp.sum(jnp.exp(z), axis=1, keepdims=True))
    o_ref[...] = z - lse                                   # (Bt, 128) lane-dense store


# ----------------------------------------------------------------------------
# One-time parameter preparation: torch layouts -> kernel (row-matmul) layouts.
# ----------------------------------------------------------------------------
def prepare_params(params):
    p = {k: np.asarray(jax.device_get(v), np.float32) for k, v in params.items()}

    # conv1: torch (out=6, in=1, kh=3, kw=3) -> stacked-K block-Toeplitz (384, 256).
    # LHS lane kh*128 + w (w in [0,28)); output lane 6*j + oc (j = out_w in [0,26)).
    w1 = p["w_conv1"]
    W1 = np.zeros((384, 256), np.float32)
    for kh in range(3):
        for j in range(26):
            for kw in range(3):
                W1[kh * 128 + j + kw, 6 * j:6 * j + 6] = w1[:, 0, kh, kw]
    B1 = np.zeros((1, 256), np.float32)
    B1[0, :156] = np.tile(p["b_conv1"], 26)

    # conv2: torch (16, 6, 3, 3); input lane kh*256 + 12*jw + cin (pooled layout),
    # output lane 16*j + oc (j = out_w in [0,11)).
    w2 = p["w_conv2"]
    W2 = np.zeros((768, 256), np.float32)
    for kh in range(3):
        for j in range(11):
            for kw in range(3):
                for cin in range(6):
                    W2[kh * 256 + 12 * (j + kw) + cin, 16 * j:16 * j + 16] = \
                        w2[:, cin, kh, kw]
    B2 = np.zeros((1, 256), np.float32)
    B2[0, :176] = np.tile(p["b_conv2"], 11)

    # fc1: torch (120, 400), flat index co*25 + i*5 + t; input lane i*256 + 32*t + co.
    wf1 = p["w_fc1"]
    WF1 = np.zeros((1280, 128), np.float32)
    for i in range(5):           # pooled H
        for t in range(5):       # pooled W
            for co in range(16):
                WF1[i * 256 + 32 * t + co, :120] = wf1[:, co * 25 + i * 5 + t]
    BF1 = np.zeros((1, 128), np.float32)
    BF1[0, :120] = p["b_fc1"]

    WF2 = np.zeros((128, 128), np.float32)
    WF2[:120, :84] = p["w_fc2"].T
    BF2 = np.zeros((1, 128), np.float32)
    BF2[0, :84] = p["b_fc2"]

    WF3 = np.zeros((128, 128), np.float32)
    WF3[:84, :10] = p["w_fc3"].T
    BF3 = np.full((1, 128), -1e30, np.float32)    # mask for padded logit lanes (f32)
    BF3[0, :10] = p["b_fc3"]

    bf16 = lambda a: jnp.asarray(a, dtype=jnp.bfloat16)   # MXU operands
    f32 = lambda a: jnp.asarray(a, dtype=jnp.float32)     # biases / mask stay f32
    return dict(W1=bf16(W1), B1=f32(B1), W2=bf16(W2), B2=f32(B2),
                WF1=bf16(WF1), BF1=f32(BF1), WF2=bf16(WF2), BF2=f32(BF2),
                WF3=bf16(WF3), BF3=f32(BF3))


# ----------------------------------------------------------------------------
# Forward pass wrapper.
# ----------------------------------------------------------------------------
def _round_up(n, m):
    return (n + m - 1) // m * m


def _choose_bt(B):
    # >=2 grid steps whenever B > 8 so v7x's two TensorCores both get work;
    # up to 128 rows/tile to amortize serial-grid overhead on v5e/v6e.
    if B <= 8:
        return 8
    return min(128, _round_up((B + 1) // 2, 8))


@jax.jit
def lenet_forward(prepped, x_nchw):
    B = x_nchw.shape[0]
    Bt = _choose_bt(B)
    Bp = _round_up(B, Bt)

    x = x_nchw.astype(jnp.float32).reshape(B, 28, 28)      # C == 1
    xt = jnp.transpose(x, (1, 0, 2))                       # (28, B, 28): batch on sublanes
    xt = jnp.pad(xt, ((0, 0), (0, Bp - B), (0, 100)))      # (28, Bp, 128): 128-lane aligned

    out = pl.pallas_call(
        _lenet_kernel,
        out_shape=jax.ShapeDtypeStruct((Bp, 128), jnp.float32),
        grid=(Bp // Bt,),
        in_specs=[
            pl.BlockSpec((28, Bt, 128), lambda i: (0, i, 0)),
            pl.BlockSpec((384, 256), lambda i: (0, 0)),
            pl.BlockSpec((1, 256), lambda i: (0, 0)),
            pl.BlockSpec((768, 256), lambda i: (0, 0)),
            pl.BlockSpec((1, 256), lambda i: (0, 0)),
            pl.BlockSpec((1280, 128), lambda i: (0, 0)),
            pl.BlockSpec((1, 128), lambda i: (0, 0)),
            pl.BlockSpec((128, 128), lambda i: (0, 0)),
            pl.BlockSpec((1, 128), lambda i: (0, 0)),
            pl.BlockSpec((128, 128), lambda i: (0, 0)),
            pl.BlockSpec((1, 128), lambda i: (0, 0)),
        ],
        out_specs=pl.BlockSpec((Bt, 128), lambda i: (i, 0)),
        compiler_params=pltpu.CompilerParams(
            dimension_semantics=("parallel",),
            vmem_limit_bytes=64 * 1024 * 1024,
        ),
    )(xt, prepped["W1"], prepped["B1"], prepped["W2"], prepped["B2"],
      prepped["WF1"], prepped["BF1"], prepped["WF2"], prepped["BF2"],
      prepped["WF3"], prepped["BF3"])

    return out[:B, :10]


# ----------------------------------------------------------------------------
# Deterministic parameter init (same shapes as the PyTorch module).
# ----------------------------------------------------------------------------
def init_params(key):
    ks = jax.random.split(key, 10)

    def u(k, shape, fan_in):
        bound = 1.0 / jnp.sqrt(jnp.float32(fan_in))
        return jax.random.uniform(k, shape, jnp.float32, -bound, bound)

    return {
        "w_conv1": u(ks[0], (6, 1, 3, 3), 1 * 3 * 3),      # torch: (out, in, kh, kw)
        "b_conv1": u(ks[1], (6,), 1 * 3 * 3),
        "w_conv2": u(ks[2], (16, 6, 3, 3), 6 * 3 * 3),
        "b_conv2": u(ks[3], (16,), 6 * 3 * 3),
        "w_fc1": u(ks[4], (120, 400), 400),                # torch: (out, in)
        "b_fc1": u(ks[5], (120,), 400),
        "w_fc2": u(ks[6], (84, 120), 120),
        "b_fc2": u(ks[7], (84,), 120),
        "w_fc3": u(ks[8], (10, 84), 84),
        "b_fc3": u(ks[9], (10,), 84),
    }


# ----------------------------------------------------------------------------
# Pure-JAX reference (for correctness checking only).
# ----------------------------------------------------------------------------
def _reference_forward(params, x_nchw):
    x = x_nchw.astype(jnp.float32)
    y = jax.lax.conv_general_dilated(
        x, params["w_conv1"], window_strides=(1, 1), padding="VALID",
        dimension_numbers=("NCHW", "OIHW", "NCHW"))
    y = jax.nn.relu(y + params["b_conv1"][None, :, None, None])
    y = jax.lax.reduce_window(y, -jnp.inf, jax.lax.max,
                              (1, 1, 2, 2), (1, 1, 2, 2), "VALID")
    y = jax.lax.conv_general_dilated(
        y, params["w_conv2"], window_strides=(1, 1), padding="VALID",
        dimension_numbers=("NCHW", "OIHW", "NCHW"))
    y = jax.nn.relu(y + params["b_conv2"][None, :, None, None])
    y = jax.lax.reduce_window(y, -jnp.inf, jax.lax.max,
                              (1, 1, 2, 2), (1, 1, 2, 2), "VALID")
    y = y.reshape(y.shape[0], 400)                         # (C, H, W) order, as torch
    y = jax.nn.relu(y @ params["w_fc1"].T + params["b_fc1"])
    y = jax.nn.relu(y @ params["w_fc2"].T + params["b_fc2"])
    y = y @ params["w_fc3"].T + params["b_fc3"]
    return jax.nn.log_softmax(y, axis=1)


if __name__ == "__main__":
    key = jax.random.PRNGKey(0)
    pkey, xkey, xkey2 = jax.random.split(key, 3)
    params = init_params(pkey)
    prepped = prepare_params(params)

    # Small shape implied by the module (MNIST-like): (B, 1, 28, 28), batch=2.
    x = jax.random.normal(xkey, (2, 1, 28, 28), dtype=jnp.float32)
    out = lenet_forward(prepped, x)
    jax.block_until_ready(out)

    assert out.shape == (2, 10)
    assert bool(jnp.all(jnp.isfinite(out)))
    ref = _reference_forward(params, x)
    max_err = float(jnp.max(jnp.abs(out - ref)))
    mean_err = float(jnp.mean(jnp.abs(out - ref)))
    assert max_err < 4e-2, max_err          # bf16-matmul tolerance
    assert mean_err < 1e-2, mean_err        # tight enough to catch lane-mapping bugs
    assert bool(jnp.all(jnp.abs(jnp.exp(out).sum(axis=1) - 1.0) < 1e-4))

    # Exercise the multi-step, batch-tiled grid path (B=96 -> Bt=48, grid=2).
    xb = jax.random.normal(xkey2, (96, 1, 28, 28), dtype=jnp.float32)
    outb = lenet_forward(prepped, xb)
    jax.block_until_ready(outb)
    assert outb.shape == (96, 10)
    assert bool(jnp.all(jnp.isfinite(outb)))
    refb = _reference_forward(params, xb)
    max_errb = float(jnp.max(jnp.abs(outb - refb)))
    mean_errb = float(jnp.mean(jnp.abs(outb - refb)))
    assert max_errb < 4e-2, max_errb
    assert mean_errb < 1e-2, mean_errb
    assert bool(jnp.all(jnp.abs(jnp.exp(outb).sum(axis=1) - 1.0) < 1e-4))

    print("KERNEL_OK")
</pallas_src>

<mosaic_0001>
module attributes {stable_mosaic.version = 11 : i64} {
  func.func @_lenet_kernel(%arg0: i32, %arg1: memref<28x8x128xf32, #tpu.memory_space<vmem>>, %arg2: memref<384x256xbf16, #tpu.memory_space<vmem>>, %arg3: memref<1x256xf32, #tpu.memory_space<vmem>>, %arg4: memref<768x256xbf16, #tpu.memory_space<vmem>>, %arg5: memref<1x256xf32, #tpu.memory_space<vmem>>, %arg6: memref<1280x128xbf16, #tpu.memory_space<vmem>>, %arg7: memref<1x128xf32, #tpu.memory_space<vmem>>, %arg8: memref<128x128xbf16, #tpu.memory_space<vmem>>, %arg9: memref<1x128xf32, #tpu.memory_space<vmem>>, %arg10: memref<128x128xbf16, #tpu.memory_space<vmem>>, %arg11: memref<1x128xf32, #tpu.memory_space<vmem>>, %arg12: memref<8x128xf32, #tpu.memory_space<vmem>>) attributes {dimension_semantics = [#tpu.dimension_semantics<parallel>], iteration_bounds = array<i64: 1>, scalar_prefetch = 0 : i64, scratch_operands = 0 : i64, tpu.core_type = #tpu.core_type<tc>, window_params = [{transform_indices = @transform_0, window_bounds = array<i64: 28, 8, 128>}, {pipeline_mode = #tpu.pipeline_mode<synchronous>, transform_indices = @transform_1, window_bounds = array<i64: 384, 256>}, {pipeline_mode = #tpu.pipeline_mode<synchronous>, transform_indices = @transform_2, window_bounds = array<i64: 1, 256>}, {pipeline_mode = #tpu.pipeline_mode<synchronous>, transform_indices = @transform_3, window_bounds = array<i64: 768, 256>}, {pipeline_mode = #tpu.pipeline_mode<synchronous>, transform_indices = @transform_4, window_bounds = array<i64: 1, 256>}, {pipeline_mode = #tpu.pipeline_mode<synchronous>, transform_indices = @transform_5, window_bounds = array<i64: 1280, 128>}, {pipeline_mode = #tpu.pipeline_mode<synchronous>, transform_indices = @transform_6, window_bounds = array<i64: 1, 128>}, {pipeline_mode = #tpu.pipeline_mode<synchronous>, transform_indices = @transform_7, window_bounds = array<i64: 128, 128>}, {pipeline_mode = #tpu.pipeline_mode<synchronous>, transform_indices = @transform_8, window_bounds = array<i64: 1, 128>}, {pipeline_mode = #tpu.pipeline_mode<synchronous>, transform_indices = @transform_9, window_bounds = array<i64: 128, 128>}, {pipeline_mode = #tpu.pipeline_mode<synchronous>, transform_indices = @transform_10, window_bounds = array<i64: 1, 128>}, {transform_indices = @transform_11, window_bounds = array<i64: 8, 128>}]} {
    %c0 = arith.constant 0 : index
    %c0_0 = arith.constant 0 : index
    %c0_1 = arith.constant 0 : index
    %0 = vector.load %arg1[%c0, %c0_0, %c0_1] : memref<28x8x128xf32, #tpu.memory_space<vmem>>, vector<28x8x128xf32>
    %1 = vector.extract_strided_slice %0 {offsets = [0, 0, 0], sizes = [26, 8, 128], strides = [1, 1, 1]} : vector<28x8x128xf32> to vector<26x8x128xf32>
    %2 = vector.extract_strided_slice %0 {offsets = [1, 0, 0], sizes = [26, 8, 128], strides = [1, 1, 1]} : vector<28x8x128xf32> to vector<26x8x128xf32>
    %3 = vector.extract_strided_slice %0 {offsets = [2, 0, 0], sizes = [26, 8, 128], strides = [1, 1, 1]} : vector<28x8x128xf32> to vector<26x8x128xf32>
    %4 = tpu.concatenate %1, %2, %3 in 2 : vector<26x8x128xf32>, vector<26x8x128xf32>, vector<26x8x128xf32> -> vector<26x8x384xf32>
    %5 = vector.shape_cast %4 : vector<26x8x384xf32> to vector<208x384xf32>
    %6 = arith.truncf %5 : vector<208x384xf32> to vector<208x384xbf16>
    %c0_2 = arith.constant 0 : index
    %c0_3 = arith.constant 0 : index
    %7 = vector.load %arg2[%c0_2, %c0_3] : memref<384x256xbf16, #tpu.memory_space<vmem>>, vector<384x256xbf16>
    %cst = arith.constant dense<0.000000e+00> : vector<208x256xf32>
    %8 = tpu.matmul %6, %7, %cst {dimension_numbers = #tpu.dot_dimension_numbers<[1], [0], [0], [1], [0, 0, 1, 1], [], []>} : vector<208x384xbf16>, vector<384x256xbf16>, vector<208x256xf32> -> vector<208x256xf32>
    %c0_4 = arith.constant 0 : index
    %c0_5 = arith.constant 0 : index
    %9 = vector.load %arg3[%c0_4, %c0_5] : memref<1x256xf32, #tpu.memory_space<vmem>>, vector<1x256xf32>
    %10 = vector.broadcast %9 : vector<1x256xf32> to vector<208x256xf32>
    %11 = arith.addf %8, %10 : vector<208x256xf32>
    %cst_6 = arith.constant 0.000000e+00 : f32
    %12 = vector.broadcast %cst_6 : f32 to vector<208x256xf32>
    %13 = arith.maximumf %11, %12 : vector<208x256xf32>
    %14 = vector.shape_cast %13 : vector<208x256xf32> to vector<13x16x256xf32>
    %15 = vector.extract_strided_slice %14 {offsets = [0, 0, 0], sizes = [13, 8, 256], strides = [1, 1, 1]} : vector<13x16x256xf32> to vector<13x8x256xf32>
    %16 = vector.extract_strided_slice %14 {offsets = [0, 8, 0], sizes = [13, 8, 256], strides = [1, 1, 1]} : vector<13x16x256xf32> to vector<13x8x256xf32>
    %17 = arith.maximumf %15, %16 : vector<13x8x256xf32>
    %c250_i32 = arith.constant 250 : i32
    %18 = tpu.dynamic_rotate %17 by %c250_i32 dim 2 : vector<13x8x256xf32>, i32 -> vector<13x8x256xf32>
    %19 = arith.maximumf %17, %18 : vector<13x8x256xf32>
    %20 = vector.extract_strided_slice %19 {offsets = [0, 0, 0], sizes = [11, 8, 256], strides = [1, 1, 1]} : vector<13x8x256xf32> to vector<11x8x256xf32>
    %21 = vector.extract_strided_slice %19 {offsets = [1, 0, 0], sizes = [11, 8, 256], strides = [1, 1, 1]} : vector<13x8x256xf32> to vector<11x8x256xf32>
    %22 = vector.extract_strided_slice %19 {offsets = [2, 0, 0], sizes = [11, 8, 256], strides = [1, 1, 1]} : vector<13x8x256xf32> to vector<11x8x256xf32>
    %23 = tpu.concatenate %20, %21, %22 in 2 : vector<11x8x256xf32>, vector<11x8x256xf32>, vector<11x8x256xf32> -> vector<11x8x768xf32>
    %24 = vector.shape_cast %23 : vector<11x8x768xf32> to vector<88x768xf32>
    %25 = arith.truncf %24 : vector<88x768xf32> to vector<88x768xbf16>
    %c0_7 = arith.constant 0 : index
    %c0_8 = arith.constant 0 : index
    %26 = vector.load %arg4[%c0_7, %c0_8] : memref<768x256xbf16, #tpu.memory_space<vmem>>, vector<768x256xbf16>
    %cst_9 = arith.constant dense<0.000000e+00> : vector<88x256xf32>
    %27 = tpu.matmul %25, %26, %cst_9 {dimension_numbers = #tpu.dot_dimension_numbers<[1], [0], [0], [1], [0, 0, 1, 1], [], []>} : vector<88x768xbf16>, vector<768x256xbf16>, vector<88x256xf32> -> vector<88x256xf32>
    %c0_10 = arith.constant 0 : index
    %c0_11 = arith.constant 0 : index
    %28 = vector.load %arg5[%c0_10, %c0_11] : memref<1x256xf32, #tpu.memory_space<vmem>>, vector<1x256xf32>
    %29 = vector.broadcast %28 : vector<1x256xf32> to vector<88x256xf32>
    %30 = arith.addf %27, %29 : vector<88x256xf32>
    %cst_12 = arith.constant 0.000000e+00 : f32
    %31 = vector.broadcast %cst_12 : f32 to vector<88x256xf32>
    %32 = arith.maximumf %30, %31 : vector<88x256xf32>
    %33 = vector.extract_strided_slice %32 {offsets = [0, 0], sizes = [80, 256], strides = [1, 1]} : vector<88x256xf32> to vector<80x256xf32>
    %34 = vector.shape_cast %33 : vector<80x256xf32> to vector<5x16x256xf32>
    %35 = vector.extract_strided_slice %34 {offsets = [0, 0, 0], sizes = [5, 8, 256], strides = [1, 1, 1]} : vector<5x16x256xf32> to vector<5x8x256xf32>
    %36 = vector.extract_strided_slice %34 {offsets = [0, 8, 0], sizes = [5, 8, 256], strides = [1, 1, 1]} : vector<5x16x256xf32> to vector<5x8x256xf32>
    %37 = arith.maximumf %35, %36 : vector<5x8x256xf32>
    %c240_i32 = arith.constant 240 : i32
    %38 = tpu.dynamic_rotate %37 by %c240_i32 dim 2 : vector<5x8x256xf32>, i32 -> vector<5x8x256xf32>
    %39 = arith.maximumf %37, %38 : vector<5x8x256xf32>
    %40 = vector.extract_strided_slice %39 {offsets = [0, 0, 0], sizes = [1, 8, 256], strides = [1, 1, 1]} : vector<5x8x256xf32> to vector<1x8x256xf32>
    %41 = vector.shape_cast %40 : vector<1x8x256xf32> to vector<8x256xf32>
    %42 = vector.extract_strided_slice %39 {offsets = [1, 0, 0], sizes = [1, 8, 256], strides = [1, 1, 1]} : vector<5x8x256xf32> to vector<1x8x256xf32>
    %43 = vector.shape_cast %42 : vector<1x8x256xf32> to vector<8x256xf32>
    %44 = vector.extract_strided_slice %39 {offsets = [2, 0, 0], sizes = [1, 8, 256], strides = [1, 1, 1]} : vector<5x8x256xf32> to vector<1x8x256xf32>
    %45 = vector.shape_cast %44 : vector<1x8x256xf32> to vector<8x256xf32>
    %46 = vector.extract_strided_slice %39 {offsets = [3, 0, 0], sizes = [1, 8, 256], strides = [1, 1, 1]} : vector<5x8x256xf32> to vector<1x8x256xf32>
    %47 = vector.shape_cast %46 : vector<1x8x256xf32> to vector<8x256xf32>
    %48 = vector.extract_strided_slice %39 {offsets = [4, 0, 0], sizes = [1, 8, 256], strides = [1, 1, 1]} : vector<5x8x256xf32> to vector<1x8x256xf32>
    %49 = vector.shape_cast %48 : vector<1x8x256xf32> to vector<8x256xf32>
    %50 = tpu.concatenate %41, %43, %45, %47, %49 in 1 : vector<8x256xf32>, vector<8x256xf32>, vector<8x256xf32>, vector<8x256xf32>, vector<8x256xf32> -> vector<8x1280xf32>
    %51 = arith.truncf %50 : vector<8x1280xf32> to vector<8x1280xbf16>
    %c0_13 = arith.constant 0 : index
    %c0_14 = arith.constant 0 : index
    %52 = vector.load %arg6[%c0_13, %c0_14] : memref<1280x128xbf16, #tpu.memory_space<vmem>>, vector<1280x128xbf16>
    %cst_15 = arith.constant dense<0.000000e+00> : vector<8x128xf32>
    %53 = tpu.matmul %51, %52, %cst_15 {dimension_numbers = #tpu.dot_dimension_numbers<[1], [0], [0], [1], [0, 0, 1, 1], [], []>} : vector<8x1280xbf16>, vector<1280x128xbf16>, vector<8x128xf32> -> vector<8x128xf32>
    %c0_16 = arith.constant 0 : index
    %c0_17 = arith.constant 0 : index
    %54 = vector.load %arg7[%c0_16, %c0_17] : memref<1x128xf32, #tpu.memory_space<vmem>>, vector<1x128xf32>
    %55 = vector.broadcast %54 : vector<1x128xf32> to vector<8x128xf32>
    %56 = arith.addf %53, %55 : vector<8x128xf32>
    %cst_18 = arith.constant 0.000000e+00 : f32
    %57 = vector.broadcast %cst_18 : f32 to vector<8x128xf32>
    %58 = arith.maximumf %56, %57 : vector<8x128xf32>
    %59 = arith.truncf %58 : vector<8x128xf32> to vector<8x128xbf16>
    %c0_19 = arith.constant 0 : index
    %c0_20 = arith.constant 0 : index
    %60 = vector.load %arg8[%c0_19, %c0_20] : memref<128x128xbf16, #tpu.memory_space<vmem>>, vector<128x128xbf16>
    %cst_21 = arith.constant dense<0.000000e+00> : vector<8x128xf32>
    %61 = tpu.matmul %59, %60, %cst_21 {dimension_numbers = #tpu.dot_dimension_numbers<[1], [0], [0], [1], [0, 0, 1, 1], [], []>} : vector<8x128xbf16>, vector<128x128xbf16>, vector<8x128xf32> -> vector<8x128xf32>
    %c0_22 = arith.constant 0 : index
    %c0_23 = arith.constant 0 : index
    %62 = vector.load %arg9[%c0_22, %c0_23] : memref<1x128xf32, #tpu.memory_space<vmem>>, vector<1x128xf32>
    %63 = vector.broadcast %62 : vector<1x128xf32> to vector<8x128xf32>
    %64 = arith.addf %61, %63 : vector<8x128xf32>
    %cst_24 = arith.constant 0.000000e+00 : f32
    %65 = vector.broadcast %cst_24 : f32 to vector<8x128xf32>
    %66 = arith.maximumf %64, %65 : vector<8x128xf32>
    %67 = arith.truncf %66 : vector<8x128xf32> to vector<8x128xbf16>
    %c0_25 = arith.constant 0 : index
    %c0_26 = arith.constant 0 : index
    %68 = vector.load %arg10[%c0_25, %c0_26] : memref<128x128xbf16, #tpu.memory_space<vmem>>, vector<128x128xbf16>
    %cst_27 = arith.constant dense<0.000000e+00> : vector<8x128xf32>
    %69 = tpu.matmul %67, %68, %cst_27 {dimension_numbers = #tpu.dot_dimension_numbers<[1], [0], [0], [1], [0, 0, 1, 1], [], []>} : vector<8x128xbf16>, vector<128x128xbf16>, vector<8x128xf32> -> vector<8x128xf32>
    %c0_28 = arith.constant 0 : index
    %c0_29 = arith.constant 0 : index
    %70 = vector.load %arg11[%c0_28, %c0_29] : memref<1x128xf32, #tpu.memory_space<vmem>>, vector<1x128xf32>
    %71 = vector.broadcast %70 : vector<1x128xf32> to vector<8x128xf32>
    %72 = arith.addf %69, %71 : vector<8x128xf32>
    %cst_30 = arith.constant dense<0xFF800000> : vector<8xf32>
    %73 = vector.multi_reduction <maximumf>, %72, %cst_30 [1] : vector<8x128xf32> to vector<8xf32>
    %74 = vector.shape_cast %73 : vector<8xf32> to vector<8x1xf32>
    %75 = vector.broadcast %74 : vector<8x1xf32> to vector<8x128xf32>
    %76 = arith.subf %72, %75 : vector<8x128xf32>
    %77 = math.exp %76 : vector<8x128xf32>
    %cst_31 = arith.constant dense<0.000000e+00> : vector<8xf32>
    %78 = vector.multi_reduction <add>, %77, %cst_31 [1] : vector<8x128xf32> to vector<8xf32>
    %79 = vector.shape_cast %78 : vector<8xf32> to vector<8x1xf32>
    %80 = math.log %79 : vector<8x1xf32>
    %81 = vector.broadcast %80 : vector<8x1xf32> to vector<8x128xf32>
    %82 = arith.subf %76, %81 : vector<8x128xf32>
    %c0_32 = arith.constant 0 : index
    %c0_33 = arith.constant 0 : index
    %83 = vector.load %arg12[%c0_32, %c0_33] : memref<8x128xf32, #tpu.memory_space<vmem>>, vector<8x128xf32>
    tpu.vector_store %arg12[%c0_32, %c0_33], %82 {strides = array<i32>} : memref<8x128xf32, #tpu.memory_space<vmem>>, vector<8x128xf32>,
    return
  }
  func.func @transform_0(%arg0: i32) -> (i32, i32, i32) {
    %c0_i32 = arith.constant 0 : i32
    %c0_i32_0 = arith.constant 0 : i32
    %c0_i32_1 = arith.constant 0 : i32
    return %c0_i32, %arg0, %c0_i32_0 : i32, i32, i32
  }
  func.func @transform_1(%arg0: i32) -> (i32, i32) {
    %c0_i32 = arith.constant 0 : i32
    %c0_i32_0 = arith.constant 0 : i32
    %c0_i32_1 = arith.constant 0 : i32
    return %c0_i32, %c0_i32_0 : i32, i32
  }
  func.func @transform_2(%arg0: i32) -> (i32, i32) {
    %c0_i32 = arith.constant 0 : i32
    %c0_i32_0 = arith.constant 0 : i32
    %c0_i32_1 = arith.constant 0 : i32
    return %c0_i32, %c0_i32_0 : i32, i32
  }
  func.func @transform_3(%arg0: i32) -> (i32, i32) {
    %c0_i32 = arith.constant 0 : i32
    %c0_i32_0 = arith.constant 0 : i32
    %c0_i32_1 = arith.constant 0 : i32
    return %c0_i32, %c0_i32_0 : i32, i32
  }
  func.func @transform_4(%arg0: i32) -> (i32, i32) {
    %c0_i32 = arith.constant 0 : i32
    %c0_i32_0 = arith.constant 0 : i32
    %c0_i32_1 = arith.constant 0 : i32
    return %c0_i32, %c0_i32_0 : i32, i32
  }
  func.func @transform_5(%arg0: i32) -> (i32, i32) {
    %c0_i32 = arith.constant 0 : i32
    %c0_i32_0 = arith.constant 0 : i32
    %c0_i32_1 = arith.constant 0 : i32
    return %c0_i32, %c0_i32_0 : i32, i32
  }
  func.func @transform_6(%arg0: i32) -> (i32, i32) {
    %c0_i32 = arith.constant 0 : i32
    %c0_i32_0 = arith.constant 0 : i32
    %c0_i32_1 = arith.constant 0 : i32
    return %c0_i32, %c0_i32_0 : i32, i32
  }
  func.func @transform_7(%arg0: i32) -> (i32, i32) {
    %c0_i32 = arith.constant 0 : i32
    %c0_i32_0 = arith.constant 0 : i32
    %c0_i32_1 = arith.constant 0 : i32
    return %c0_i32, %c0_i32_0 : i32, i32
  }
  func.func @transform_8(%arg0: i32) -> (i32, i32) {
    %c0_i32 = arith.constant 0 : i32
    %c0_i32_0 = arith.constant 0 : i32
    %c0_i32_1 = arith.constant 0 : i32
    return %c0_i32, %c0_i32_0 : i32, i32
  }
  func.func @transform_9(%arg0: i32) -> (i32, i32) {
    %c0_i32 = arith.constant 0 : i32
    %c0_i32_0 = arith.constant 0 : i32
    %c0_i32_1 = arith.constant 0 : i32
    return %c0_i32, %c0_i32_0 : i32, i32
  }
  func.func @transform_10(%arg0: i32) -> (i32, i32) {
    %c0_i32 = arith.constant 0 : i32
    %c0_i32_0 = arith.constant 0 : i32
    %c0_i32_1 = arith.constant 0 : i32
    return %c0_i32, %c0_i32_0 : i32, i32
  }
  func.func @transform_11(%arg0: i32) -> (i32, i32) {
    %c0_i32 = arith.constant 0 : i32
    %c0_i32_0 = arith.constant 0 : i32
    return %arg0, %c0_i32 : i32, i32
  }
}

</mosaic_0001>

<llo_original>
// kernel: lenet_forward.1
$region0: #{lenet_forward.1}
  #allocation0 [shape = 'u32[]', space=smem, size = 0x4, offset = 0x4, fixed_abs, tag = 'smem constant byte address 0x4 - core index']
  #allocation1 [shape = 'u32[144,128]{1,0:T(1,128)}', space=vmem, size = 0x12000, scoped, tag = 'internal scratch']
  %s0 = inlined_call_operand.hbm [shape: f32[28,8,128], index: 0, kind: input, shape index: {}]
  %s1 = inlined_call_operand.hbm [shape: bf16[384,256], index: 1, kind: input, shape index: {}]
  %s2 = inlined_call_operand.hbm [shape: f32[1,256], index: 2, kind: input, shape index: {}]
  %s3 = inlined_call_operand.hbm [shape: bf16[768,256], index: 3, kind: input, shape index: {}]
  %s4 = inlined_call_operand.hbm [shape: f32[1,256], index: 4, kind: input, shape index: {}]
  %s5 = inlined_call_operand.hbm [shape: bf16[1280,128], index: 5, kind: input, shape index: {}]
  %s6 = inlined_call_operand.hbm [shape: f32[1,128], index: 6, kind: input, shape index: {}]
  %s7 = inlined_call_operand.hbm [shape: bf16[128,128], index: 7, kind: input, shape index: {}]
  %s8 = inlined_call_operand.hbm [shape: f32[1,128], index: 8, kind: input, shape index: {}]
  %s9 = inlined_call_operand.hbm [shape: bf16[128,128], index: 9, kind: input, shape index: {}]
  %s10 = inlined_call_operand.hbm [shape: f32[1,128], index: 10, kind: input, shape index: {}]
  %s11 = inlined_call_operand.hbm [shape: f32[8,128], index: 11, kind: output, shape index: {}]
  %s12 = sld [smem:[#allocation0]]
  $region98: #{lenet_forward.1} parent=0
    _
  %s14 = ssub.s32 1, %s12
  %s15 = scalar_select 0, %s14, %s12
  $region1: #{lenet_forward.1} parent=0
    #allocation2 [shape = 'u8[114688]{0}', space=vmem, size = 0x1c000, scoped, tag = 'input window, operand 0, single buffered']
    #allocation3 [shape = 's32[1]{0}', space=sflag, size = 0x4, scoped, tag = 'scoped memory for lenet_forward.1']
    #allocation4 [shape = 's32[1]{0}', space=sflag, size = 0x4, scoped, tag = 'scoped memory for lenet_forward.1']
    #allocation5 [shape = 'u8[196608]{0}', space=vmem, size = 0x30000, scoped, tag = 'input window, operand 1, single buffered']
    #allocation6 [shape = 's32[1]{0}', space=sflag, size = 0x4, scoped, tag = 'scoped memory for lenet_forward.1']
    #allocation7 [shape = 'u8[1024]{0}', space=vmem, size = 0x400, scoped, tag = 'input window, operand 2, single buffered']
    #allocation8 [shape = 'u8[393216]{0}', space=vmem, size = 0x60000, scoped, tag = 'input window, operand 3, single buffered']
    #allocation9 [shape = 's32[1]{0}', space=sflag, size = 0x4, scoped, tag = 'scoped memory for lenet_forward.1']
    #allocation10 [shape = 'u8[1024]{0}', space=vmem, size = 0x400, scoped, tag = 'input window, operand 4, single buffered']
    #allocation11 [shape = 'u8[327680]{0}', space=vmem, size = 0x50000, scoped, tag = 'input window, operand 5, single buffered']
    #allocation12 [shape = 's32[1]{0}', space=sflag, size = 0x4, scoped, tag = 'scoped memory for lenet_forward.1']
    #allocation13 [shape = 'u8[512]{0}', space=vmem, size = 0x400, scoped, tag = 'input window, operand 6, single buffered']
    #allocation14 [shape = 'u8[32768]{0}', space=vmem, size = 0x8000, scoped, tag = 'input window, operand 7, single buffered']
    #allocation15 [shape = 's32[1]{0}', space=sflag, size = 0x4, scoped, tag = 'scoped memory for lenet_forward.1']
    #allocation16 [shape = 'u8[512]{0}', space=vmem, size = 0x400, scoped, tag = 'input window, operand 8, single buffered']
    #allocation17 [shape = 'u8[32768]{0}', space=vmem, size = 0x8000, scoped, tag = 'input window, operand 9, single buffered']
    #allocation18 [shape = 's32[1]{0}', space=sflag, size = 0x4, scoped, tag = 'scoped memory for lenet_forward.1']
    #allocation19 [shape = 'u8[512]{0}', space=vmem, size = 0x400, scoped, tag = 'input window, operand 10, single buffered']
    #allocation20 [shape = 'u8[4096]{0}', space=vmem, size = 0x1000, scoped, tag = 'output window, operand 0, single buffered']
    %16 = vsyncpa [#allocation3], 0
    %17 = vsyncpa [#allocation6], 0
    %18 = vsyncpa [#allocation9], 0
    %19 = vsyncpa [#allocation12], 0
    %20 = vsyncpa [#allocation15], 0
    %21 = vsyncpa [#allocation18], 0
    %22 = vsyncpa [#allocation4], 0
    // Predicated region
    $region2: #{lenet_forward.1} parent=1 // pred_check
      _
    $region3: #{lenet_forward.1} parent=1 // pred_check_branch
      %24 = sbr.rel (0) target = $region5
    $region4: #{lenet_forward.1} parent=1 // pred_region
      %s26 = ssub.s32 3584, 3584
      %27 = vsyncadd [#allocation3], %s26
      %s28 = sshll.u32 [#allocation2], 4
      %s29 = int_to_ptr.vmem [resolvable:$true] %s28
      %34 = dma.hbm_to_vmem [thread:$0]  %s0, 3584, %s29, [#allocation3], 128, 128, 8
    $region5: #{lenet_forward.1} parent=1 // pred_fallthru
      _
    // Predicated region
    $region6: #{lenet_forward.1} parent=1 // pred_check
      _
    $region7: #{lenet_forward.1} parent=1 // pred_check_branch
      %36 = sbr.rel (0) target = $region9
    $region8: #{lenet_forward.1} parent=1 // pred_region
      %s38 = ssub.s32 6144, 6144
      %39 = vsyncadd [#allocation6], %s38
      %s40 = sshll.u32 [#allocation5], 4
      %s41 = int_to_ptr.vmem [resolvable:$true] %s40
      %46 = dma.hbm_to_vmem [thread:$0]  %s1, 6144, %s41, [#allocation6], 128, 128, 8
    $region9: #{lenet_forward.1} parent=1 // pred_fallthru
      _
    // Predicated region
    $region10: #{lenet_forward.1} parent=1 // pred_check
      _
    $region11: #{lenet_forward.1} parent=1 // pred_check_branch
      %48 = sbr.rel (0) target = $region13
    $region12: #{lenet_forward.1} parent=1 // pred_region
      %s50 = ssub.s32 32, 32
      %51 = vsyncadd [#allocation6], %s50
      %s53 = sshll.u32 [#allocation7], 4
      %s54 = int_to_ptr.vmem [resolvable:$true] %s53
      %56 = dma.hbm_to_vmem [thread:$0]  %s2, 32, %s54, [#allocation6]
    $region13: #{lenet_forward.1} parent=1 // pred_fallthru
      _
    // Predicated region
    $region14: #{lenet_forward.1} parent=1 // pred_check
      _
    $region15: #{lenet_forward.1} parent=1 // pred_check_branch
      %58 = sbr.rel (0) target = $region17
    $region16: #{lenet_forward.1} parent=1 // pred_region
      %s60 = ssub.s32 12288, 12288
      %61 = vsyncadd [#allocation9], %s60
      %s62 = sshll.u32 [#allocation8], 4
      %s63 = int_to_ptr.vmem [resolvable:$true] %s62
      %68 = dma.hbm_to_vmem [thread:$0]  %s3, 12288, %s63, [#allocation9], 128, 128, 8
    $region17: #{lenet_forward.1} parent=1 // pred_fallthru
      _
    // Predicated region
    $region18: #{lenet_forward.1} parent=1 // pred_check
      _
    $region19: #{lenet_forward.1} parent=1 // pred_check_branch
      %70 = sbr.rel (0) target = $region21
    $region20: #{lenet_forward.1} parent=1 // pred_region
      %s72 = ssub.s32 32, 32
      %73 = vsyncadd [#allocation9], %s72
      %s75 = sshll.u32 [#allocation10], 4
      %s76 = int_to_ptr.vmem [resolvable:$true] %s75
      %78 = dma.hbm_to_vmem [thread:$0]  %s4, 32, %s76, [#allocation9]
    $region21: #{lenet_forward.1} parent=1 // pred_fallthru
      _
    // Predicated region
    $region22: #{lenet_forward.1} parent=1 // pred_check
      _
    $region23: #{lenet_forward.1} parent=1 // pred_check_branch
      %80 = sbr.rel (0) target = $region25
    $region24: #{lenet_forward.1} parent=1 // pred_region
      %s82 = ssub.s32 10240, 10240
      %83 = vsyncadd [#allocation12], %s82
      %s84 = sshll.u32 [#allocation11], 4
      %s85 = int_to_ptr.vmem [resolvable:$true] %s84
      %90 = dma.hbm_to_vmem [thread:$0]  %s5, 10240, %s85, [#allocation12], 64, 64, 4
    $region25: #{lenet_forward.1} parent=1 // pred_fallthru
      _
    // Predicated region
    $region26: #{lenet_forward.1} parent=1 // pred_check
      _
    $region27: #{lenet_forward.1} parent=1 // pred_check_branch
      %92 = sbr.rel (0) target = $region29
    $region28: #{lenet_forward.1} parent=1 // pred_region
      %s94 = ssub.s32 16, 16
      %95 = vsyncadd [#allocation12], %s94
      %s97 = sshll.u32 [#allocation13], 4
      %s98 = int_to_ptr.vmem [resolvable:$true] %s97
      %100 = dma.hbm_to_vmem [thread:$0]  %s6, 16, %s98, [#allocation12]
    $region29: #{lenet_forward.1} parent=1 // pred_fallthru
      _
    // Predicated region
    $region30: #{lenet_forward.1} parent=1 // pred_check
      _
    $region31: #{lenet_forward.1} parent=1 // pred_check_branch
      %102 = sbr.rel (0) target = $region33
    $region32: #{lenet_forward.1} parent=1 // pred_region
      %s104 = ssub.s32 1024, 1024
      %105 = vsyncadd [#allocation15], %s104
      %s106 = sshll.u32 [#allocation14], 4
      %s107 = int_to_ptr.vmem [resolvable:$true] %s106
      %112 = dma.hbm_to_vmem [thread:$0]  %s7, 1024, %s107, [#allocation15], 64, 64, 4
    $region33: #{lenet_forward.1} parent=1 // pred_fallthru
      _
    // Predicated region
    $region34: #{lenet_forward.1} parent=1 // pred_check
      _
    $region35: #{lenet_forward.1} parent=1 // pred_check_branch
      %114 = sbr.rel (0) target = $region37
    $region36: #{lenet_forward.1} parent=1 // pred_region
      %s116 = ssub.s32 16, 16
      %117 = vsyncadd [#allocation15], %s116
      %s119 = sshll.u32 [#allocation16], 4
      %s120 = int_to_ptr.vmem [resolvable:$true] %s119
      %122 = dma.hbm_to_vmem [thread:$0]  %s8, 16, %s120, [#allocation15]
    $region37: #{lenet_forward.1} parent=1 // pred_fallthru
      _
    // Predicated region
    $region38: #{lenet_forward.1} parent=1 // pred_check
      _
    $region39: #{lenet_forward.1} parent=1 // pred_check_branch
      %124 = sbr.rel (0) target = $region41
    $region40: #{lenet_forward.1} parent=1 // pred_region
      %s126 = ssub.s32 1024, 1024
      %127 = vsyncadd [#allocation18], %s126
      %s128 = sshll.u32 [#allocation17], 4
      %s129 = int_to_ptr.vmem [resolvable:$true] %s128
      %134 = dma.hbm_to_vmem [thread:$0]  %s9, 1024, %s129, [#allocation18], 64, 64, 4
    $region41: #{lenet_forward.1} parent=1 // pred_fallthru
      _
    // Predicated region
    $region42: #{lenet_forward.1} parent=1 // pred_check
      _
    $region43: #{lenet_forward.1} parent=1 // pred_check_branch
      %136 = sbr.rel (0) target = $region45
    $region44: #{lenet_forward.1} parent=1 // pred_region
      %s138 = ssub.s32 16, 16
      %139 = vsyncadd [#allocation18], %s138
      %s141 = sshll.u32 [#allocation19], 4
      %s142 = int_to_ptr.vmem [resolvable:$true] %s141
      %144 = dma.hbm_to_vmem [thread:$0]  %s10, 16, %s142, [#allocation18]
    $region45: #{lenet_forward.1} parent=1 // pred_fallthru
      _
    // Predicated region
    $region46: #{lenet_forward.1} parent=1 // pred_check
      _
    $region47: #{lenet_forward.1} parent=1 // pred_check_branch
      %146 = sbr.rel (0) target = $region49
    $region48: #{lenet_forward.1} parent=1 // pred_region
      %147 = dma.done [#allocation3], 3584
    $region49: #{lenet_forward.1} parent=1 // pred_fallthru
      _
    // Predicated region
    $region50: #{lenet_forward.1} parent=1 // pred_check
      _
    $region51: #{lenet_forward.1} parent=1 // pred_check_branch
      %149 = sbr.rel (0) target = $region53
    $region52: #{lenet_forward.1} parent=1 // pred_region
      %150 = dma.done [#allocation6], 6144
    $region53: #{lenet_forward.1} parent=1 // pred_fallthru
      _
    // Predicated region
    $region54: #{lenet_forward.1} parent=1 // pred_check
      _
    $region55: #{lenet_forward.1} parent=1 // pred_check_branch
      %152 = sbr.rel (0) target = $region57
    $region56: #{lenet_forward.1} parent=1 // pred_region
      %153 = dma.done [#allocation6], 32
    $region57: #{lenet_forward.1} parent=1 // pred_fallthru
      _
    // Predicated region
    $region58: #{lenet_forward.1} parent=1 // pred_check
      _
    $region59: #{lenet_forward.1} parent=1 // pred_check_branch
      %155 = sbr.rel (0) target = $region61
    $region60: #{lenet_forward.1} parent=1 // pred_region
      %156 = dma.done [#allocation9], 12288
    $region61: #{lenet_forward.1} parent=1 // pred_fallthru
      _
    // Predicated region
    $region62: #{lenet_forward.1} parent=1 // pred_check
      _
    $region63: #{lenet_forward.1} parent=1 // pred_check_branch
      %158 = sbr.rel (0) target = $region65
    $region64: #{lenet_forward.1} parent=1 // pred_region
      %159 = dma.done [#allocation9], 32
    $region65: #{lenet_forward.1} parent=1 // pred_fallthru
      _
    // Predicated region
    $region66: #{lenet_forward.1} parent=1 // pred_check
      _
    $region67: #{lenet_forward.1} parent=1 // pred_check_branch
      %161 = sbr.rel (0) target = $region69
    $region68: #{lenet_forward.1} parent=1 // pred_region
      %162 = dma.done [#allocation12], 10240
    $region69: #{lenet_forward.1} parent=1 // pred_fallthru
      _
    // Predicated region
    $region70: #{lenet_forward.1} parent=1 // pred_check
      _
    $region71: #{lenet_forward.1} parent=1 // pred_check_branch
      %164 = sbr.rel (0) target = $region73
    $region72: #{lenet_forward.1} parent=1 // pred_region
      %165 = dma.done [#allocation12], 16
    $region73: #{lenet_forward.1} parent=1 // pred_fallthru
      _
    // Predicated region
    $region74: #{lenet_forward.1} parent=1 // pred_check
      _
    $region75: #{lenet_forward.1} parent=1 // pred_check_branch
      %167 = sbr.rel (0) target = $region77
    $region76: #{lenet_forward.1} parent=1 // pred_region
      %168 = dma.done [#allocation15], 1024
    $region77: #{lenet_forward.1} parent=1 // pred_fallthru
      _
    // Predicated region
    $region78: #{lenet_forward.1} parent=1 // pred_check
      _
    $region79: #{lenet_forward.1} parent=1 // pred_check_branch
      %170 = sbr.rel (0) target = $region81
    $region80: #{lenet_forward.1} parent=1 // pred_region
      %171 = dma.done [#allocation15], 16
    $region81: #{lenet_forward.1} parent=1 // pred_fallthru
      _
    // Predicated region
    $region82: #{lenet_forward.1} parent=1 // pred_check
      _
    $region83: #{lenet_forward.1} parent=1 // pred_check_branch
      %173 = sbr.rel (0) target = $region85
    $region84: #{lenet_forward.1} parent=1 // pred_region
      %174 = dma.done [#allocation18], 1024
    $region85: #{lenet_forward.1} parent=1 // pred_fallthru
      _
    // Predicated region
    $region86: #{lenet_forward.1} parent=1 // pred_check
      _
    $region87: #{lenet_forward.1} parent=1 // pred_check_branch
      %176 = sbr.rel (0) target = $region89
    $region88: #{lenet_forward.1} parent=1 // pred_region
      %177 = dma.done [#allocation18], 16
    $region89: #{lenet_forward.1} parent=1 // pred_fallthru
      _
    %v179 = vld [vmem:[#allocation2] sm:$0xff]
    %v180 = vld [vmem:[#allocation2 + $0x8] sm:$0xff]
    %v181 = vld [vmem:[#allocation2 + $0x10] sm:$0xff]
    %v182 = vld [vmem:[#allocation2 + $0x18] sm:$0xff]
    %v183 = vld [vmem:[#allocation2 + $0x20] sm:$0xff]
    %v184 = vld [vmem:[#allocation2 + $0x28] sm:$0xff]
    %v185 = vld [vmem:[#allocation2 + $0x30] sm:$0xff]
    %v186 = vld [vmem:[#allocation2 + $0x38] sm:$0xff]
    %v187 = vld [vmem:[#allocation2 + $0x40] sm:$0xff]
    %v188 = vld [vmem:[#allocation2 + $0x48] sm:$0xff]
    %v189 = vld [vmem:[#allocation2 + $0x50] sm:$0xff]
    %v190 = vld [vmem:[#allocation2 + $0x58] sm:$0xff]
    %v191 = vld [vmem:[#allocation2 + $0x60] sm:$0xff]
    %v192 = vld [vmem:[#allocation2 + $0x68] sm:$0xff]
    %v193 = vld [vmem:[#allocation2 + $0x70] sm:$0xff]
    %v194 = vld [vmem:[#allocation2 + $0x78] sm:$0xff]
    %v195 = vld [vmem:[#allocation2 + $0x80] sm:$0xff]
    %v196 = vld [vmem:[#allocation2 + $0x88] sm:$0xff]
    %v197 = vld [vmem:[#allocation2 + $0x90] sm:$0xff]
    %v198 = vld [vmem:[#allocation2 + $0x98] sm:$0xff]
    %v199 = vld [vmem:[#allocation2 + $0xa0] sm:$0xff]
    %v200 = vld [vmem:[#allocation2 + $0xa8] sm:$0xff]
    %v201 = vld [vmem:[#allocation2 + $0xb0] sm:$0xff]
    %v202 = vld [vmem:[#allocation2 + $0xb8] sm:$0xff]
    %v203 = vld [vmem:[#allocation2 + $0xc0] sm:$0xff]
    %v204 = vld [vmem:[#allocation2 + $0xc8] sm:$0xff]
    %v205 = vld [vmem:[#allocation2 + $0xd0] sm:$0xff]
    %v206 = vld [vmem:[#allocation2 + $0xd8] sm:$0xff]
    %v207 = vpack.c.bf16 %v180, %v179
    %v208 = vpack.c.bf16 %v181, %v180
    %v209 = vpack.c.bf16 %v182, %v181
    %v210 = vpack.c.bf16 %v183, %v182
    %v211 = vpack.c.bf16 %v184, %v183
    %v212 = vpack.c.bf16 %v185, %v184
    %v213 = vpack.c.bf16 %v186, %v185
    %v214 = vpack.c.bf16 %v187, %v186
    %v215 = vpack.c.bf16 %v188, %v187
    %v216 = vpack.c.bf16 %v189, %v188
    %v217 = vpack.c.bf16 %v190, %v189
    %v218 = vpack.c.bf16 %v191, %v190
    %v219 = vpack.c.bf16 %v192, %v191
    %v220 = vpack.c.bf16 %v193, %v192
    %v221 = vpack.c.bf16 %v194, %v193
    %v222 = vpack.c.bf16 %v195, %v194
    %v223 = vpack.c.bf16 %v196, %v195
    %v224 = vpack.c.bf16 %v197, %v196
    %v225 = vpack.c.bf16 %v198, %v197
    %v226 = vpack.c.bf16 %v199, %v198
    %v227 = vpack.c.bf16 %v200, %v199
    %v228 = vpack.c.bf16 %v201, %v200
    %v229 = vpack.c.bf16 %v202, %v201
    %v230 = vpack.c.bf16 %v203, %v202
    %v231 = vpack.c.bf16 %v204, %v203
    %v232 = vpack.c.bf16 %v205, %v204
    %v233 = vpack.c.bf16 %v206, %v205
    %v234 = vld [vmem:[#allocation5] sm:$0xff]
    %v235 = vld [vmem:[#allocation5 + $0x8] sm:$0xff]
    %v236 = vld [vmem:[#allocation5 + $0x10] sm:$0xff]
    %v237 = vld [vmem:[#allocation5 + $0x18] sm:$0xff]
    %v238 = vld [vmem:[#allocation5 + $0x20] sm:$0xff]
    %v239 = vld [vmem:[#allocation5 + $0x28] sm:$0xff]
    %v240 = vld [vmem:[#allocation5 + $0x30] sm:$0xff]
    %v241 = vld [vmem:[#allocation5 + $0x38] sm:$0xff]
    %v242 = vld [vmem:[#allocation5 + $0x40] sm:$0xff]
    %v243 = vld [vmem:[#allocation5 + $0x48] sm:$0xff]
    %v244 = vld [vmem:[#allocation5 + $0x50] sm:$0xff]
    %v245 = vld [vmem:[#allocation5 + $0x58] sm:$0xff]
    %v246 = vld [vmem:[#allocation5 + $0x60] sm:$0xff]
    %v247 = vld [vmem:[#allocation5 + $0x68] sm:$0xff]
    %v248 = vld [vmem:[#allocation5 + $0x70] sm:$0xff]
    %v249 = vld [vmem:[#allocation5 + $0x78] sm:$0xff]
    %v250 = vld [vmem:[#allocation5 + $0x80] sm:$0xff]
    %v251 = vld [vmem:[#allocation5 + $0x88] sm:$0xff]
    %v252 = vld [vmem:[#allocation5 + $0x90] sm:$0xff]
    %v253 = vld [vmem:[#allocation5 + $0x98] sm:$0xff]
    %v254 = vld [vmem:[#allocation5 + $0xa0] sm:$0xff]
    %v255 = vld [vmem:[#allocation5 + $0xa8] sm:$0xff]
    %v256 = vld [vmem:[#allocation5 + $0xb0] sm:$0xff]
    %v257 = vld [vmem:[#allocation5 + $0xb8] sm:$0xff]
    %v258 = vld [vmem:[#allocation5 + $0xc0] sm:$0xff]
    %v259 = vld [vmem:[#allocation5 + $0xc8] sm:$0xff]
    %v260 = vld [vmem:[#allocation5 + $0xd0] sm:$0xff]
    %v261 = vld [vmem:[#allocation5 + $0xd8] sm:$0xff]
    %v262 = vld [vmem:[#allocation5 + $0xe0] sm:$0xff]
    %v263 = vld [vmem:[#allocation5 + $0xe8] sm:$0xff]
    %v264 = vld [vmem:[#allocation5 + $0xf0] sm:$0xff]
    %v265 = vld [vmem:[#allocation5 + $0xf8] sm:$0xff]
    %v266 = vld [vmem:[#allocation5 + $0x100] sm:$0xff]
    %v267 = vld [vmem:[#allocation5 + $0x108] sm:$0xff]
    %v268 = vld [vmem:[#allocation5 + $0x110] sm:$0xff]
    %v269 = vld [vmem:[#allocation5 + $0x118] sm:$0xff]
    %v270 = vld [vmem:[#allocation5 + $0x120] sm:$0xff]
    %v271 = vld [vmem:[#allocation5 + $0x128] sm:$0xff]
    %v272 = vld [vmem:[#allocation5 + $0x130] sm:$0xff]
    %v273 = vld [vmem:[#allocation5 + $0x138] sm:$0xff]
    %v274 = vld [vmem:[#allocation5 + $0x140] sm:$0xff]
    %v275 = vld [vmem:[#allocation5 + $0x148] sm:$0xff]
    %v276 = vld [vmem:[#allocation5 + $0x150] sm:$0xff]
    %v277 = vld [vmem:[#allocation5 + $0x158] sm:$0xff]
    %v278 = vld [vmem:[#allocation5 + $0x160] sm:$0xff]
    %v279 = vld [vmem:[#allocation5 + $0x168] sm:$0xff]
    %v280 = vld [vmem:[#allocation5 + $0x170] sm:$0xff]
    %v281 = vld [vmem:[#allocation5 + $0x178] sm:$0xff]
    %v282 = vld [vmem:[#allocation7] sm:$0x3]
    %v284 = vlaneseq
    %v285 = vshrl.u32 %v284, 7
    %v286 = vsub.s32 0, %v285
    %v287 = vrot.slane %v282, %v286
    %v288 = vlaneseq
    %v289 = vshrl.u32 %v288, 7
    %v290 = vsub.s32 1, %v289
    %v291 = vrot.slane %v282, %v290
    %v342 = vunpack.c.l.b16 %v234
    %v343 = vunpack.c.h.b16 %v234
    %v344 = vunpack.c.l.b16 %v235
    %v345 = vunpack.c.h.b16 %v235
    %v346 = vunpack.c.l.b16 %v236
    %v347 = vunpack.c.h.b16 %v236
    %v348 = vunpack.c.l.b16 %v237
    %v349 = vunpack.c.h.b16 %v237
    %v350 = vunpack.c.l.b16 %v238
    %v351 = vunpack.c.h.b16 %v238
    %v352 = vunpack.c.l.b16 %v239
    %v353 = vunpack.c.h.b16 %v239
    %v354 = vunpack.c.l.b16 %v240
    %v355 = vunpack.c.h.b16 %v240
    %v356 = vunpack.c.l.b16 %v241
    %v357 = vunpack.c.h.b16 %v241
    %v358 = vunpack.c.l.b16 %v242
    %v359 = vunpack.c.h.b16 %v242
    %v360 = vunpack.c.l.b16 %v243
    %v361 = vunpack.c.h.b16 %v243
    %v362 = vunpack.c.l.b16 %v244
    %v363 = vunpack.c.h.b16 %v244
    %v364 = vunpack.c.l.b16 %v245
    %v365 = vunpack.c.h.b16 %v245
    %v366 = vunpack.c.l.b16 %v246
    %v367 = vunpack.c.h.b16 %v246
    %v368 = vunpack.c.l.b16 %v247
    %v369 = vunpack.c.h.b16 %v247
    %v370 = vunpack.c.l.b16 %v248
    %v371 = vunpack.c.h.b16 %v248
    %v372 = vunpack.c.l.b16 %v249
    %v373 = vunpack.c.h.b16 %v249
    %v374 = vunpack.c.l.b16 %v250
    %v375 = vunpack.c.h.b16 %v250
    %v376 = vunpack.c.l.b16 %v251
    %v377 = vunpack.c.h.b16 %v251
    %v378 = vunpack.c.l.b16 %v252
    %v379 = vunpack.c.h.b16 %v252
    %v380 = vunpack.c.l.b16 %v253
    %v381 = vunpack.c.h.b16 %v253
    %v382 = vunpack.c.l.b16 %v254
    %v383 = vunpack.c.h.b16 %v254
    %v384 = vunpack.c.l.b16 %v255
    %v385 = vunpack.c.h.b16 %v255
    %v386 = vunpack.c.l.b16 %v256
    %v387 = vunpack.c.h.b16 %v256
    %v388 = vunpack.c.l.b16 %v257
    %v389 = vunpack.c.h.b16 %v257
    %v390 = vunpack.c.l.b16 %v258
    %v391 = vunpack.c.h.b16 %v258
    %v392 = vunpack.c.l.b16 %v259
    %v393 = vunpack.c.h.b16 %v259
    %v394 = vunpack.c.l.b16 %v260
    %v395 = vunpack.c.h.b16 %v260
    %v396 = vunpack.c.l.b16 %v261
    %v397 = vunpack.c.h.b16 %v261
    %v398 = vunpack.c.l.b16 %v262
    %v399 = vunpack.c.h.b16 %v262
    %v400 = vunpack.c.l.b16 %v263
    %v401 = vunpack.c.h.b16 %v263
    %v402 = vunpack.c.l.b16 %v264
    %v403 = vunpack.c.h.b16 %v264
    %v404 = vunpack.c.l.b16 %v265
    %v405 = vunpack.c.h.b16 %v265
    %v406 = vunpack.c.l.b16 %v266
    %v407 = vunpack.c.h.b16 %v266
    %v408 = vunpack.c.l.b16 %v267
    %v409 = vunpack.c.h.b16 %v267
    %v410 = vunpack.c.l.b16 %v268
    %v411 = vunpack.c.h.b16 %v268
    %v412 = vunpack.c.l.b16 %v269
    %v413 = vunpack.c.h.b16 %v269
    %v414 = vunpack.c.l.b16 %v270
    %v415 = vunpack.c.h.b16 %v270
    %v416 = vunpack.c.l.b16 %v271
    %v417 = vunpack.c.h.b16 %v271
    %v418 = vunpack.c.l.b16 %v272
    %v419 = vunpack.c.h.b16 %v272
    %v420 = vunpack.c.l.b16 %v273
    %v421 = vunpack.c.h.b16 %v273
    %v422 = vunpack.c.l.b16 %v274
    %v423 = vunpack.c.h.b16 %v274
    %v424 = vunpack.c.l.b16 %v275
    %v425 = vunpack.c.h.b16 %v275
    %v426 = vunpack.c.l.b16 %v276
    %v427 = vunpack.c.h.b16 %v276
    %v428 = vunpack.c.l.b16 %v277
    %v429 = vunpack.c.h.b16 %v277
    %v430 = vunpack.c.l.b16 %v278
    %v431 = vunpack.c.h.b16 %v278
    %v432 = vunpack.c.l.b16 %v279
    %v433 = vunpack.c.h.b16 %v279
    %v434 = vunpack.c.l.b16 %v280
    %v435 = vunpack.c.h.b16 %v280
    %v436 = vunpack.c.l.b16 %v281
    %v437 = vunpack.c.h.b16 %v281
    %v438 = vpack.c.b16 %v344, %v342
    %v439 = vpack.c.b16 %v345, %v343
    %v440 = vpack.c.b16 %v348, %v346
    %v441 = vpack.c.b16 %v349, %v347
    %v442 = vpack.c.b16 %v352, %v350
    %v443 = vpack.c.b16 %v353, %v351
    %v444 = vpack.c.b16 %v356, %v354
    %v445 = vpack.c.b16 %v357, %v355
    %v446 = vpack.c.b16 %v360, %v358
    %v447 = vpack.c.b16 %v361, %v359
    %v448 = vpack.c.b16 %v364, %v362
    %v449 = vpack.c.b16 %v365, %v363
    %v450 = vpack.c.b16 %v368, %v366
    %v451 = vpack.c.b16 %v369, %v367
    %v452 = vpack.c.b16 %v372, %v370
    %v453 = vpack.c.b16 %v373, %v371
    %v454 = vpack.c.b16 %v376, %v374
    %v455 = vpack.c.b16 %v377, %v375
    %v456 = vpack.c.b16 %v380, %v378
    %v457 = vpack.c.b16 %v381, %v379
    %v458 = vpack.c.b16 %v384, %v382
    %v459 = vpack.c.b16 %v385, %v383
    %v460 = vpack.c.b16 %v388, %v386
    %v461 = vpack.c.b16 %v389, %v387
    %v462 = vpack.c.b16 %v392, %v390
    %v463 = vpack.c.b16 %v393, %v391
    %v464 = vpack.c.b16 %v396, %v394
    %v465 = vpack.c.b16 %v397, %v395
    %v466 = vpack.c.b16 %v400, %v398
    %v467 = vpack.c.b16 %v401, %v399
    %v468 = vpack.c.b16 %v404, %v402
    %v469 = vpack.c.b16 %v405, %v403
    %v470 = vpack.c.b16 %v408, %v406
    %v471 = vpack.c.b16 %v409, %v407
    %v472 = vpack.c.b16 %v412, %v410
    %v473 = vpack.c.b16 %v413, %v411
    %v474 = vpack.c.b16 %v416, %v414
    %v475 = vpack.c.b16 %v417, %v415
    %v476 = vpack.c.b16 %v420, %v418
    %v477 = vpack.c.b16 %v421, %v419
    %v478 = vpack.c.b16 %v424, %v422
    %v479 = vpack.c.b16 %v425, %v423
    %v480 = vpack.c.b16 %v428, %v426
    %v481 = vpack.c.b16 %v429, %v427
    %v482 = vpack.c.b16 %v432, %v430
    %v483 = vpack.c.b16 %v433, %v431
    %v484 = vpack.c.b16 %v436, %v434
    %v485 = vpack.c.b16 %v437, %v435
    %534 = vmatprep.subr.bf16.mxu0 %v439
    %535 = vmatpush1.bf16.msra.mxu0 %v438
    %536 = vmatprep.subr.bf16.mxu0 %v441
    %537 = vmatpush1.bf16.msra.mxu0 %v440
    %538 = vmatprep.subr.bf16.mxu0 %v443
    %539 = vmatpush1.bf16.msra.mxu0 %v442
    %540 = vmatprep.subr.bf16.mxu0 %v445
    %541 = vmatpush1.bf16.msra.mxu0 %v444
    %542 = vmatprep.subr.bf16.mxu0 %v447
    %543 = vmatpush1.bf16.msra.mxu0 %v446
    %544 = vmatprep.subr.bf16.mxu0 %v449
    %545 = vmatpush1.bf16.msra.mxu0 %v448
    %546 = vmatprep.subr.bf16.mxu0 %v451
    %547 = vmatpush1.bf16.msra.mxu0 %v450
    %548 = vmatprep.subr.bf16.mxu0 %v453
    %549 = vmatpush1.bf16.msra.mxu0 %v452
    %550 = vmatprep.subr.bf16.mxu0 %v455
    %551 = vmatpush1.bf16.msra.mxu0 %v454
    %552 = vmatprep.subr.bf16.mxu0 %v457
    %553 = vmatpush1.bf16.msra.mxu0 %v456
    %554 = vmatprep.subr.bf16.mxu0 %v459
    %555 = vmatpush1.bf16.msra.mxu0 %v458
    %556 = vmatprep.subr.bf16.mxu0 %v461
    %557 = vmatpush1.bf16.msra.mxu0 %v460
    %558 = vmatprep.subr.bf16.mxu0 %v463
    %559 = vmatpush1.bf16.msra.mxu0 %v462
    %560 = vmatprep.subr.bf16.mxu0 %v465
    %561 = vmatpush1.bf16.msra.mxu0 %v464
    %562 = vmatprep.subr.bf16.mxu0 %v467
    %563 = vmatpush1.bf16.msra.mxu0 %v466
    %564 = vmatprep.subr.bf16.mxu0 %v469
    %565 = vmatpush1.bf16.msra.mxu0 %v468
    %566 = vmatprep.mubr.bf16.mxu0 %v208
    %567 = vmatmul.mubr.bf16.gmra.mrb[0].mxu0 %v207
    %v568 = vpop.f32.mrb[0].mxu0
    %v569 = vadd.f32 %v287, %v568
    %v570 = vpop.f32.mrb[0].mxu0
    %v571 = vadd.f32 %v291, %v570
    %v572 = vpop.f32.mrb[0].mxu0
    %v573 = vadd.f32 %v287, %v572
    %v574 = vpop.f32.mrb[0].mxu0
    %v575 = vadd.f32 %v291, %v574
    %576 = vmatprep.mubr.bf16.mxu0 %v210
    %577 = vmatmul.mubr.bf16.gmra.mrb[0].mxu0 %v209
    %v578 = vpop.f32.mrb[0].mxu0
    %v579 = vadd.f32 %v287, %v578
    %v580 = vpop.f32.mrb[0].mxu0
    %v581 = vadd.f32 %v291, %v580
    %v582 = vpop.f32.mrb[0].mxu0
    %v583 = vadd.f32 %v287, %v582
    %v584 = vpop.f32.mrb[0].mxu0
    %v585 = vadd.f32 %v291, %v584
    %586 = vmatprep.mubr.bf16.mxu0 %v212
    %587 = vmatmul.mubr.bf16.gmra.mrb[0].mxu0 %v211
    %v588 = vpop.f32.mrb[0].mxu0
    %v589 = vadd.f32 %v287, %v588
    %v590 = vpop.f32.mrb[0].mxu0
    %v591 = vadd.f32 %v291, %v590
    %v592 = vpop.f32.mrb[0].mxu0
    %v593 = vadd.f32 %v287, %v592
    %v594 = vpop.f32.mrb[0].mxu0
    %v595 = vadd.f32 %v291, %v594
    %596 = vmatprep.mubr.bf16.mxu0 %v214
    %597 = vmatmul.mubr.bf16.gmra.mrb[0].mxu0 %v213
    %v598 = vpop.f32.mrb[0].mxu0
    %v599 = vadd.f32 %v287, %v598
    %v600 = vpop.f32.mrb[0].mxu0
    %v601 = vadd.f32 %v291, %v600
    %v602 = vpop.f32.mrb[0].mxu0
    %v603 = vadd.f32 %v287, %v602
    %v604 = vpop.f32.mrb[0].mxu0
    %v605 = vadd.f32 %v291, %v604
    %606 = vmatprep.mubr.bf16.mxu0 %v216
    %607 = vmatmul.mubr.bf16.gmra.mrb[0].mxu0 %v215
    %v608 = vpop.f32.mrb[0].mxu0
    %v609 = vadd.f32 %v287, %v608
    %v610 = vpop.f32.mrb[0].mxu0
    %v611 = vadd.f32 %v291, %v610
    %v612 = vpop.f32.mrb[0].mxu0
    %v613 = vadd.f32 %v287, %v612
    %v614 = vpop.f32.mrb[0].mxu0
    %v615 = vadd.f32 %v291, %v614
    %616 = vmatprep.mubr.bf16.mxu0 %v218
    %617 = vmatmul.mubr.bf16.gmra.mrb[0].mxu0 %v217
    %v618 = vpop.f32.mrb[0].mxu0
    %v619 = vadd.f32 %v287, %v618
    %v620 = vpop.f32.mrb[0].mxu0
    %v621 = vadd.f32 %v291, %v620
    %v622 = vpop.f32.mrb[0].mxu0
    %v623 = vadd.f32 %v287, %v622
    %v624 = vpop.f32.mrb[0].mxu0
    %v625 = vadd.f32 %v291, %v624
    %626 = vmatprep.mubr.bf16.mxu0 %v220
    %627 = vmatmul.mubr.bf16.gmra.mrb[0].mxu0 %v219
    %v628 = vpop.f32.mrb[0].mxu0
    %v629 = vadd.f32 %v287, %v628
    %v630 = vpop.f32.mrb[0].mxu0
    %v631 = vadd.f32 %v291, %v630
    %v632 = vpop.f32.mrb[0].mxu0
    %v633 = vadd.f32 %v287, %v632
    %v634 = vpop.f32.mrb[0].mxu0
    %v635 = vadd.f32 %v291, %v634
    %636 = vmatprep.mubr.bf16.mxu0 %v222
    %637 = vmatmul.mubr.bf16.gmra.mrb[0].mxu0 %v221
    %v638 = vpop.f32.mrb[0].mxu0
    %v639 = vadd.f32 %v287, %v638
    %v640 = vpop.f32.mrb[0].mxu0
    %v641 = vadd.f32 %v291, %v640
    %v642 = vpop.f32.mrb[0].mxu0
    %v643 = vadd.f32 %v287, %v642
    %v644 = vpop.f32.mrb[0].mxu0
    %v645 = vadd.f32 %v291, %v644
    %646 = vmatprep.mubr.bf16.mxu0 %v224
    %647 = vmatmul.mubr.bf16.gmra.mrb[0].mxu0 %v223
    %v648 = vpop.f32.mrb[0].mxu0
    %v649 = vadd.f32 %v287, %v648
    %v650 = vpop.f32.mrb[0].mxu0
    %v651 = vadd.f32 %v291, %v650
    %v652 = vpop.f32.mrb[0].mxu0
    %v653 = vadd.f32 %v287, %v652
    %v654 = vpop.f32.mrb[0].mxu0
    %v655 = vadd.f32 %v291, %v654
    %656 = vmatprep.mubr.bf16.mxu0 %v226
    %657 = vmatmul.mubr.bf16.gmra.mrb[0].mxu0 %v225
    %v658 = vpop.f32.mrb[0].mxu0
    %v659 = vadd.f32 %v287, %v658
    %v660 = vpop.f32.mrb[0].mxu0
    %v661 = vadd.f32 %v291, %v660
    %v662 = vpop.f32.mrb[0].mxu0
    %v663 = vadd.f32 %v287, %v662
    %v664 = vpop.f32.mrb[0].mxu0
    %v665 = vadd.f32 %v291, %v664
    %666 = vmatprep.mubr.bf16.mxu0 %v228
    %667 = vmatmul.mubr.bf16.gmra.mrb[0].mxu0 %v227
    %v668 = vpop.f32.mrb[0].mxu0
    %v669 = vadd.f32 %v287, %v668
    %v670 = vpop.f32.mrb[0].mxu0
    %v671 = vadd.f32 %v291, %v670
    %v672 = vpop.f32.mrb[0].mxu0
    %v673 = vadd.f32 %v287, %v672
    %v674 = vpop.f32.mrb[0].mxu0
    %v675 = vadd.f32 %v291, %v674
    %676 = vmatprep.mubr.bf16.mxu0 %v230
    %677 = vmatmul.mubr.bf16.gmra.mrb[0].mxu0 %v229
    %v678 = vpop.f32.mrb[0].mxu0
    %v679 = vadd.f32 %v287, %v678
    %v680 = vpop.f32.mrb[0].mxu0
    %v681 = vadd.f32 %v291, %v680
    %v682 = vpop.f32.mrb[0].mxu0
    %v683 = vadd.f32 %v287, %v682
    %v684 = vpop.f32.mrb[0].mxu0
    %v685 = vadd.f32 %v291, %v684
    %686 = vmatprep.mubr.bf16.mxu0 %v232
    %687 = vmatmul.mubr.bf16.gmra.mrb[0].mxu0 %v231
    %v688 = vpop.f32.mrb[0].mxu0
    %v689 = vadd.f32 %v287, %v688
    %v690 = vpop.f32.mrb[0].mxu0
    %v691 = vadd.f32 %v291, %v690
    %v692 = vpop.f32.mrb[0].mxu0
    %v693 = vadd.f32 %v287, %v692
    %v694 = vpop.f32.mrb[0].mxu0
    %v695 = vadd.f32 %v291, %v694
    %696 = vdwg.mxu0
    %697 = vmatprep.subr.bf16.mxu0 %v471
    %698 = vmatpush1.bf16.msra.mxu0 %v470
    %699 = vmatprep.subr.bf16.mxu0 %v473
    %700 = vmatpush1.bf16.msra.mxu0 %v472
    %701 = vmatprep.subr.bf16.mxu0 %v475
    %702 = vmatpush1.bf16.msra.mxu0 %v474
    %703 = vmatprep.subr.bf16.mxu0 %v477
    %704 = vmatpush1.bf16.msra.mxu0 %v476
    %705 = vmatprep.subr.bf16.mxu0 %v479
    %706 = vmatpush1.bf16.msra.mxu0 %v478
    %707 = vmatprep.subr.bf16.mxu0 %v481
    %708 = vmatpush1.bf16.msra.mxu0 %v480
    %709 = vmatprep.subr.bf16.mxu0 %v483
    %710 = vmatpush1.bf16.msra.mxu0 %v482
    %711 = vmatprep.subr.bf16.mxu0 %v485
    %712 = vmatpush1.bf16.msra.mxu0 %v484
    %713 = vmatprep.subr.bf16.mxu0 0
    %714 = vmatpush1.bf16.msra.mxu0 0
    %715 = vmatprep.subr.bf16.mxu0 0
    %716 = vmatpush1.bf16.msra.mxu0 0
    %717 = vmatprep.subr.bf16.mxu0 0
    %718 = vmatpush1.bf16.msra.mxu0 0
    %719 = vmatprep.subr.bf16.mxu0 0
    %720 = vmatpush1.bf16.msra.mxu0 0
    %721 = vmatprep.subr.bf16.mxu0 0
    %722 = vmatpush1.bf16.msra.mxu0 0
    %723 = vmatprep.subr.bf16.mxu0 0
    %724 = vmatpush1.bf16.msra.mxu0 0
    %725 = vmatprep.subr.bf16.mxu0 0
    %726 = vmatpush1.bf16.msra.mxu0 0
    %727 = vmatprep.subr.bf16.mxu0 0
    %728 = vmatpush1.bf16.msra.mxu0 0
    %729 = vmatprep.mubr.bf16.mxu0 0
    %730 = vmatmul.mubr.bf16.gmra.mrb[0].mxu0 %v209
    %v731 = vpop.f32.mrb[0].mxu0
    %v732 = vadd.f32 %v569, %v731
    %v733 = vpop.f32.mrb[0].mxu0
    %v734 = vadd.f32 %v571, %v733
    %v735 = vpop.f32.mrb[0].mxu0
    %v736 = vadd.f32 %v573, %v735
    %v737 = vpop.f32.mrb[0].mxu0
    %v738 = vadd.f32 %v575, %v737
    %739 = vmatprep.mubr.bf16.mxu0 0
    %740 = vmatmul.mubr.bf16.gmra.mrb[0].mxu0 %v211
    %v741 = vpop.f32.mrb[0].mxu0
    %v742 = vadd.f32 %v579, %v741
    %v743 = vpop.f32.mrb[0].mxu0
    %v744 = vadd.f32 %v581, %v743
    %v745 = vpop.f32.mrb[0].mxu0
    %v746 = vadd.f32 %v583, %v745
    %v747 = vpop.f32.mrb[0].mxu0
    %v748 = vadd.f32 %v585, %v747
    %749 = vmatprep.mubr.bf16.mxu0 0
    %750 = vmatmul.mubr.bf16.gmra.mrb[0].mxu0 %v213
    %v751 = vpop.f32.mrb[0].mxu0
    %v752 = vadd.f32 %v589, %v751
    %v753 = vpop.f32.mrb[0].mxu0
    %v754 = vadd.f32 %v591, %v753
    %v755 = vpop.f32.mrb[0].mxu0
    %v756 = vadd.f32 %v593, %v755
    %v757 = vpop.f32.mrb[0].mxu0
    %v758 = vadd.f32 %v595, %v757
    %759 = vmatprep.mubr.bf16.mxu0 0
    %760 = vmatmul.mubr.bf16.gmra.mrb[0].mxu0 %v215
    %v761 = vpop.f32.mrb[0].mxu0
    %v762 = vadd.f32 %v599, %v761
    %v763 = vpop.f32.mrb[0].mxu0
    %v764 = vadd.f32 %v601, %v763
    %v765 = vpop.f32.mrb[0].mxu0
    %v766 = vadd.f32 %v603, %v765
    %v767 = vpop.f32.mrb[0].mxu0
    %v768 = vadd.f32 %v605, %v767
    %769 = vmatprep.mubr.bf16.mxu0 0
    %770 = vmatmul.mubr.bf16.gmra.mrb[0].mxu0 %v217
    %v771 = vpop.f32.mrb[0].mxu0
    %v772 = vadd.f32 %v609, %v771
    %v773 = vpop.f32.mrb[0].mxu0
    %v774 = vadd.f32 %v611, %v773
    %v775 = vpop.f32.mrb[0].mxu0
    %v776 = vadd.f32 %v613, %v775
    %v777 = vpop.f32.mrb[0].mxu0
    %v778 = vadd.f32 %v615, %v777
    %779 = vmatprep.mubr.bf16.mxu0 0
    %780 = vmatmul.mubr.bf16.gmra.mrb[0].mxu0 %v219
    %v781 = vpop.f32.mrb[0].mxu0
    %v782 = vadd.f32 %v619, %v781
    %v783 = vpop.f32.mrb[0].mxu0
    %v784 = vadd.f32 %v621, %v783
    %v785 = vpop.f32.mrb[0].mxu0
    %v786 = vadd.f32 %v623, %v785
    %v787 = vpop.f32.mrb[0].mxu0
    %v788 = vadd.f32 %v625, %v787
    %789 = vmatprep.mubr.bf16.mxu0 0
    %790 = vmatmul.mubr.bf16.gmra.mrb[0].mxu0 %v221
    %v791 = vpop.f32.mrb[0].mxu0
    %v792 = vadd.f32 %v629, %v791
    %v793 = vpop.f32.mrb[0].mxu0
    %v794 = vadd.f32 %v631, %v793
    %v795 = vpop.f32.mrb[0].mxu0
    %v796 = vadd.f32 %v633, %v795
    %v797 = vpop.f32.mrb[0].mxu0
    %v798 = vadd.f32 %v635, %v797
    %799 = vmatprep.mubr.bf16.mxu0 0
    %800 = vmatmul.mubr.bf16.gmra.mrb[0].mxu0 %v223
    %v801 = vpop.f32.mrb[0].mxu0
    %v802 = vadd.f32 %v639, %v801
    %v803 = vpop.f32.mrb[0].mxu0
    %v804 = vadd.f32 %v641, %v803
    %v805 = vpop.f32.mrb[0].mxu0
    %v806 = vadd.f32 %v643, %v805
    %v807 = vpop.f32.mrb[0].mxu0
    %v808 = vadd.f32 %v645, %v807
    %809 = vmatprep.mubr.bf16.mxu0 0
    %810 = vmatmul.mubr.bf16.gmra.mrb[0].mxu0 %v225
    %v811 = vpop.f32.mrb[0].mxu0
    %v812 = vadd.f32 %v649, %v811
    %v813 = vpop.f32.mrb[0].mxu0
    %v814 = vadd.f32 %v651, %v813
    %v815 = vpop.f32.mrb[0].mxu0
    %v816 = vadd.f32 %v653, %v815
    %v817 = vpop.f32.mrb[0].mxu0
    %v818 = vadd.f32 %v655, %v817
    %819 = vmatprep.mubr.bf16.mxu0 0
    %820 = vmatmul.mubr.bf16.gmra.mrb[0].mxu0 %v227
    %v821 = vpop.f32.mrb[0].mxu0
    %v822 = vadd.f32 %v659, %v821
    %v823 = vpop.f32.mrb[0].mxu0
    %v824 = vadd.f32 %v661, %v823
    %v825 = vpop.f32.mrb[0].mxu0
    %v826 = vadd.f32 %v663, %v825
    %v827 = vpop.f32.mrb[0].mxu0
    %v828 = vadd.f32 %v665, %v827
    %829 = vmatprep.mubr.bf16.mxu0 0
    %830 = vmatmul.mubr.bf16.gmra.mrb[0].mxu0 %v229
    %v831 = vpop.f32.mrb[0].mxu0
    %v832 = vadd.f32 %v669, %v831
    %v833 = vpop.f32.mrb[0].mxu0
    %v834 = vadd.f32 %v671, %v833
    %v835 = vpop.f32.mrb[0].mxu0
    %v836 = vadd.f32 %v673, %v835
    %v837 = vpop.f32.mrb[0].mxu0
    %v838 = vadd.f32 %v675, %v837
    %839 = vmatprep.mubr.bf16.mxu0 0
    %840 = vmatmul.mubr.bf16.gmra.mrb[0].mxu0 %v231
    %v841 = vpop.f32.mrb[0].mxu0
    %v842 = vadd.f32 %v679, %v841
    %v843 = vpop.f32.mrb[0].mxu0
    %v844 = vadd.f32 %v681, %v843
    %v845 = vpop.f32.mrb[0].mxu0
    %v846 = vadd.f32 %v683, %v845
    %v847 = vpop.f32.mrb[0].mxu0
    %v848 = vadd.f32 %v685, %v847
    %849 = vmatprep.mubr.bf16.mxu0 0
    %850 = vmatmul.mubr.bf16.gmra.mrb[0].mxu0 %v233
    %v851 = vpop.f32.mrb[0].mxu0
    %v852 = vadd.f32 %v689, %v851
    %v853 = vpop.f32.mrb[0].mxu0
    %v854 = vadd.f32 %v691, %v853
    %v855 = vpop.f32.mrb[0].mxu0
    %v856 = vadd.f32 %v693, %v855
    %v857 = vpop.f32.mrb[0].mxu0
    %v858 = vadd.f32 %v695, %v857
    %859 = vdwg.mxu0
    %v860 = vmax.f32 %v732, 0.0
    %v861 = vmax.f32 %v734, 0.0
    %v862 = vmax.f32 %v736, 0.0
    %v863 = vmax.f32 %v738, 0.0
    %v864 = vmax.f32 %v742, 0.0
    %v865 = vmax.f32 %v744, 0.0
    %v866 = vmax.f32 %v746, 0.0
    %v867 = vmax.f32 %v748, 0.0
    %v868 = vmax.f32 %v752, 0.0
    %v869 = vmax.f32 %v754, 0.0
    %v870 = vmax.f32 %v756, 0.0
    %v871 = vmax.f32 %v758, 0.0
    %v872 = vmax.f32 %v762, 0.0
    %v873 = vmax.f32 %v764, 0.0
    %v874 = vmax.f32 %v766, 0.0
    %v875 = vmax.f32 %v768, 0.0
    %v876 = vmax.f32 %v772, 0.0
    %v877 = vmax.f32 %v774, 0.0
    %v878 = vmax.f32 %v776, 0.0
    %v879 = vmax.f32 %v778, 0.0
    %v880 = vmax.f32 %v782, 0.0
    %v881 = vmax.f32 %v784, 0.0
    %v882 = vmax.f32 %v786, 0.0
    %v883 = vmax.f32 %v788, 0.0
    %v884 = vmax.f32 %v792, 0.0
    %v885 = vmax.f32 %v794, 0.0
    %v886 = vmax.f32 %v796, 0.0
    %v887 = vmax.f32 %v798, 0.0
    %v888 = vmax.f32 %v802, 0.0
    %v889 = vmax.f32 %v804, 0.0
    %v890 = vmax.f32 %v806, 0.0
    %v891 = vmax.f32 %v808, 0.0
    %v892 = vmax.f32 %v812, 0.0
    %v893 = vmax.f32 %v814, 0.0
    %v894 = vmax.f32 %v816, 0.0
    %v895 = vmax.f32 %v818, 0.0
    %v896 = vmax.f32 %v822, 0.0
    %v897 = vmax.f32 %v824, 0.0
    %v898 = vmax.f32 %v826, 0.0
    %v899 = vmax.f32 %v828, 0.0
    %v900 = vmax.f32 %v832, 0.0
    %v901 = vmax.f32 %v834, 0.0
    %v902 = vmax.f32 %v836, 0.0
    %v903 = vmax.f32 %v838, 0.0
    %v904 = vmax.f32 %v842, 0.0
    %v905 = vmax.f32 %v844, 0.0
    %v906 = vmax.f32 %v846, 0.0
    %v907 = vmax.f32 %v848, 0.0
    %v908 = vmax.f32 %v852, 0.0
    %v909 = vmax.f32 %v854, 0.0
    %v910 = vmax.f32 %v856, 0.0
    %v911 = vmax.f32 %v858, 0.0
    %v912 = vmax.f32 %v860, %v862
    %v913 = vmax.f32 %v861, %v863
    %v914 = vmax.f32 %v864, %v866
    %v915 = vmax.f32 %v865, %v867
    %v916 = vmax.f32 %v868, %v870
    %v917 = vmax.f32 %v869, %v871
    %v918 = vmax.f32 %v872, %v874
    %v919 = vmax.f32 %v873, %v875
    %v920 = vmax.f32 %v876, %v878
    %v921 = vmax.f32 %v877, %v879
    %v922 = vmax.f32 %v880, %v882
    %v923 = vmax.f32 %v881, %v883
    %v924 = vmax.f32 %v884, %v886
    %v925 = vmax.f32 %v885, %v887
    %v926 = vmax.f32 %v888, %v890
    %v927 = vmax.f32 %v889, %v891
    %v928 = vmax.f32 %v892, %v894
    %v929 = vmax.f32 %v893, %v895
    %v930 = vmax.f32 %v896, %v898
    %v931 = vmax.f32 %v897, %v899
    %v932 = vmax.f32 %v900, %v902
    %v933 = vmax.f32 %v901, %v903
    %v934 = vmax.f32 %v904, %v906
    %v935 = vmax.f32 %v905, %v907
    %v936 = vmax.f32 %v908, %v910
    %v937 = vmax.f32 %v909, %v911
    %938 = vrot.lane.b32.xlu0 %v912, 122
    %v939 = vpop.permute.xlu0 %938
    %940 = vrot.lane.b32.xlu0 %v914, 122
    %v941 = vpop.permute.xlu0 %940
    %942 = vrot.lane.b32.xlu0 %v916, 122
    %v943 = vpop.permute.xlu0 %942
    %944 = vrot.lane.b32.xlu0 %v918, 122
    %v945 = vpop.permute.xlu0 %944
    %946 = vrot.lane.b32.xlu0 %v920, 122
    %v947 = vpop.permute.xlu0 %946
    %948 = vrot.lane.b32.xlu0 %v922, 122
    %v949 = vpop.permute.xlu0 %948
    %950 = vrot.lane.b32.xlu0 %v924, 122
    %v951 = vpop.permute.xlu0 %950
    %952 = vrot.lane.b32.xlu0 %v926, 122
    %v953 = vpop.permute.xlu0 %952
    %954 = vrot.lane.b32.xlu0 %v928, 122
    %v955 = vpop.permute.xlu0 %954
    %956 = vrot.lane.b32.xlu0 %v930, 122
    %v957 = vpop.permute.xlu0 %956
    %958 = vrot.lane.b32.xlu0 %v932, 122
    %v959 = vpop.permute.xlu0 %958
    %960 = vrot.lane.b32.xlu0 %v934, 122
    %v961 = vpop.permute.xlu0 %960
    %962 = vrot.lane.b32.xlu0 %v936, 122
    %v963 = vpop.permute.xlu0 %962
    %964 = vrot.lane.b32.xlu0 %v913, 122
    %v965 = vpop.permute.xlu0 %964
    %966 = vrot.lane.b32.xlu0 %v915, 122
    %v967 = vpop.permute.xlu0 %966
    %968 = vrot.lane.b32.xlu0 %v917, 122
    %v969 = vpop.permute.xlu0 %968
    %970 = vrot.lane.b32.xlu0 %v919, 122
    %v971 = vpop.permute.xlu0 %970
    %972 = vrot.lane.b32.xlu0 %v921, 122
    %v973 = vpop.permute.xlu0 %972
    %974 = vrot.lane.b32.xlu0 %v923, 122
    %v975 = vpop.permute.xlu0 %974
    %976 = vrot.lane.b32.xlu0 %v925, 122
    %v977 = vpop.permute.xlu0 %976
    %978 = vrot.lane.b32.xlu0 %v927, 122
    %v979 = vpop.permute.xlu0 %978
    %980 = vrot.lane.b32.xlu0 %v929, 122
    %v981 = vpop.permute.xlu0 %980
    %982 = vrot.lane.b32.xlu0 %v931, 122
    %v983 = vpop.permute.xlu0 %982
    %984 = vrot.lane.b32.xlu0 %v933, 122
    %v985 = vpop.permute.xlu0 %984
    %986 = vrot.lane.b32.xlu0 %v935, 122
    %v987 = vpop.permute.xlu0 %986
    %988 = vrot.lane.b32.xlu0 %v937, 122
    %v989 = vpop.permute.xlu0 %988
    %v990 = vlaneseq
    %v991 = vand.u32 %v990, 127
    %vm992 = vcmp.lt.s32.totalorder %v991, 122
    %v993 = vsel %vm992, %v939, %v965
    %v994 = vsel %vm992, %v941, %v967
    %v995 = vsel %vm992, %v943, %v969
    %v996 = vsel %vm992, %v945, %v971
    %v997 = vsel %vm992, %v947, %v973
    %v998 = vsel %vm992, %v949, %v975
    %v999 = vsel %vm992, %v951, %v977
    %v1000 = vsel %vm992, %v953, %v979
    %v1001 = vsel %vm992, %v955, %v981
    %v1002 = vsel %vm992, %v957, %v983
    %v1003 = vsel %vm992, %v959, %v985
    %v1004 = vsel %vm992, %v961, %v987
    %v1005 = vsel %vm992, %v963, %v989
    %v1006 = vsel %vm992, %v965, %v939
    %v1007 = vsel %vm992, %v967, %v941
    %v1008 = vsel %vm992, %v969, %v943
    %v1009 = vsel %vm992, %v971, %v945
    %v1010 = vsel %vm992, %v973, %v947
    %v1011 = vsel %vm992, %v975, %v949
    %v1012 = vsel %vm992, %v977, %v951
    %v1013 = vsel %vm992, %v979, %v953
    %v1014 = vsel %vm992, %v981, %v955
    %v1015 = vsel %vm992, %v983, %v957
    %v1016 = vsel %vm992, %v985, %v959
    %v1017 = vsel %vm992, %v987, %v961
    %v1018 = vsel %vm992, %v989, %v963
    %v1019 = vmax.f32 %v912, %v993
    %v1020 = vmax.f32 %v913, %v1006
    %v1021 = vmax.f32 %v914, %v994
    %v1022 = vmax.f32 %v915, %v1007
    %v1023 = vmax.f32 %v916, %v995
    %v1024 = vmax.f32 %v917, %v1008
    %v1025 = vmax.f32 %v918, %v996
    %v1026 = vmax.f32 %v919, %v1009
    %v1027 = vmax.f32 %v920, %v997
    %v1028 = vmax.f32 %v921, %v1010
    %v1029 = vmax.f32 %v922, %v998
    %v1030 = vmax.f32 %v923, %v1011
    %v1031 = vmax.f32 %v924, %v999
    %v1032 = vmax.f32 %v925, %v1012
    %v1033 = vmax.f32 %v926, %v1000
    %v1034 = vmax.f32 %v927, %v1013
    %v1035 = vmax.f32 %v928, %v1001
    %v1036 = vmax.f32 %v929, %v1014
    %v1037 = vmax.f32 %v930, %v1002
    %v1038 = vmax.f32 %v931, %v1015
    %v1039 = vmax.f32 %v932, %v1003
    %v1040 = vmax.f32 %v933, %v1016
    %v1041 = vmax.f32 %v934, %v1004
    %v1042 = vmax.f32 %v935, %v1017
    %v1043 = vmax.f32 %v936, %v1005
    %v1044 = vmax.f32 %v937, %v1018
    %v1045 = vpack.c.bf16 %v1021, %v1019
    %v1046 = vpack.c.bf16 %v1022, %v1020
    %v1047 = vpack.c.bf16 %v1023, %v1021
    %v1048 = vpack.c.bf16 %v1024, %v1022
    %v1049 = vpack.c.bf16 %v1025, %v1023
    %v1050 = vpack.c.bf16 %v1026, %v1024
    %v1051 = vpack.c.bf16 %v1027, %v1025
    %v1052 = vpack.c.bf16 %v1028, %v1026
    %v1053 = vpack.c.bf16 %v1029, %v1027
    %v1054 = vpack.c.bf16 %v1030, %v1028
    %v1055 = vpack.c.bf16 %v1031, %v1029
    %v1056 = vpack.c.bf16 %v1032, %v1030
    %v1057 = vpack.c.bf16 %v1033, %v1031
    %v1058 = vpack.c.bf16 %v1034, %v1032
    %v1059 = vpack.c.bf16 %v1035, %v1033
    %v1060 = vpack.c.bf16 %v1036, %v1034
    %v1061 = vpack.c.bf16 %v1037, %v1035
    %v1062 = vpack.c.bf16 %v1038, %v1036
    %v1063 = vpack.c.bf16 %v1039, %v1037
    %v1064 = vpack.c.bf16 %v1040, %v1038
    %v1065 = vpack.c.bf16 %v1041, %v1039
    %v1066 = vpack.c.bf16 %v1042, %v1040
    %v1067 = vpack.c.bf16 %v1039, %v1039
    %v1068 = vpack.c.bf16 %v1040, %v1040
    %v1069 = vpack.c.bf16 %v1041, %v1041
    %v1070 = vpack.c.bf16 %v1042, %v1042
    %v1071 = vpack.c.bf16 %v1043, %v1043
    %v1072 = vpack.c.bf16 %v1044, %v1044
    %v1073 = vld [vmem:[#allocation8] sm:$0xff]
    %v1074 = vld [vmem:[#allocation8 + $0x8] sm:$0xff]
    %v1075 = vld [vmem:[#allocation8 + $0x10] sm:$0xff]
    %v1076 = vld [vmem:[#allocation8 + $0x18] sm:$0xff]
    %v1077 = vld [vmem:[#allocation8 + $0x20] sm:$0xff]
    %v1078 = vld [vmem:[#allocation8 + $0x28] sm:$0xff]
    %v1079 = vld [vmem:[#allocation8 + $0x30] sm:$0xff]
    %v1080 = vld [vmem:[#allocation8 + $0x38] sm:$0xff]
    %v1081 = vld [vmem:[#allocation8 + $0x40] sm:$0xff]
    %v1082 = vld [vmem:[#allocation8 + $0x48] sm:$0xff]
    %v1083 = vld [vmem:[#allocation8 + $0x50] sm:$0xff]
    %v1084 = vld [vmem:[#allocation8 + $0x58] sm:$0xff]
    %v1085 = vld [vmem:[#allocation8 + $0x60] sm:$0xff]
    %v1086 = vld [vmem:[#allocation8 + $0x68] sm:$0xff]
    %v1087 = vld [vmem:[#allocation8 + $0x70] sm:$0xff]
    %v1088 = vld [vmem:[#allocation8 + $0x78] sm:$0xff]
    %v1089 = vld [vmem:[#allocation8 + $0x80] sm:$0xff]
    %v1090 = vld [vmem:[#allocation8 + $0x88] sm:$0xff]
    %v1091 = vld [vmem:[#allocation8 + $0x90] sm:$0xff]
    %v1092 = vld [vmem:[#allocation8 + $0x98] sm:$0xff]
    %v1093 = vld [vmem:[#allocation8 + $0xa0] sm:$0xff]
    %v1094 = vld [vmem:[#allocation8 + $0xa8] sm:$0xff]
    %v1095 = vld [vmem:[#allocation8 + $0xb0] sm:$0xff]
    %v1096 = vld [vmem:[#allocation8 + $0xb8] sm:$0xff]
    %v1097 = vld [vmem:[#allocation8 + $0xc0] sm:$0xff]
    %v1098 = vld [vmem:[#allocation8 + $0xc8] sm:$0xff]
    %v1099 = vld [vmem:[#allocation8 + $0xd0] sm:$0xff]
    %v1100 = vld [vmem:[#allocation8 + $0xd8] sm:$0xff]
    %v1101 = vld [vmem:[#allocation8 + $0xe0] sm:$0xff]
    %v1102 = vld [vmem:[#allocation8 + $0xe8] sm:$0xff]
    %v1103 = vld [vmem:[#allocation8 + $0xf0] sm:$0xff]
    %v1104 = vld [vmem:[#allocation8 + $0xf8] sm:$0xff]
    %v1105 = vld [vmem:[#allocation8 + $0x100] sm:$0xff]
    %v1106 = vld [vmem:[#allocation8 + $0x108] sm:$0xff]
    %v1107 = vld [vmem:[#allocation8 + $0x110] sm:$0xff]
    %v1108 = vld [vmem:[#allocation8 + $0x118] sm:$0xff]
    %v1109 = vld [vmem:[#allocation8 + $0x120] sm:$0xff]
    %v1110 = vld [vmem:[#allocation8 + $0x128] sm:$0xff]
    %v1111 = vld [vmem:[#allocation8 + $0x130] sm:$0xff]
    %v1112 = vld [vmem:[#allocation8 + $0x138] sm:$0xff]
    %v1113 = vld [vmem:[#allocation8 + $0x140] sm:$0xff]
    %v1114 = vld [vmem:[#allocation8 + $0x148] sm:$0xff]
    %v1115 = vld [vmem:[#allocation8 + $0x150] sm:$0xff]
    %v1116 = vld [vmem:[#allocation8 + $0x158] sm:$0xff]
    %v1117 = vld [vmem:[#allocation8 + $0x160] sm:$0xff]
    %v1118 = vld [vmem:[#allocation8 + $0x168] sm:$0xff]
    %v1119 = vld [vmem:[#allocation8 + $0x170] sm:$0xff]
    %v1120 = vld [vmem:[#allocation8 + $0x178] sm:$0xff]
    %v1121 = vld [vmem:[#allocation8 + $0x180] sm:$0xff]
    %v1122 = vld [vmem:[#allocation8 + $0x188] sm:$0xff]
    %v1123 = vld [vmem:[#allocation8 + $0x190] sm:$0xff]
    %v1124 = vld [vmem:[#allocation8 + $0x198] sm:$0xff]
    %v1125 = vld [vmem:[#allocation8 + $0x1a0] sm:$0xff]
    %v1126 = vld [vmem:[#allocation8 + $0x1a8] sm:$0xff]
    %v1127 = vld [vmem:[#allocation8 + $0x1b0] sm:$0xff]
    %v1128 = vld [vmem:[#allocation8 + $0x1b8] sm:$0xff]
    %v1129 = vld [vmem:[#allocation8 + $0x1c0] sm:$0xff]
    %v1130 = vld [vmem:[#allocation8 + $0x1c8] sm:$0xff]
    %v1131 = vld [vmem:[#allocation8 + $0x1d0] sm:$0xff]
    %v1132 = vld [vmem:[#allocation8 + $0x1d8] sm:$0xff]
    %v1133 = vld [vmem:[#allocation8 + $0x1e0] sm:$0xff]
    %v1134 = vld [vmem:[#allocation8 + $0x1e8] sm:$0xff]
    %v1135 = vld [vmem:[#allocation8 + $0x1f0] sm:$0xff]
    %v1136 = vld [vmem:[#allocation8 + $0x1f8] sm:$0xff]
    %v1137 = vld [vmem:[#allocation8 + $0x200] sm:$0xff]
    %v1138 = vld [vmem:[#allocation8 + $0x208] sm:$0xff]
    %v1139 = vld [vmem:[#allocation8 + $0x210] sm:$0xff]
    %v1140 = vld [vmem:[#allocation8 + $0x218] sm:$0xff]
    %v1141 = vld [vmem:[#allocation8 + $0x220] sm:$0xff]
    %v1142 = vld [vmem:[#allocation8 + $0x228] sm:$0xff]
    %v1143 = vld [vmem:[#allocation8 + $0x230] sm:$0xff]
    %v1144 = vld [vmem:[#allocation8 + $0x238] sm:$0xff]
    %v1145 = vld [vmem:[#allocation8 + $0x240] sm:$0xff]
    %v1146 = vld [vmem:[#allocation8 + $0x248] sm:$0xff]
    %v1147 = vld [vmem:[#allocation8 + $0x250] sm:$0xff]
    %v1148 = vld [vmem:[#allocation8 + $0x258] sm:$0xff]
    %v1149 = vld [vmem:[#allocation8 + $0x260] sm:$0xff]
    %v1150 = vld [vmem:[#allocation8 + $0x268] sm:$0xff]
    %v1151 = vld [vmem:[#allocation8 + $0x270] sm:$0xff]
    %v1152 = vld [vmem:[#allocation8 + $0x278] sm:$0xff]
    %v1153 = vld [vmem:[#allocation8 + $0x280] sm:$0xff]
    %v1154 = vld [vmem:[#allocation8 + $0x288] sm:$0xff]
    %v1155 = vld [vmem:[#allocation8 + $0x290] sm:$0xff]
    %v1156 = vld [vmem:[#allocation8 + $0x298] sm:$0xff]
    %v1157 = vld [vmem:[#allocation8 + $0x2a0] sm:$0xff]
    %v1158 = vld [vmem:[#allocation8 + $0x2a8] sm:$0xff]
    %v1159 = vld [vmem:[#allocation8 + $0x2b0] sm:$0xff]
    %v1160 = vld [vmem:[#allocation8 + $0x2b8] sm:$0xff]
    %v1161 = vld [vmem:[#allocation8 + $0x2c0] sm:$0xff]
    %v1162 = vld [vmem:[#allocation8 + $0x2c8] sm:$0xff]
    %v1163 = vld [vmem:[#allocation8 + $0x2d0] sm:$0xff]
    %v1164 = vld [vmem:[#allocation8 + $0x2d8] sm:$0xff]
    %v1165 = vld [vmem:[#allocation8 + $0x2e0] sm:$0xff]
    %v1166 = vld [vmem:[#allocation8 + $0x2e8] sm:$0xff]
    %v1167 = vld [vmem:[#allocation8 + $0x2f0] sm:$0xff]
    %v1168 = vld [vmem:[#allocation8 + $0x2f8] sm:$0xff]
    %v1169 = vld [vmem:[#allocation10] sm:$0x3]
    %v1171 = vlaneseq
    %v1172 = vshrl.u32 %v1171, 7
    %v1173 = vsub.s32 0, %v1172
    %v1174 = vrot.slane %v1169, %v1173
    %v1175 = vlaneseq
    %v1176 = vshrl.u32 %v1175, 7
    %v1177 = vsub.s32 1, %v1176
    %v1178 = vrot.slane %v1169, %v1177
    %v1277 = vunpack.c.l.b16 %v1073
    %v1278 = vunpack.c.h.b16 %v1073
    %v1279 = vunpack.c.l.b16 %v1074
    %v1280 = vunpack.c.h.b16 %v1074
    %v1281 = vunpack.c.l.b16 %v1075
    %v1282 = vunpack.c.h.b16 %v1075
    %v1283 = vunpack.c.l.b16 %v1076
    %v1284 = vunpack.c.h.b16 %v1076
    %v1285 = vunpack.c.l.b16 %v1077
    %v1286 = vunpack.c.h.b16 %v1077
    %v1287 = vunpack.c.l.b16 %v1078
    %v1288 = vunpack.c.h.b16 %v1078
    %v1289 = vunpack.c.l.b16 %v1079
    %v1290 = vunpack.c.h.b16 %v1079
    %v1291 = vunpack.c.l.b16 %v1080
    %v1292 = vunpack.c.h.b16 %v1080
    %v1293 = vunpack.c.l.b16 %v1081
    %v1294 = vunpack.c.h.b16 %v1081
    %v1295 = vunpack.c.l.b16 %v1082
    %v1296 = vunpack.c.h.b16 %v1082
    %v1297 = vunpack.c.l.b16 %v1083
    %v1298 = vunpack.c.h.b16 %v1083
    %v1299 = vunpack.c.l.b16 %v1084
    %v1300 = vunpack.c.h.b16 %v1084
    %v1301 = vunpack.c.l.b16 %v1085
    %v1302 = vunpack.c.h.b16 %v1085
    %v1303 = vunpack.c.l.b16 %v1086
    %v1304 = vunpack.c.h.b16 %v1086
    %v1305 = vunpack.c.l.b16 %v1087
    %v1306 = vunpack.c.h.b16 %v1087
    %v1307 = vunpack.c.l.b16 %v1088
    %v1308 = vunpack.c.h.b16 %v1088
    %v1309 = vunpack.c.l.b16 %v1089
    %v1310 = vunpack.c.h.b16 %v1089
    %v1311 = vunpack.c.l.b16 %v1090
    %v1312 = vunpack.c.h.b16 %v1090
    %v1313 = vunpack.c.l.b16 %v1091
    %v1314 = vunpack.c.h.b16 %v1091
    %v1315 = vunpack.c.l.b16 %v1092
    %v1316 = vunpack.c.h.b16 %v1092
    %v1317 = vunpack.c.l.b16 %v1093
    %v1318 = vunpack.c.h.b16 %v1093
    %v1319 = vunpack.c.l.b16 %v1094
    %v1320 = vunpack.c.h.b16 %v1094
    %v1321 = vunpack.c.l.b16 %v1095
    %v1322 = vunpack.c.h.b16 %v1095
    %v1323 = vunpack.c.l.b16 %v1096
    %v1324 = vunpack.c.h.b16 %v1096
    %v1325 = vunpack.c.l.b16 %v1097
    %v1326 = vunpack.c.h.b16 %v1097
    %v1327 = vunpack.c.l.b16 %v1098
    %v1328 = vunpack.c.h.b16 %v1098
    %v1329 = vunpack.c.l.b16 %v1099
    %v1330 = vunpack.c.h.b16 %v1099
    %v1331 = vunpack.c.l.b16 %v1100
    %v1332 = vunpack.c.h.b16 %v1100
    %v1333 = vunpack.c.l.b16 %v1101
    %v1334 = vunpack.c.h.b16 %v1101
    %v1335 = vunpack.c.l.b16 %v1102
    %v1336 = vunpack.c.h.b16 %v1102
    %v1337 = vunpack.c.l.b16 %v1103
    %v1338 = vunpack.c.h.b16 %v1103
    %v1339 = vunpack.c.l.b16 %v1104
    %v1340 = vunpack.c.h.b16 %v1104
    %v1341 = vunpack.c.l.b16 %v1105
    %v1342 = vunpack.c.h.b16 %v1105
    %v1343 = vunpack.c.l.b16 %v1106
    %v1344 = vunpack.c.h.b16 %v1106
    %v1345 = vunpack.c.l.b16 %v1107
    %v1346 = vunpack.c.h.b16 %v1107
    %v1347 = vunpack.c.l.b16 %v1108
    %v1348 = vunpack.c.h.b16 %v1108
    %v1349 = vunpack.c.l.b16 %v1109
    %v1350 = vunpack.c.h.b16 %v1109
    %v1351 = vunpack.c.l.b16 %v1110
    %v1352 = vunpack.c.h.b16 %v1110
    %v1353 = vunpack.c.l.b16 %v1111
    %v1354 = vunpack.c.h.b16 %v1111
    %v1355 = vunpack.c.l.b16 %v1112
    %v1356 = vunpack.c.h.b16 %v1112
    %v1357 = vunpack.c.l.b16 %v1113
    %v1358 = vunpack.c.h.b16 %v1113
    %v1359 = vunpack.c.l.b16 %v1114
    %v1360 = vunpack.c.h.b16 %v1114
    %v1361 = vunpack.c.l.b16 %v1115
    %v1362 = vunpack.c.h.b16 %v1115
    %v1363 = vunpack.c.l.b16 %v1116
    %v1364 = vunpack.c.h.b16 %v1116
    %v1365 = vunpack.c.l.b16 %v1117
    %v1366 = vunpack.c.h.b16 %v1117
    %v1367 = vunpack.c.l.b16 %v1118
    %v1368 = vunpack.c.h.b16 %v1118
    %v1369 = vunpack.c.l.b16 %v1119
    %v1370 = vunpack.c.h.b16 %v1119
    %v1371 = vunpack.c.l.b16 %v1120
    %v1372 = vunpack.c.h.b16 %v1120
    %v1373 = vunpack.c.l.b16 %v1121
    %v1374 = vunpack.c.h.b16 %v1121
    %v1375 = vunpack.c.l.b16 %v1122
    %v1376 = vunpack.c.h.b16 %v1122
    %v1377 = vunpack.c.l.b16 %v1123
    %v1378 = vunpack.c.h.b16 %v1123
    %v1379 = vunpack.c.l.b16 %v1124
    %v1380 = vunpack.c.h.b16 %v1124
    %v1381 = vunpack.c.l.b16 %v1125
    %v1382 = vunpack.c.h.b16 %v1125
    %v1383 = vunpack.c.l.b16 %v1126
    %v1384 = vunpack.c.h.b16 %v1126
    %v1385 = vunpack.c.l.b16 %v1127
    %v1386 = vunpack.c.h.b16 %v1127
    %v1387 = vunpack.c.l.b16 %v1128
    %v1388 = vunpack.c.h.b16 %v1128
    %v1389 = vunpack.c.l.b16 %v1129
    %v1390 = vunpack.c.h.b16 %v1129
    %v1391 = vunpack.c.l.b16 %v1130
    %v1392 = vunpack.c.h.b16 %v1130
    %v1393 = vunpack.c.l.b16 %v1131
    %v1394 = vunpack.c.h.b16 %v1131
    %v1395 = vunpack.c.l.b16 %v1132
    %v1396 = vunpack.c.h.b16 %v1132
    %v1397 = vunpack.c.l.b16 %v1133
    %v1398 = vunpack.c.h.b16 %v1133
    %v1399 = vunpack.c.l.b16 %v1134
    %v1400 = vunpack.c.h.b16 %v1134
    %v1401 = vunpack.c.l.b16 %v1135
    %v1402 = vunpack.c.h.b16 %v1135
    %v1403 = vunpack.c.l.b16 %v1136
    %v1404 = vunpack.c.h.b16 %v1136
    %v1405 = vunpack.c.l.b16 %v1137
    %v1406 = vunpack.c.h.b16 %v1137
    %v1407 = vunpack.c.l.b16 %v1138
    %v1408 = vunpack.c.h.b16 %v1138
    %v1409 = vunpack.c.l.b16 %v1139
    %v1410 = vunpack.c.h.b16 %v1139
    %v1411 = vunpack.c.l.b16 %v1140
    %v1412 = vunpack.c.h.b16 %v1140
    %v1413 = vunpack.c.l.b16 %v1141
    %v1414 = vunpack.c.h.b16 %v1141
    %v1415 = vunpack.c.l.b16 %v1142
    %v1416 = vunpack.c.h.b16 %v1142
    %v1417 = vunpack.c.l.b16 %v1143
    %v1418 = vunpack.c.h.b16 %v1143
    %v1419 = vunpack.c.l.b16 %v1144
    %v1420 = vunpack.c.h.b16 %v1144
    %v1421 = vunpack.c.l.b16 %v1145
    %v1422 = vunpack.c.h.b16 %v1145
    %v1423 = vunpack.c.l.b16 %v1146
    %v1424 = vunpack.c.h.b16 %v1146
    %v1425 = vunpack.c.l.b16 %v1147
    %v1426 = vunpack.c.h.b16 %v1147
    %v1427 = vunpack.c.l.b16 %v1148
    %v1428 = vunpack.c.h.b16 %v1148
    %v1429 = vunpack.c.l.b16 %v1149
    %v1430 = vunpack.c.h.b16 %v1149
    %v1431 = vunpack.c.l.b16 %v1150
    %v1432 = vunpack.c.h.b16 %v1150
    %v1433 = vunpack.c.l.b16 %v1151
    %v1434 = vunpack.c.h.b16 %v1151
    %v1435 = vunpack.c.l.b16 %v1152
    %v1436 = vunpack.c.h.b16 %v1152
    %v1437 = vunpack.c.l.b16 %v1153
    %v1438 = vunpack.c.h.b16 %v1153
    %v1439 = vunpack.c.l.b16 %v1154
    %v1440 = vunpack.c.h.b16 %v1154
    %v1441 = vunpack.c.l.b16 %v1155
    %v1442 = vunpack.c.h.b16 %v1155
    %v1443 = vunpack.c.l.b16 %v1156
    %v1444 = vunpack.c.h.b16 %v1156
    %v1445 = vunpack.c.l.b16 %v1157
    %v1446 = vunpack.c.h.b16 %v1157
    %v1447 = vunpack.c.l.b16 %v1158
    %v1448 = vunpack.c.h.b16 %v1158
    %v1449 = vunpack.c.l.b16 %v1159
    %v1450 = vunpack.c.h.b16 %v1159
    %v1451 = vunpack.c.l.b16 %v1160
    %v1452 = vunpack.c.h.b16 %v1160
    %v1453 = vunpack.c.l.b16 %v1161
    %v1454 = vunpack.c.h.b16 %v1161
    %v1455 = vunpack.c.l.b16 %v1162
    %v1456 = vunpack.c.h.b16 %v1162
    %v1457 = vunpack.c.l.b16 %v1163
    %v1458 = vunpack.c.h.b16 %v1163
    %v1459 = vunpack.c.l.b16 %v1164
    %v1460 = vunpack.c.h.b16 %v1164
    %v1461 = vunpack.c.l.b16 %v1165
    %v1462 = vunpack.c.h.b16 %v1165
    %v1463 = vunpack.c.l.b16 %v1166
    %v1464 = vunpack.c.h.b16 %v1166
    %v1465 = vunpack.c.l.b16 %v1167
    %v1466 = vunpack.c.h.b16 %v1167
    %v1467 = vunpack.c.l.b16 %v1168
    %v1468 = vunpack.c.h.b16 %v1168
    %v1469 = vpack.c.b16 %v1279, %v1277
    %v1470 = vpack.c.b16 %v1280, %v1278
    %v1471 = vpack.c.b16 %v1283, %v1281
    %v1472 = vpack.c.b16 %v1284, %v1282
    %v1473 = vpack.c.b16 %v1287, %v1285
    %v1474 = vpack.c.b16 %v1288, %v1286
    %v1475 = vpack.c.b16 %v1291, %v1289
    %v1476 = vpack.c.b16 %v1292, %v1290
    %v1477 = vpack.c.b16 %v1295, %v1293
    %v1478 = vpack.c.b16 %v1296, %v1294
    %v1479 = vpack.c.b16 %v1299, %v1297
    %v1480 = vpack.c.b16 %v1300, %v1298
    %v1481 = vpack.c.b16 %v1303, %v1301
    %v1482 = vpack.c.b16 %v1304, %v1302
    %v1483 = vpack.c.b16 %v1307, %v1305
    %v1484 = vpack.c.b16 %v1308, %v1306
    %v1485 = vpack.c.b16 %v1311, %v1309
    %v1486 = vpack.c.b16 %v1312, %v1310
    %v1487 = vpack.c.b16 %v1315, %v1313
    %v1488 = vpack.c.b16 %v1316, %v1314
    %v1489 = vpack.c.b16 %v1319, %v1317
    %v1490 = vpack.c.b16 %v1320, %v1318
    %v1491 = vpack.c.b16 %v1323, %v1321
    %v1492 = vpack.c.b16 %v1324, %v1322
    %v1493 = vpack.c.b16 %v1327, %v1325
    %v1494 = vpack.c.b16 %v1328, %v1326
    %v1495 = vpack.c.b16 %v1331, %v1329
    %v1496 = vpack.c.b16 %v1332, %v1330
    %v1497 = vpack.c.b16 %v1335, %v1333
    %v1498 = vpack.c.b16 %v1336, %v1334
    %v1499 = vpack.c.b16 %v1339, %v1337
    %v1500 = vpack.c.b16 %v1340, %v1338
    %v1501 = vpack.c.b16 %v1343, %v1341
    %v1502 = vpack.c.b16 %v1344, %v1342
    %v1503 = vpack.c.b16 %v1347, %v1345
    %v1504 = vpack.c.b16 %v1348, %v1346
    %v1505 = vpack.c.b16 %v1351, %v1349
    %v1506 = vpack.c.b16 %v1352, %v1350
    %v1507 = vpack.c.b16 %v1355, %v1353
    %v1508 = vpack.c.b16 %v1356, %v1354
    %v1509 = vpack.c.b16 %v1359, %v1357
    %v1510 = vpack.c.b16 %v1360, %v1358
    %v1511 = vpack.c.b16 %v1363, %v1361
    %v1512 = vpack.c.b16 %v1364, %v1362
    %v1513 = vpack.c.b16 %v1367, %v1365
    %v1514 = vpack.c.b16 %v1368, %v1366
    %v1515 = vpack.c.b16 %v1371, %v1369
    %v1516 = vpack.c.b16 %v1372, %v1370
    %v1517 = vpack.c.b16 %v1375, %v1373
    %v1518 = vpack.c.b16 %v1376, %v1374
    %v1519 = vpack.c.b16 %v1379, %v1377
    %v1520 = vpack.c.b16 %v1380, %v1378
    %v1521 = vpack.c.b16 %v1383, %v1381
    %v1522 = vpack.c.b16 %v1384, %v1382
    %v1523 = vpack.c.b16 %v1387, %v1385
    %v1524 = vpack.c.b16 %v1388, %v1386
    %v1525 = vpack.c.b16 %v1391, %v1389
    %v1526 = vpack.c.b16 %v1392, %v1390
    %v1527 = vpack.c.b16 %v1395, %v1393
    %v1528 = vpack.c.b16 %v1396, %v1394
    %v1529 = vpack.c.b16 %v1399, %v1397
    %v1530 = vpack.c.b16 %v1400, %v1398
    %v1531 = vpack.c.b16 %v1403, %v1401
    %v1532 = vpack.c.b16 %v1404, %v1402
    %v1533 = vpack.c.b16 %v1407, %v1405
    %v1534 = vpack.c.b16 %v1408, %v1406
    %v1535 = vpack.c.b16 %v1411, %v1409
    %v1536 = vpack.c.b16 %v1412, %v1410
    %v1537 = vpack.c.b16 %v1415, %v1413
    %v1538 = vpack.c.b16 %v1416, %v1414
    %v1539 = vpack.c.b16 %v1419, %v1417
    %v1540 = vpack.c.b16 %v1420, %v1418
    %v1541 = vpack.c.b16 %v1423, %v1421
    %v1542 = vpack.c.b16 %v1424, %v1422
    %v1543 = vpack.c.b16 %v1427, %v1425
    %v1544 = vpack.c.b16 %v1428, %v1426
    %v1545 = vpack.c.b16 %v1431, %v1429
    %v1546 = vpack.c.b16 %v1432, %v1430
    %v1547 = vpack.c.b16 %v1435, %v1433
    %v1548 = vpack.c.b16 %v1436, %v1434
    %v1549 = vpack.c.b16 %v1439, %v1437
    %v1550 = vpack.c.b16 %v1440, %v1438
    %v1551 = vpack.c.b16 %v1443, %v1441
    %v1552 = vpack.c.b16 %v1444, %v1442
    %v1553 = vpack.c.b16 %v1447, %v1445
    %v1554 = vpack.c.b16 %v1448, %v1446
    %v1555 = vpack.c.b16 %v1451, %v1449
    %v1556 = vpack.c.b16 %v1452, %v1450
    %v1557 = vpack.c.b16 %v1455, %v1453
    %v1558 = vpack.c.b16 %v1456, %v1454
    %v1559 = vpack.c.b16 %v1459, %v1457
    %v1560 = vpack.c.b16 %v1460, %v1458
    %v1561 = vpack.c.b16 %v1463, %v1461
    %v1562 = vpack.c.b16 %v1464, %v1462
    %v1563 = vpack.c.b16 %v1467, %v1465
    %v1564 = vpack.c.b16 %v1468, %v1466
    %1661 = vmatprep.subr.bf16.mxu0 %v1470
    %1662 = vmatpush1.bf16.msra.mxu0 %v1469
    %1663 = vmatprep.subr.bf16.mxu0 %v1472
    %1664 = vmatpush1.bf16.msra.mxu0 %v1471
    %1665 = vmatprep.subr.bf16.mxu0 %v1474
    %1666 = vmatpush1.bf16.msra.mxu0 %v1473
    %1667 = vmatprep.subr.bf16.mxu0 %v1476
    %1668 = vmatpush1.bf16.msra.mxu0 %v1475
    %1669 = vmatprep.subr.bf16.mxu0 %v1478
    %1670 = vmatpush1.bf16.msra.mxu0 %v1477
    %1671 = vmatprep.subr.bf16.mxu0 %v1480
    %1672 = vmatpush1.bf16.msra.mxu0 %v1479
    %1673 = vmatprep.subr.bf16.mxu0 %v1482
    %1674 = vmatpush1.bf16.msra.mxu0 %v1481
    %1675 = vmatprep.subr.bf16.mxu0 %v1484
    %1676 = vmatpush1.bf16.msra.mxu0 %v1483
    %1677 = vmatprep.subr.bf16.mxu0 %v1486
    %1678 = vmatpush1.bf16.msra.mxu0 %v1485
    %1679 = vmatprep.subr.bf16.mxu0 %v1488
    %1680 = vmatpush1.bf16.msra.mxu0 %v1487
    %1681 = vmatprep.subr.bf16.mxu0 %v1490
    %1682 = vmatpush1.bf16.msra.mxu0 %v1489
    %1683 = vmatprep.subr.bf16.mxu0 %v1492
    %1684 = vmatpush1.bf16.msra.mxu0 %v1491
    %1685 = vmatprep.subr.bf16.mxu0 %v1494
    %1686 = vmatpush1.bf16.msra.mxu0 %v1493
    %1687 = vmatprep.subr.bf16.mxu0 %v1496
    %1688 = vmatpush1.bf16.msra.mxu0 %v1495
    %1689 = vmatprep.subr.bf16.mxu0 %v1498
    %1690 = vmatpush1.bf16.msra.mxu0 %v1497
    %1691 = vmatprep.subr.bf16.mxu0 %v1500
    %1692 = vmatpush1.bf16.msra.mxu0 %v1499
    %1693 = vmatprep.mubr.bf16.mxu0 %v1046
    %1694 = vmatmul.mubr.bf16.gmra.mrb[0].mxu0 %v1045
    %v1695 = vpop.f32.mrb[0].mxu0
    %v1696 = vadd.f32 %v1174, %v1695
    %v1697 = vpop.f32.mrb[0].mxu0
    %v1698 = vadd.f32 %v1178, %v1697
    %v1699 = vpop.f32.mrb[0].mxu0
    %v1700 = vadd.f32 %v1174, %v1699
    %v1701 = vpop.f32.mrb[0].mxu0
    %v1702 = vadd.f32 %v1178, %v1701
    %1703 = vmatprep.mubr.bf16.mxu0 %v1050
    %1704 = vmatmul.mubr.bf16.gmra.mrb[0].mxu0 %v1049
    %v1705 = vpop.f32.mrb[0].mxu0
    %v1706 = vadd.f32 %v1174, %v1705
    %v1707 = vpop.f32.mrb[0].mxu0
    %v1708 = vadd.f32 %v1178, %v1707
    %v1709 = vpop.f32.mrb[0].mxu0
    %v1710 = vadd.f32 %v1174, %v1709
    %v1711 = vpop.f32.mrb[0].mxu0
    %v1712 = vadd.f32 %v1178, %v1711
    %1713 = vmatprep.mubr.bf16.mxu0 %v1054
    %1714 = vmatmul.mubr.bf16.gmra.mrb[0].mxu0 %v1053
    %v1715 = vpop.f32.mrb[0].mxu0
    %v1716 = vadd.f32 %v1174, %v1715
    %v1717 = vpop.f32.mrb[0].mxu0
    %v1718 = vadd.f32 %v1178, %v1717
    %v1719 = vpop.f32.mrb[0].mxu0
    %v1720 = vadd.f32 %v1174, %v1719
    %v1721 = vpop.f32.mrb[0].mxu0
    %v1722 = vadd.f32 %v1178, %v1721
    %1723 = vmatprep.mubr.bf16.mxu0 %v1058
    %1724 = vmatmul.mubr.bf16.gmra.mrb[0].mxu0 %v1057
    %v1725 = vpop.f32.mrb[0].mxu0
    %v1726 = vadd.f32 %v1174, %v1725
    %v1727 = vpop.f32.mrb[0].mxu0
    %v1728 = vadd.f32 %v1178, %v1727
    %v1729 = vpop.f32.mrb[0].mxu0
    %v1730 = vadd.f32 %v1174, %v1729
    %v1731 = vpop.f32.mrb[0].mxu0
    %v1732 = vadd.f32 %v1178, %v1731
    %1733 = vmatprep.mubr.bf16.mxu0 %v1062
    %1734 = vmatmul.mubr.bf16.gmra.mrb[0].mxu0 %v1061
    %v1735 = vpop.f32.mrb[0].mxu0
    %v1736 = vadd.f32 %v1174, %v1735
    %v1737 = vpop.f32.mrb[0].mxu0
    %v1738 = vadd.f32 %v1178, %v1737
    %v1739 = vpop.f32.mrb[0].mxu0
    %v1740 = vadd.f32 %v1174, %v1739
    %v1741 = vpop.f32.mrb[0].mxu0
    %v1742 = vadd.f32 %v1178, %v1741
    %1743 = vmatprep.mubr.bf16.mxu0 %v1068
    %1744 = vmatmul.mubr.bf16.gmra.mrb[0].mxu0 %v1067
    %v1745 = vpop.f32.mrb[0].mxu0
    %v1746 = vpop.f32.mrb[0].mxu0
    %v1747 = vpop.f32.mrb[0].mxu0
    %v1748 = vpop.f32.mrb[0].mxu0
    %1749 = vdwg.mxu0
    %1750 = vmatprep.subr.bf16.mxu0 %v1502
    %1751 = vmatpush1.bf16.msra.mxu0 %v1501
    %1752 = vmatprep.subr.bf16.mxu0 %v1504
    %1753 = vmatpush1.bf16.msra.mxu0 %v1503
    %1754 = vmatprep.subr.bf16.mxu0 %v1506
    %1755 = vmatpush1.bf16.msra.mxu0 %v1505
    %1756 = vmatprep.subr.bf16.mxu0 %v1508
    %1757 = vmatpush1.bf16.msra.mxu0 %v1507
    %1758 = vmatprep.subr.bf16.mxu0 %v1510
    %1759 = vmatpush1.bf16.msra.mxu0 %v1509
    %1760 = vmatprep.subr.bf16.mxu0 %v1512
    %1761 = vmatpush1.bf16.msra.mxu0 %v1511
    %1762 = vmatprep.subr.bf16.mxu0 %v1514
    %1763 = vmatpush1.bf16.msra.mxu0 %v1513
    %1764 = vmatprep.subr.bf16.mxu0 %v1516
    %1765 = vmatpush1.bf16.msra.mxu0 %v1515
    %1766 = vmatprep.subr.bf16.mxu0 %v1518
    %1767 = vmatpush1.bf16.msra.mxu0 %v1517
    %1768 = vmatprep.subr.bf16.mxu0 %v1520
    %1769 = vmatpush1.bf16.msra.mxu0 %v1519
    %1770 = vmatprep.subr.bf16.mxu0 %v1522
    %1771 = vmatpush1.bf16.msra.mxu0 %v1521
    %1772 = vmatprep.subr.bf16.mxu0 %v1524
    %1773 = vmatpush1.bf16.msra.mxu0 %v1523
    %1774 = vmatprep.subr.bf16.mxu0 %v1526
    %1775 = vmatpush1.bf16.msra.mxu0 %v1525
    %1776 = vmatprep.subr.bf16.mxu0 %v1528
    %1777 = vmatpush1.bf16.msra.mxu0 %v1527
    %1778 = vmatprep.subr.bf16.mxu0 %v1530
    %1779 = vmatpush1.bf16.msra.mxu0 %v1529
    %1780 = vmatprep.subr.bf16.mxu0 %v1532
    %1781 = vmatpush1.bf16.msra.mxu0 %v1531
    %1782 = vmatprep.mubr.bf16.mxu0 %v1048
    %1783 = vmatmul.mubr.bf16.gmra.mrb[0].mxu0 %v1047
    %v1784 = vpop.f32.mrb[0].mxu0
    %v1785 = vadd.f32 %v1696, %v1784
    %v1786 = vpop.f32.mrb[0].mxu0
    %v1787 = vadd.f32 %v1698, %v1786
    %v1788 = vpop.f32.mrb[0].mxu0
    %v1789 = vadd.f32 %v1700, %v1788
    %v1790 = vpop.f32.mrb[0].mxu0
    %v1791 = vadd.f32 %v1702, %v1790
    %1792 = vmatprep.mubr.bf16.mxu0 %v1052
    %1793 = vmatmul.mubr.bf16.gmra.mrb[0].mxu0 %v1051
    %v1794 = vpop.f32.mrb[0].mxu0
    %v1795 = vadd.f32 %v1706, %v1794
    %v1796 = vpop.f32.mrb[0].mxu0
    %v1797 = vadd.f32 %v1708, %v1796
    %v1798 = vpop.f32.mrb[0].mxu0
    %v1799 = vadd.f32 %v1710, %v1798
    %v1800 = vpop.f32.mrb[0].mxu0
    %v1801 = vadd.f32 %v1712, %v1800
    %1802 = vmatprep.mubr.bf16.mxu0 %v1056
    %1803 = vmatmul.mubr.bf16.gmra.mrb[0].mxu0 %v1055
    %v1804 = vpop.f32.mrb[0].mxu0
    %v1805 = vadd.f32 %v1716, %v1804
    %v1806 = vpop.f32.mrb[0].mxu0
    %v1807 = vadd.f32 %v1718, %v1806
    %v1808 = vpop.f32.mrb[0].mxu0
    %v1809 = vadd.f32 %v1720, %v1808
    %v1810 = vpop.f32.mrb[0].mxu0
    %v1811 = vadd.f32 %v1722, %v1810
    %1812 = vmatprep.mubr.bf16.mxu0 %v1060
    %1813 = vmatmul.mubr.bf16.gmra.mrb[0].mxu0 %v1059
    %v1814 = vpop.f32.mrb[0].mxu0
    %v1815 = vadd.f32 %v1726, %v1814
    %v1816 = vpop.f32.mrb[0].mxu0
    %v1817 = vadd.f32 %v1728, %v1816
    %v1818 = vpop.f32.mrb[0].mxu0
    %v1819 = vadd.f32 %v1730, %v1818
    %v1820 = vpop.f32.mrb[0].mxu0
    %v1821 = vadd.f32 %v1732, %v1820
    %1822 = vmatprep.mubr.bf16.mxu0 %v1064
    %1823 = vmatmul.mubr.bf16.gmra.mrb[0].mxu0 %v1063
    %v1824 = vpop.f32.mrb[0].mxu0
    %v1825 = vadd.f32 %v1736, %v1824
    %v1826 = vpop.f32.mrb[0].mxu0
    %v1827 = vadd.f32 %v1738, %v1826
    %v1828 = vpop.f32.mrb[0].mxu0
    %v1829 = vadd.f32 %v1740, %v1828
    %v1830 = vpop.f32.mrb[0].mxu0
    %v1831 = vadd.f32 %v1742, %v1830
    %1832 = vmatprep.mubr.bf16.mxu0 %v1070
    %1833 = vmatmul.mubr.bf16.gmra.mrb[0].mxu0 %v1069
    %v1834 = vpop.f32.mrb[0].mxu0
    %v1835 = vpop.f32.mrb[0].mxu0
    %v1836 = vpop.f32.mrb[0].mxu0
    %v1837 = vpop.f32.mrb[0].mxu0
    %1838 = vdwg.mxu0
    %1839 = vmatprep.subr.bf16.mxu0 %v1534
    %1840 = vmatpush1.bf16.msra.mxu0 %v1533
    %1841 = vmatprep.subr.bf16.mxu0 %v1536
    %1842 = vmatpush1.bf16.msra.mxu0 %v1535
    %1843 = vmatprep.subr.bf16.mxu0 %v1538
    %1844 = vmatpush1.bf16.msra.mxu0 %v1537
    %1845 = vmatprep.subr.bf16.mxu0 %v1540
    %1846 = vmatpush1.bf16.msra.mxu0 %v1539
    %1847 = vmatprep.subr.bf16.mxu0 %v1542
    %1848 = vmatpush1.bf16.msra.mxu0 %v1541
    %1849 = vmatprep.subr.bf16.mxu0 %v1544
    %1850 = vmatpush1.bf16.msra.mxu0 %v1543
    %1851 = vmatprep.subr.bf16.mxu0 %v1546
    %1852 = vmatpush1.bf16.msra.mxu0 %v1545
    %1853 = vmatprep.subr.bf16.mxu0 %v1548
    %1854 = vmatpush1.bf16.msra.mxu0 %v1547
    %1855 = vmatprep.subr.bf16.mxu0 %v1550
    %1856 = vmatpush1.bf16.msra.mxu0 %v1549
    %1857 = vmatprep.subr.bf16.mxu0 %v1552
    %1858 = vmatpush1.bf16.msra.mxu0 %v1551
    %1859 = vmatprep.subr.bf16.mxu0 %v1554
    %1860 = vmatpush1.bf16.msra.mxu0 %v1553
    %1861 = vmatprep.subr.bf16.mxu0 %v1556
    %1862 = vmatpush1.bf16.msra.mxu0 %v1555
    %1863 = vmatprep.subr.bf16.mxu0 %v1558
    %1864 = vmatpush1.bf16.msra.mxu0 %v1557
    %1865 = vmatprep.subr.bf16.mxu0 %v1560
    %1866 = vmatpush1.bf16.msra.mxu0 %v1559
    %1867 = vmatprep.subr.bf16.mxu0 %v1562
    %1868 = vmatpush1.bf16.msra.mxu0 %v1561
    %1869 = vmatprep.subr.bf16.mxu0 %v1564
    %1870 = vmatpush1.bf16.msra.mxu0 %v1563
    %1871 = vmatprep.mubr.bf16.mxu0 %v1050
    %1872 = vmatmul.mubr.bf16.gmra.mrb[0].mxu0 %v1049
    %v1873 = vpop.f32.mrb[0].mxu0
    %v1874 = vadd.f32 %v1785, %v1873
    %v1875 = vpop.f32.mrb[0].mxu0
    %v1876 = vadd.f32 %v1787, %v1875
    %v1877 = vpop.f32.mrb[0].mxu0
    %v1878 = vadd.f32 %v1789, %v1877
    %v1879 = vpop.f32.mrb[0].mxu0
    %v1880 = vadd.f32 %v1791, %v1879
    %1881 = vmatprep.mubr.bf16.mxu0 %v1054
    %1882 = vmatmul.mubr.bf16.gmra.mrb[0].mxu0 %v1053
    %v1883 = vpop.f32.mrb[0].mxu0
    %v1884 = vadd.f32 %v1795, %v1883
    %v1885 = vpop.f32.mrb[0].mxu0
    %v1886 = vadd.f32 %v1797, %v1885
    %v1887 = vpop.f32.mrb[0].mxu0
    %v1888 = vadd.f32 %v1799, %v1887
    %v1889 = vpop.f32.mrb[0].mxu0
    %v1890 = vadd.f32 %v1801, %v1889
    %1891 = vmatprep.mubr.bf16.mxu0 %v1058
    %1892 = vmatmul.mubr.bf16.gmra.mrb[0].mxu0 %v1057
    %v1893 = vpop.f32.mrb[0].mxu0
    %v1894 = vadd.f32 %v1805, %v1893
    %v1895 = vpop.f32.mrb[0].mxu0
    %v1896 = vadd.f32 %v1807, %v1895
    %v1897 = vpop.f32.mrb[0].mxu0
    %v1898 = vadd.f32 %v1809, %v1897
    %v1899 = vpop.f32.mrb[0].mxu0
    %v1900 = vadd.f32 %v1811, %v1899
    %1901 = vmatprep.mubr.bf16.mxu0 %v1062
    %1902 = vmatmul.mubr.bf16.gmra.mrb[0].mxu0 %v1061
    %v1903 = vpop.f32.mrb[0].mxu0
    %v1904 = vadd.f32 %v1815, %v1903
    %v1905 = vpop.f32.mrb[0].mxu0
    %v1906 = vadd.f32 %v1817, %v1905
    %v1907 = vpop.f32.mrb[0].mxu0
    %v1908 = vadd.f32 %v1819, %v1907
    %v1909 = vpop.f32.mrb[0].mxu0
    %v1910 = vadd.f32 %v1821, %v1909
    %1911 = vmatprep.mubr.bf16.mxu0 %v1066
    %1912 = vmatmul.mubr.bf16.gmra.mrb[0].mxu0 %v1065
    %v1913 = vpop.f32.mrb[0].mxu0
    %v1914 = vadd.f32 %v1825, %v1913
    %v1915 = vpop.f32.mrb[0].mxu0
    %v1916 = vadd.f32 %v1827, %v1915
    %v1917 = vpop.f32.mrb[0].mxu0
    %v1918 = vadd.f32 %v1829, %v1917
    %v1919 = vpop.f32.mrb[0].mxu0
    %v1920 = vadd.f32 %v1831, %v1919
    %1921 = vmatprep.mubr.bf16.mxu0 %v1072
    %1922 = vmatmul.mubr.bf16.gmra.mrb[0].mxu0 %v1071
    %v1923 = vpop.f32.mrb[0].mxu0
    %v1924 = vpop.f32.mrb[0].mxu0
    %v1925 = vpop.f32.mrb[0].mxu0
    %v1926 = vpop.f32.mrb[0].mxu0
    %1927 = vdwg.mxu0
    %v1928 = vmax.f32 %v1874, 0.0
    %v1929 = vmax.f32 %v1876, 0.0
    %v1930 = vmax.f32 %v1878, 0.0
    %v1931 = vmax.f32 %v1880, 0.0
    %v1932 = vmax.f32 %v1884, 0.0
    %v1933 = vmax.f32 %v1886, 0.0
    %v1934 = vmax.f32 %v1888, 0.0
    %v1935 = vmax.f32 %v1890, 0.0
    %v1936 = vmax.f32 %v1894, 0.0
    %v1937 = vmax.f32 %v1896, 0.0
    %v1938 = vmax.f32 %v1898, 0.0
    %v1939 = vmax.f32 %v1900, 0.0
    %v1940 = vmax.f32 %v1904, 0.0
    %v1941 = vmax.f32 %v1906, 0.0
    %v1942 = vmax.f32 %v1908, 0.0
    %v1943 = vmax.f32 %v1910, 0.0
    %v1944 = vmax.f32 %v1914, 0.0
    %v1945 = vmax.f32 %v1916, 0.0
    %v1946 = vmax.f32 %v1918, 0.0
    %v1947 = vmax.f32 %v1920, 0.0
    %v1948 = vmax.f32 %v1928, %v1930
    %v1949 = vmax.f32 %v1929, %v1931
    %v1950 = vmax.f32 %v1932, %v1934
    %v1951 = vmax.f32 %v1933, %v1935
    %v1952 = vmax.f32 %v1936, %v1938
    %v1953 = vmax.f32 %v1937, %v1939
    %v1954 = vmax.f32 %v1940, %v1942
    %v1955 = vmax.f32 %v1941, %v1943
    %v1956 = vmax.f32 %v1944, %v1946
    %v1957 = vmax.f32 %v1945, %v1947
    %1958 = vrot.lane.b32.xlu0 %v1948, 112
    %v1959 = vpop.permute.xlu0 %1958
    %1960 = vrot.lane.b32.xlu0 %v1950, 112
    %v1961 = vpop.permute.xlu0 %1960
    %1962 = vrot.lane.b32.xlu0 %v1952, 112
    %v1963 = vpop.permute.xlu0 %1962
    %1964 = vrot.lane.b32.xlu0 %v1954, 112
    %v1965 = vpop.permute.xlu0 %1964
    %1966 = vrot.lane.b32.xlu0 %v1956, 112
    %v1967 = vpop.permute.xlu0 %1966
    %1968 = vrot.lane.b32.xlu0 %v1949, 112
    %v1969 = vpop.permute.xlu0 %1968
    %1970 = vrot.lane.b32.xlu0 %v1951, 112
    %v1971 = vpop.permute.xlu0 %1970
    %1972 = vrot.lane.b32.xlu0 %v1953, 112
    %v1973 = vpop.permute.xlu0 %1972
    %1974 = vrot.lane.b32.xlu0 %v1955, 112
    %v1975 = vpop.permute.xlu0 %1974
    %1976 = vrot.lane.b32.xlu0 %v1957, 112
    %v1977 = vpop.permute.xlu0 %1976
    %vm1978 = vcmp.lt.s32.totalorder %v991, 112
    %v1979 = vsel %vm1978, %v1959, %v1969
    %v1980 = vsel %vm1978, %v1961, %v1971
    %v1981 = vsel %vm1978, %v1963, %v1973
    %v1982 = vsel %vm1978, %v1965, %v1975
    %v1983 = vsel %vm1978, %v1967, %v1977
    %v1984 = vsel %vm1978, %v1969, %v1959
    %v1985 = vsel %vm1978, %v1971, %v1961
    %v1986 = vsel %vm1978, %v1973, %v1963
    %v1987 = vsel %vm1978, %v1975, %v1965
    %v1988 = vsel %vm1978, %v1977, %v1967
    %v1989 = vmax.f32 %v1948, %v1979
    %v1990 = vmax.f32 %v1949, %v1984
    %v1991 = vmax.f32 %v1950, %v1980
    %v1992 = vmax.f32 %v1951, %v1985
    %v1993 = vmax.f32 %v1952, %v1981
    %v1994 = vmax.f32 %v1953, %v1986
    %v1995 = vmax.f32 %v1954, %v1982
    %v1996 = vmax.f32 %v1955, %v1987
    %v1997 = vmax.f32 %v1956, %v1983
    %v1998 = vmax.f32 %v1957, %v1988
    %v1999 = vpack.c.bf16 %v1989, %v1989
    %v2000 = vpack.c.bf16 %v1990, %v1990
    %v2001 = vpack.c.bf16 %v1991, %v1991
    %v2002 = vpack.c.bf16 %v1992, %v1992
    %v2003 = vpack.c.bf16 %v1993, %v1993
    %v2004 = vpack.c.bf16 %v1994, %v1994
    %v2005 = vpack.c.bf16 %v1995, %v1995
    %v2006 = vpack.c.bf16 %v1996, %v1996
    %v2007 = vpack.c.bf16 %v1997, %v1997
    %v2008 = vpack.c.bf16 %v1998, %v1998
    %v2009 = vld [vmem:[#allocation11] sm:$0xf]
    %v2010 = vld [vmem:[#allocation11 + $0x4] sm:$0xf]
    %v2011 = vld [vmem:[#allocation11 + $0x8] sm:$0xf]
    %v2012 = vld [vmem:[#allocation11 + $0xc] sm:$0xf]
    %v2013 = vld [vmem:[#allocation11 + $0x10] sm:$0xf]
    %v2014 = vld [vmem:[#allocation11 + $0x14] sm:$0xf]
    %v2015 = vld [vmem:[#allocation11 + $0x18] sm:$0xf]
    %v2016 = vld [vmem:[#allocation11 + $0x1c] sm:$0xf]
    %v2017 = vld [vmem:[#allocation11 + $0x20] sm:$0xf]
    %v2018 = vld [vmem:[#allocation11 + $0x24] sm:$0xf]
    %v2019 = vld [vmem:[#allocation11 + $0x28] sm:$0xf]
    %v2020 = vld [vmem:[#allocation11 + $0x2c] sm:$0xf]
    %v2021 = vld [vmem:[#allocation11 + $0x30] sm:$0xf]
    %v2022 = vld [vmem:[#allocation11 + $0x34] sm:$0xf]
    %v2023 = vld [vmem:[#allocation11 + $0x38] sm:$0xf]
    %v2024 = vld [vmem:[#allocation11 + $0x3c] sm:$0xf]
    %v2025 = vld [vmem:[#allocation11 + $0x40] sm:$0xf]
    %v2026 = vld [vmem:[#allocation11 + $0x44] sm:$0xf]
    %v2027 = vld [vmem:[#allocation11 + $0x48] sm:$0xf]
    %v2028 = vld [vmem:[#allocation11 + $0x4c] sm:$0xf]
    %v2029 = vld [vmem:[#allocation11 + $0x50] sm:$0xf]
    %v2030 = vld [vmem:[#allocation11 + $0x54] sm:$0xf]
    %v2031 = vld [vmem:[#allocation11 + $0x58] sm:$0xf]
    %v2032 = vld [vmem:[#allocation11 + $0x5c] sm:$0xf]
    %v2033 = vld [vmem:[#allocation11 + $0x60] sm:$0xf]
    %v2034 = vld [vmem:[#allocation11 + $0x64] sm:$0xf]
    %v2035 = vld [vmem:[#allocation11 + $0x68] sm:$0xf]
    %v2036 = vld [vmem:[#allocation11 + $0x6c] sm:$0xf]
    %v2037 = vld [vmem:[#allocation11 + $0x70] sm:$0xf]
    %v2038 = vld [vmem:[#allocation11 + $0x74] sm:$0xf]
    %v2039 = vld [vmem:[#allocation11 + $0x78] sm:$0xf]
    %v2040 = vld [vmem:[#allocation11 + $0x7c] sm:$0xf]
    %v2041 = vld [vmem:[#allocation11 + $0x80] sm:$0xf]
    %v2042 = vld [vmem:[#allocation11 + $0x84] sm:$0xf]
    %v2043 = vld [vmem:[#allocation11 + $0x88] sm:$0xf]
    %v2044 = vld [vmem:[#allocation11 + $0x8c] sm:$0xf]
    %v2045 = vld [vmem:[#allocation11 + $0x90] sm:$0xf]
    %v2046 = vld [vmem:[#allocation11 + $0x94] sm:$0xf]
    %v2047 = vld [vmem:[#allocation11 + $0x98] sm:$0xf]
    %v2048 = vld [vmem:[#allocation11 + $0x9c] sm:$0xf]
    %v2049 = vld [vmem:[#allocation11 + $0xa0] sm:$0xf]
    %v2050 = vld [vmem:[#allocation11 + $0xa4] sm:$0xf]
    %v2051 = vld [vmem:[#allocation11 + $0xa8] sm:$0xf]
    %v2052 = vld [vmem:[#allocation11 + $0xac] sm:$0xf]
    %v2053 = vld [vmem:[#allocation11 + $0xb0] sm:$0xf]
    %v2054 = vld [vmem:[#allocation11 + $0xb4] sm:$0xf]
    %v2055 = vld [vmem:[#allocation11 + $0xb8] sm:$0xf]
    %v2056 = vld [vmem:[#allocation11 + $0xbc] sm:$0xf]
    %v2057 = vld [vmem:[#allocation11 + $0xc0] sm:$0xf]
    %v2058 = vld [vmem:[#allocation11 + $0xc4] sm:$0xf]
    %v2059 = vld [vmem:[#allocation11 + $0xc8] sm:$0xf]
    %v2060 = vld [vmem:[#allocation11 + $0xcc] sm:$0xf]
    %v2061 = vld [vmem:[#allocation11 + $0xd0] sm:$0xf]
    %v2062 = vld [vmem:[#allocation11 + $0xd4] sm:$0xf]
    %v2063 = vld [vmem:[#allocation11 + $0xd8] sm:$0xf]
    %v2064 = vld [vmem:[#allocation11 + $0xdc] sm:$0xf]
    %v2065 = vld [vmem:[#allocation11 + $0xe0] sm:$0xf]
    %v2066 = vld [vmem:[#allocation11 + $0xe4] sm:$0xf]
    %v2067 = vld [vmem:[#allocation11 + $0xe8] sm:$0xf]
    %v2068 = vld [vmem:[#allocation11 + $0xec] sm:$0xf]
    %v2069 = vld [vmem:[#allocation11 + $0xf0] sm:$0xf]
    %v2070 = vld [vmem:[#allocation11 + $0xf4] sm:$0xf]
    %v2071 = vld [vmem:[#allocation11 + $0xf8] sm:$0xf]
    %v2072 = vld [vmem:[#allocation11 + $0xfc] sm:$0xf]
    %v2073 = vld [vmem:[#allocation11 + $0x100] sm:$0xf]
    %v2074 = vld [vmem:[#allocation11 + $0x104] sm:$0xf]
    %v2075 = vld [vmem:[#allocation11 + $0x108] sm:$0xf]
    %v2076 = vld [vmem:[#allocation11 + $0x10c] sm:$0xf]
    %v2077 = vld [vmem:[#allocation11 + $0x110] sm:$0xf]
    %v2078 = vld [vmem:[#allocation11 + $0x114] sm:$0xf]
    %v2079 = vld [vmem:[#allocation11 + $0x118] sm:$0xf]
    %v2080 = vld [vmem:[#allocation11 + $0x11c] sm:$0xf]
    %v2081 = vld [vmem:[#allocation11 + $0x120] sm:$0xf]
    %v2082 = vld [vmem:[#allocation11 + $0x124] sm:$0xf]
    %v2083 = vld [vmem:[#allocation11 + $0x128] sm:$0xf]
    %v2084 = vld [vmem:[#allocation11 + $0x12c] sm:$0xf]
    %v2085 = vld [vmem:[#allocation11 + $0x130] sm:$0xf]
    %v2086 = vld [vmem:[#allocation11 + $0x134] sm:$0xf]
    %v2087 = vld [vmem:[#allocation11 + $0x138] sm:$0xf]
    %v2088 = vld [vmem:[#allocation11 + $0x13c] sm:$0xf]
    %v2089 = vld [vmem:[#allocation11 + $0x140] sm:$0xf]
    %v2090 = vld [vmem:[#allocation11 + $0x144] sm:$0xf]
    %v2091 = vld [vmem:[#allocation11 + $0x148] sm:$0xf]
    %v2092 = vld [vmem:[#allocation11 + $0x14c] sm:$0xf]
    %v2093 = vld [vmem:[#allocation11 + $0x150] sm:$0xf]
    %v2094 = vld [vmem:[#allocation11 + $0x154] sm:$0xf]
    %v2095 = vld [vmem:[#allocation11 + $0x158] sm:$0xf]
    %v2096 = vld [vmem:[#allocation11 + $0x15c] sm:$0xf]
    %v2097 = vld [vmem:[#allocation11 + $0x160] sm:$0xf]
    %v2098 = vld [vmem:[#allocation11 + $0x164] sm:$0xf]
    %v2099 = vld [vmem:[#allocation11 + $0x168] sm:$0xf]
    %v2100 = vld [vmem:[#allocation11 + $0x16c] sm:$0xf]
    %v2101 = vld [vmem:[#allocation11 + $0x170] sm:$0xf]
    %v2102 = vld [vmem:[#allocation11 + $0x174] sm:$0xf]
    %v2103 = vld [vmem:[#allocation11 + $0x178] sm:$0xf]
    %v2104 = vld [vmem:[#allocation11 + $0x17c] sm:$0xf]
    %v2105 = vld [vmem:[#allocation11 + $0x180] sm:$0xf]
    %v2106 = vld [vmem:[#allocation11 + $0x184] sm:$0xf]
    %v2107 = vld [vmem:[#allocation11 + $0x188] sm:$0xf]
    %v2108 = vld [vmem:[#allocation11 + $0x18c] sm:$0xf]
    %v2109 = vld [vmem:[#allocation11 + $0x190] sm:$0xf]
    %v2110 = vld [vmem:[#allocation11 + $0x194] sm:$0xf]
    %v2111 = vld [vmem:[#allocation11 + $0x198] sm:$0xf]
    %v2112 = vld [vmem:[#allocation11 + $0x19c] sm:$0xf]
    %v2113 = vld [vmem:[#allocation11 + $0x1a0] sm:$0xf]
    %v2114 = vld [vmem:[#allocation11 + $0x1a4] sm:$0xf]
    %v2115 = vld [vmem:[#allocation11 + $0x1a8] sm:$0xf]
    %v2116 = vld [vmem:[#allocation11 + $0x1ac] sm:$0xf]
    %v2117 = vld [vmem:[#allocation11 + $0x1b0] sm:$0xf]
    %v2118 = vld [vmem:[#allocation11 + $0x1b4] sm:$0xf]
    %v2119 = vld [vmem:[#allocation11 + $0x1b8] sm:$0xf]
    %v2120 = vld [vmem:[#allocation11 + $0x1bc] sm:$0xf]
    %v2121 = vld [vmem:[#allocation11 + $0x1c0] sm:$0xf]
    %v2122 = vld [vmem:[#allocation11 + $0x1c4] sm:$0xf]
    %v2123 = vld [vmem:[#allocation11 + $0x1c8] sm:$0xf]
    %v2124 = vld [vmem:[#allocation11 + $0x1cc] sm:$0xf]
    %v2125 = vld [vmem:[#allocation11 + $0x1d0] sm:$0xf]
    %v2126 = vld [vmem:[#allocation11 + $0x1d4] sm:$0xf]
    %v2127 = vld [vmem:[#allocation11 + $0x1d8] sm:$0xf]
    %v2128 = vld [vmem:[#allocation11 + $0x1dc] sm:$0xf]
    %v2129 = vld [vmem:[#allocation11 + $0x1e0] sm:$0xf]
    %v2130 = vld [vmem:[#allocation11 + $0x1e4] sm:$0xf]
    %v2131 = vld [vmem:[#allocation11 + $0x1e8] sm:$0xf]
    %v2132 = vld [vmem:[#allocation11 + $0x1ec] sm:$0xf]
    %v2133 = vld [vmem:[#allocation11 + $0x1f0] sm:$0xf]
    %v2134 = vld [vmem:[#allocation11 + $0x1f4] sm:$0xf]
    %v2135 = vld [vmem:[#allocation11 + $0x1f8] sm:$0xf]
    %v2136 = vld [vmem:[#allocation11 + $0x1fc] sm:$0xf]
    %v2137 = vld [vmem:[#allocation11 + $0x200] sm:$0xf]
    %v2138 = vld [vmem:[#allocation11 + $0x204] sm:$0xf]
    %v2139 = vld [vmem:[#allocation11 + $0x208] sm:$0xf]
    %v2140 = vld [vmem:[#allocation11 + $0x20c] sm:$0xf]
    %v2141 = vld [vmem:[#allocation11 + $0x210] sm:$0xf]
    %v2142 = vld [vmem:[#allocation11 + $0x214] sm:$0xf]
    %v2143 = vld [vmem:[#allocation11 + $0x218] sm:$0xf]
    %v2144 = vld [vmem:[#allocation11 + $0x21c] sm:$0xf]
    %v2145 = vld [vmem:[#allocation11 + $0x220] sm:$0xf]
    %v2146 = vld [vmem:[#allocation11 + $0x224] sm:$0xf]
    %v2147 = vld [vmem:[#allocation11 + $0x228] sm:$0xf]
    %v2148 = vld [vmem:[#allocation11 + $0x22c] sm:$0xf]
    %v2149 = vld [vmem:[#allocation11 + $0x230] sm:$0xf]
    %v2150 = vld [vmem:[#allocation11 + $0x234] sm:$0xf]
    %v2151 = vld [vmem:[#allocation11 + $0x238] sm:$0xf]
    %v2152 = vld [vmem:[#allocation11 + $0x23c] sm:$0xf]
    %v2153 = vld [vmem:[#allocation11 + $0x240] sm:$0xf]
    %v2154 = vld [vmem:[#allocation11 + $0x244] sm:$0xf]
    %v2155 = vld [vmem:[#allocation11 + $0x248] sm:$0xf]
    %v2156 = vld [vmem:[#allocation11 + $0x24c] sm:$0xf]
    %v2157 = vld [vmem:[#allocation11 + $0x250] sm:$0xf]
    %v2158 = vld [vmem:[#allocation11 + $0x254] sm:$0xf]
    %v2159 = vld [vmem:[#allocation11 + $0x258] sm:$0xf]
    %v2160 = vld [vmem:[#allocation11 + $0x25c] sm:$0xf]
    %v2161 = vld [vmem:[#allocation11 + $0x260] sm:$0xf]
    %v2162 = vld [vmem:[#allocation11 + $0x264] sm:$0xf]
    %v2163 = vld [vmem:[#allocation11 + $0x268] sm:$0xf]
    %v2164 = vld [vmem:[#allocation11 + $0x26c] sm:$0xf]
    %v2165 = vld [vmem:[#allocation11 + $0x270] sm:$0xf]
    %v2166 = vld [vmem:[#allocation11 + $0x274] sm:$0xf]
    %v2167 = vld [vmem:[#allocation11 + $0x278] sm:$0xf]
    %v2168 = vld [vmem:[#allocation11 + $0x27c] sm:$0xf]
    %v2169 = vld [vmem:[#allocation13] sm:$0x1]
    %v2171 = vlaneseq
    %v2172 = vshrl.u32 %v2171, 7
    %v2173 = vsub.s32 0, %v2172
    %v2174 = vrot.slane %v2169, %v2173
    %v2336 = vunpack.c.l.b16 %v2009
    %v2337 = vunpack.c.l.b16 %v2010
    %v2338 = vunpack.c.l.b16 %v2011
    %v2339 = vunpack.c.l.b16 %v2012
    %v2340 = vunpack.c.l.b16 %v2013
    %v2341 = vunpack.c.l.b16 %v2014
    %v2342 = vunpack.c.l.b16 %v2015
    %v2343 = vunpack.c.l.b16 %v2016
    %v2344 = vunpack.c.l.b16 %v2017
    %v2345 = vunpack.c.l.b16 %v2018
    %v2346 = vunpack.c.l.b16 %v2019
    %v2347 = vunpack.c.l.b16 %v2020
    %v2348 = vunpack.c.l.b16 %v2021
    %v2349 = vunpack.c.l.b16 %v2022
    %v2350 = vunpack.c.l.b16 %v2023
    %v2351 = vunpack.c.l.b16 %v2024
    %v2352 = vunpack.c.l.b16 %v2025
    %v2353 = vunpack.c.l.b16 %v2026
    %v2354 = vunpack.c.l.b16 %v2027
    %v2355 = vunpack.c.l.b16 %v2028
    %v2356 = vunpack.c.l.b16 %v2029
    %v2357 = vunpack.c.l.b16 %v2030
    %v2358 = vunpack.c.l.b16 %v2031
    %v2359 = vunpack.c.l.b16 %v2032
    %v2360 = vunpack.c.l.b16 %v2033
    %v2361 = vunpack.c.l.b16 %v2034
    %v2362 = vunpack.c.l.b16 %v2035
    %v2363 = vunpack.c.l.b16 %v2036
    %v2364 = vunpack.c.l.b16 %v2037
    %v2365 = vunpack.c.l.b16 %v2038
    %v2366 = vunpack.c.l.b16 %v2039
    %v2367 = vunpack.c.l.b16 %v2040
    %v2368 = vunpack.c.l.b16 %v2041
    %v2369 = vunpack.c.l.b16 %v2042
    %v2370 = vunpack.c.l.b16 %v2043
    %v2371 = vunpack.c.l.b16 %v2044
    %v2372 = vunpack.c.l.b16 %v2045
    %v2373 = vunpack.c.l.b16 %v2046
    %v2374 = vunpack.c.l.b16 %v2047
    %v2375 = vunpack.c.l.b16 %v2048
    %v2376 = vunpack.c.l.b16 %v2049
    %v2377 = vunpack.c.l.b16 %v2050
    %v2378 = vunpack.c.l.b16 %v2051
    %v2379 = vunpack.c.l.b16 %v2052
    %v2380 = vunpack.c.l.b16 %v2053
    %v2381 = vunpack.c.l.b16 %v2054
    %v2382 = vunpack.c.l.b16 %v2055
    %v2383 = vunpack.c.l.b16 %v2056
    %v2384 = vunpack.c.l.b16 %v2057
    %v2385 = vunpack.c.l.b16 %v2058
    %v2386 = vunpack.c.l.b16 %v2059
    %v2387 = vunpack.c.l.b16 %v2060
    %v2388 = vunpack.c.l.b16 %v2061
    %v2389 = vunpack.c.l.b16 %v2062
    %v2390 = vunpack.c.l.b16 %v2063
    %v2391 = vunpack.c.l.b16 %v2064
    %v2392 = vunpack.c.l.b16 %v2065
    %v2393 = vunpack.c.l.b16 %v2066
    %v2394 = vunpack.c.l.b16 %v2067
    %v2395 = vunpack.c.l.b16 %v2068
    %v2396 = vunpack.c.l.b16 %v2069
    %v2397 = vunpack.c.l.b16 %v2070
    %v2398 = vunpack.c.l.b16 %v2071
    %v2399 = vunpack.c.l.b16 %v2072
    %v2400 = vunpack.c.l.b16 %v2073
    %v2401 = vunpack.c.l.b16 %v2074
    %v2402 = vunpack.c.l.b16 %v2075
    %v2403 = vunpack.c.l.b16 %v2076
    %v2404 = vunpack.c.l.b16 %v2077
    %v2405 = vunpack.c.l.b16 %v2078
    %v2406 = vunpack.c.l.b16 %v2079
    %v2407 = vunpack.c.l.b16 %v2080
    %v2408 = vunpack.c.l.b16 %v2081
    %v2409 = vunpack.c.l.b16 %v2082
    %v2410 = vunpack.c.l.b16 %v2083
    %v2411 = vunpack.c.l.b16 %v2084
    %v2412 = vunpack.c.l.b16 %v2085
    %v2413 = vunpack.c.l.b16 %v2086
    %v2414 = vunpack.c.l.b16 %v2087
    %v2415 = vunpack.c.l.b16 %v2088
    %v2416 = vunpack.c.l.b16 %v2089
    %v2417 = vunpack.c.l.b16 %v2090
    %v2418 = vunpack.c.l.b16 %v2091
    %v2419 = vunpack.c.l.b16 %v2092
    %v2420 = vunpack.c.l.b16 %v2093
    %v2421 = vunpack.c.l.b16 %v2094
    %v2422 = vunpack.c.l.b16 %v2095
    %v2423 = vunpack.c.l.b16 %v2096
    %v2424 = vunpack.c.l.b16 %v2097
    %v2425 = vunpack.c.l.b16 %v2098
    %v2426 = vunpack.c.l.b16 %v2099
    %v2427 = vunpack.c.l.b16 %v2100
    %v2428 = vunpack.c.l.b16 %v2101
    %v2429 = vunpack.c.l.b16 %v2102
    %v2430 = vunpack.c.l.b16 %v2103
    %v2431 = vunpack.c.l.b16 %v2104
    %v2432 = vunpack.c.l.b16 %v2105
    %v2433 = vunpack.c.l.b16 %v2106
    %v2434 = vunpack.c.l.b16 %v2107
    %v2435 = vunpack.c.l.b16 %v2108
    %v2436 = vunpack.c.l.b16 %v2109
    %v2437 = vunpack.c.l.b16 %v2110
    %v2438 = vunpack.c.l.b16 %v2111
    %v2439 = vunpack.c.l.b16 %v2112
    %v2440 = vunpack.c.l.b16 %v2113
    %v2441 = vunpack.c.l.b16 %v2114
    %v2442 = vunpack.c.l.b16 %v2115
    %v2443 = vunpack.c.l.b16 %v2116
    %v2444 = vunpack.c.l.b16 %v2117
    %v2445 = vunpack.c.l.b16 %v2118
    %v2446 = vunpack.c.l.b16 %v2119
    %v2447 = vunpack.c.l.b16 %v2120
    %v2448 = vunpack.c.l.b16 %v2121
    %v2449 = vunpack.c.l.b16 %v2122
    %v2450 = vunpack.c.l.b16 %v2123
    %v2451 = vunpack.c.l.b16 %v2124
    %v2452 = vunpack.c.l.b16 %v2125
    %v2453 = vunpack.c.l.b16 %v2126
    %v2454 = vunpack.c.l.b16 %v2127
    %v2455 = vunpack.c.l.b16 %v2128
    %v2456 = vunpack.c.l.b16 %v2129
    %v2457 = vunpack.c.l.b16 %v2130
    %v2458 = vunpack.c.l.b16 %v2131
    %v2459 = vunpack.c.l.b16 %v2132
    %v2460 = vunpack.c.l.b16 %v2133
    %v2461 = vunpack.c.l.b16 %v2134
    %v2462 = vunpack.c.l.b16 %v2135
    %v2463 = vunpack.c.l.b16 %v2136
    %v2464 = vunpack.c.l.b16 %v2137
    %v2465 = vunpack.c.l.b16 %v2138
    %v2466 = vunpack.c.l.b16 %v2139
    %v2467 = vunpack.c.l.b16 %v2140
    %v2468 = vunpack.c.l.b16 %v2141
    %v2469 = vunpack.c.l.b16 %v2142
    %v2470 = vunpack.c.l.b16 %v2143
    %v2471 = vunpack.c.l.b16 %v2144
    %v2472 = vunpack.c.l.b16 %v2145
    %v2473 = vunpack.c.l.b16 %v2146
    %v2474 = vunpack.c.l.b16 %v2147
    %v2475 = vunpack.c.l.b16 %v2148
    %v2476 = vunpack.c.l.b16 %v2149
    %v2477 = vunpack.c.l.b16 %v2150
    %v2478 = vunpack.c.l.b16 %v2151
    %v2479 = vunpack.c.l.b16 %v2152
    %v2480 = vunpack.c.l.b16 %v2153
    %v2481 = vunpack.c.l.b16 %v2154
    %v2482 = vunpack.c.l.b16 %v2155
    %v2483 = vunpack.c.l.b16 %v2156
    %v2484 = vunpack.c.l.b16 %v2157
    %v2485 = vunpack.c.l.b16 %v2158
    %v2486 = vunpack.c.l.b16 %v2159
    %v2487 = vunpack.c.l.b16 %v2160
    %v2488 = vunpack.c.l.b16 %v2161
    %v2489 = vunpack.c.l.b16 %v2162
    %v2490 = vunpack.c.l.b16 %v2163
    %v2491 = vunpack.c.l.b16 %v2164
    %v2492 = vunpack.c.l.b16 %v2165
    %v2493 = vunpack.c.l.b16 %v2166
    %v2494 = vunpack.c.l.b16 %v2167
    %v2495 = vunpack.c.l.b16 %v2168
    %v2496 = vpack.c.b16 %v2337, %v2336
    %v2497 = vpack.c.b16 %v2339, %v2338
    %v2498 = vpack.c.b16 %v2341, %v2340
    %v2499 = vpack.c.b16 %v2343, %v2342
    %v2500 = vpack.c.b16 %v2345, %v2344
    %v2501 = vpack.c.b16 %v2347, %v2346
    %v2502 = vpack.c.b16 %v2349, %v2348
    %v2503 = vpack.c.b16 %v2351, %v2350
    %v2504 = vpack.c.b16 %v2353, %v2352
    %v2505 = vpack.c.b16 %v2355, %v2354
    %v2506 = vpack.c.b16 %v2357, %v2356
    %v2507 = vpack.c.b16 %v2359, %v2358
    %v2508 = vpack.c.b16 %v2361, %v2360
    %v2509 = vpack.c.b16 %v2363, %v2362
    %v2510 = vpack.c.b16 %v2365, %v2364
    %v2511 = vpack.c.b16 %v2367, %v2366
    %v2512 = vpack.c.b16 %v2369, %v2368
    %v2513 = vpack.c.b16 %v2371, %v2370
    %v2514 = vpack.c.b16 %v2373, %v2372
    %v2515 = vpack.c.b16 %v2375, %v2374
    %v2516 = vpack.c.b16 %v2377, %v2376
    %v2517 = vpack.c.b16 %v2379, %v2378
    %v2518 = vpack.c.b16 %v2381, %v2380
    %v2519 = vpack.c.b16 %v2383, %v2382
    %v2520 = vpack.c.b16 %v2385, %v2384
    %v2521 = vpack.c.b16 %v2387, %v2386
    %v2522 = vpack.c.b16 %v2389, %v2388
    %v2523 = vpack.c.b16 %v2391, %v2390
    %v2524 = vpack.c.b16 %v2393, %v2392
    %v2525 = vpack.c.b16 %v2395, %v2394
    %v2526 = vpack.c.b16 %v2397, %v2396
    %v2527 = vpack.c.b16 %v2399, %v2398
    %v2528 = vpack.c.b16 %v2401, %v2400
    %v2529 = vpack.c.b16 %v2403, %v2402
    %v2530 = vpack.c.b16 %v2405, %v2404
    %v2531 = vpack.c.b16 %v2407, %v2406
    %v2532 = vpack.c.b16 %v2409, %v2408
    %v2533 = vpack.c.b16 %v2411, %v2410
    %v2534 = vpack.c.b16 %v2413, %v2412
    %v2535 = vpack.c.b16 %v2415, %v2414
    %v2536 = vpack.c.b16 %v2417, %v2416
    %v2537 = vpack.c.b16 %v2419, %v2418
    %v2538 = vpack.c.b16 %v2421, %v2420
    %v2539 = vpack.c.b16 %v2423, %v2422
    %v2540 = vpack.c.b16 %v2425, %v2424
    %v2541 = vpack.c.b16 %v2427, %v2426
    %v2542 = vpack.c.b16 %v2429, %v2428
    %v2543 = vpack.c.b16 %v2431, %v2430
    %v2544 = vpack.c.b16 %v2433, %v2432
    %v2545 = vpack.c.b16 %v2435, %v2434
    %v2546 = vpack.c.b16 %v2437, %v2436
    %v2547 = vpack.c.b16 %v2439, %v2438
    %v2548 = vpack.c.b16 %v2441, %v2440
    %v2549 = vpack.c.b16 %v2443, %v2442
    %v2550 = vpack.c.b16 %v2445, %v2444
    %v2551 = vpack.c.b16 %v2447, %v2446
    %v2552 = vpack.c.b16 %v2449, %v2448
    %v2553 = vpack.c.b16 %v2451, %v2450
    %v2554 = vpack.c.b16 %v2453, %v2452
    %v2555 = vpack.c.b16 %v2455, %v2454
    %v2556 = vpack.c.b16 %v2457, %v2456
    %v2557 = vpack.c.b16 %v2459, %v2458
    %v2558 = vpack.c.b16 %v2461, %v2460
    %v2559 = vpack.c.b16 %v2463, %v2462
    %v2560 = vpack.c.b16 %v2465, %v2464
    %v2561 = vpack.c.b16 %v2467, %v2466
    %v2562 = vpack.c.b16 %v2469, %v2468
    %v2563 = vpack.c.b16 %v2471, %v2470
    %v2564 = vpack.c.b16 %v2473, %v2472
    %v2565 = vpack.c.b16 %v2475, %v2474
    %v2566 = vpack.c.b16 %v2477, %v2476
    %v2567 = vpack.c.b16 %v2479, %v2478
    %v2568 = vpack.c.b16 %v2481, %v2480
    %v2569 = vpack.c.b16 %v2483, %v2482
    %v2570 = vpack.c.b16 %v2485, %v2484
    %v2571 = vpack.c.b16 %v2487, %v2486
    %v2572 = vpack.c.b16 %v2489, %v2488
    %v2573 = vpack.c.b16 %v2491, %v2490
    %v2574 = vpack.c.b16 %v2493, %v2492
    %v2575 = vpack.c.b16 %v2495, %v2494
    %2656 = vmatprep.subr.bf16.mxu0 0
    %2657 = vmatpush1.bf16.msra.mxu0 %v2496
    %2658 = vmatprep.subr.bf16.mxu0 0
    %2659 = vmatpush1.bf16.msra.mxu0 %v2497
    %2660 = vmatprep.subr.bf16.mxu0 0
    %2661 = vmatpush1.bf16.msra.mxu0 %v2498
    %2662 = vmatprep.subr.bf16.mxu0 0
    %2663 = vmatpush1.bf16.msra.mxu0 %v2499
    %2664 = vmatprep.subr.bf16.mxu0 0
    %2665 = vmatpush1.bf16.msra.mxu0 %v2500
    %2666 = vmatprep.subr.bf16.mxu0 0
    %2667 = vmatpush1.bf16.msra.mxu0 %v2501
    %2668 = vmatprep.subr.bf16.mxu0 0
    %2669 = vmatpush1.bf16.msra.mxu0 %v2502
    %2670 = vmatprep.subr.bf16.mxu0 0
    %2671 = vmatpush1.bf16.msra.mxu0 %v2503
    %2672 = vmatprep.subr.bf16.mxu0 0
    %2673 = vmatpush1.bf16.msra.mxu0 %v2504
    %2674 = vmatprep.subr.bf16.mxu0 0
    %2675 = vmatpush1.bf16.msra.mxu0 %v2505
    %2676 = vmatprep.subr.bf16.mxu0 0
    %2677 = vmatpush1.bf16.msra.mxu0 %v2506
    %2678 = vmatprep.subr.bf16.mxu0 0
    %2679 = vmatpush1.bf16.msra.mxu0 %v2507
    %2680 = vmatprep.subr.bf16.mxu0 0
    %2681 = vmatpush1.bf16.msra.mxu0 %v2508
    %2682 = vmatprep.subr.bf16.mxu0 0
    %2683 = vmatpush1.bf16.msra.mxu0 %v2509
    %2684 = vmatprep.subr.bf16.mxu0 0
    %2685 = vmatpush1.bf16.msra.mxu0 %v2510
    %2686 = vmatprep.subr.bf16.mxu0 0
    %2687 = vmatpush1.bf16.msra.mxu0 %v2511
    %2688 = vmatprep.mubr.bf16.mxu0 %v2000
    %2689 = vmatmul.mubr.bf16.gmra.mrb[0].mxu0 %v1999
    %v2690 = vpop.f32.mrb[0].mxu0
    %v2691 = vadd.f32 %v2174, %v2690
    %v2692 = vpop.f32.mrb[0].mxu0
    %v2693 = vpop.f32.mrb[0].mxu0
    %v2694 = vpop.f32.mrb[0].mxu0
    %2695 = vdwg.mxu0
    %2696 = vmatprep.subr.bf16.mxu0 0
    %2697 = vmatpush1.bf16.msra.mxu0 %v2512
    %2698 = vmatprep.subr.bf16.mxu0 0
    %2699 = vmatpush1.bf16.msra.mxu0 %v2513
    %2700 = vmatprep.subr.bf16.mxu0 0
    %2701 = vmatpush1.bf16.msra.mxu0 %v2514
    %2702 = vmatprep.subr.bf16.mxu0 0
    %2703 = vmatpush1.bf16.msra.mxu0 %v2515
    %2704 = vmatprep.subr.bf16.mxu0 0
    %2705 = vmatpush1.bf16.msra.mxu0 %v2516
    %2706 = vmatprep.subr.bf16.mxu0 0
    %2707 = vmatpush1.bf16.msra.mxu0 %v2517
    %2708 = vmatprep.subr.bf16.mxu0 0
    %2709 = vmatpush1.bf16.msra.mxu0 %v2518
    %2710 = vmatprep.subr.bf16.mxu0 0
    %2711 = vmatpush1.bf16.msra.mxu0 %v2519
    %2712 = vmatprep.subr.bf16.mxu0 0
    %2713 = vmatpush1.bf16.msra.mxu0 %v2520
    %2714 = vmatprep.subr.bf16.mxu0 0
    %2715 = vmatpush1.bf16.msra.mxu0 %v2521
    %2716 = vmatprep.subr.bf16.mxu0 0
    %2717 = vmatpush1.bf16.msra.mxu0 %v2522
    %2718 = vmatprep.subr.bf16.mxu0 0
    %2719 = vmatpush1.bf16.msra.mxu0 %v2523
    %2720 = vmatprep.subr.bf16.mxu0 0
    %2721 = vmatpush1.bf16.msra.mxu0 %v2524
    %2722 = vmatprep.subr.bf16.mxu0 0
    %2723 = vmatpush1.bf16.msra.mxu0 %v2525
    %2724 = vmatprep.subr.bf16.mxu0 0
    %2725 = vmatpush1.bf16.msra.mxu0 %v2526
    %2726 = vmatprep.subr.bf16.mxu0 0
    %2727 = vmatpush1.bf16.msra.mxu0 %v2527
    %2728 = vmatprep.mubr.bf16.mxu0 %v2002
    %2729 = vmatmul.mubr.bf16.gmra.mrb[0].mxu0 %v2001
    %v2730 = vpop.f32.mrb[0].mxu0
    %v2731 = vadd.f32 %v2691, %v2730
    %v2732 = vpop.f32.mrb[0].mxu0
    %v2733 = vpop.f32.mrb[0].mxu0
    %v2734 = vpop.f32.mrb[0].mxu0
    %2735 = vdwg.mxu0
    %2736 = vmatprep.subr.bf16.mxu0 0
    %2737 = vmatpush1.bf16.msra.mxu0 %v2528
    %2738 = vmatprep.subr.bf16.mxu0 0
    %2739 = vmatpush1.bf16.msra.mxu0 %v2529
    %2740 = vmatprep.subr.bf16.mxu0 0
    %2741 = vmatpush1.bf16.msra.mxu0 %v2530
    %2742 = vmatprep.subr.bf16.mxu0 0
    %2743 = vmatpush1.bf16.msra.mxu0 %v2531
    %2744 = vmatprep.subr.bf16.mxu0 0
    %2745 = vmatpush1.bf16.msra.mxu0 %v2532
    %2746 = vmatprep.subr.bf16.mxu0 0
    %2747 = vmatpush1.bf16.msra.mxu0 %v2533
    %2748 = vmatprep.subr.bf16.mxu0 0
    %2749 = vmatpush1.bf16.msra.mxu0 %v2534
    %2750 = vmatprep.subr.bf16.mxu0 0
    %2751 = vmatpush1.bf16.msra.mxu0 %v2535
    %2752 = vmatprep.subr.bf16.mxu0 0
    %2753 = vmatpush1.bf16.msra.mxu0 %v2536
    %2754 = vmatprep.subr.bf16.mxu0 0
    %2755 = vmatpush1.bf16.msra.mxu0 %v2537
    %2756 = vmatprep.subr.bf16.mxu0 0
    %2757 = vmatpush1.bf16.msra.mxu0 %v2538
    %2758 = vmatprep.subr.bf16.mxu0 0
    %2759 = vmatpush1.bf16.msra.mxu0 %v2539
    %2760 = vmatprep.subr.bf16.mxu0 0
    %2761 = vmatpush1.bf16.msra.mxu0 %v2540
    %2762 = vmatprep.subr.bf16.mxu0 0
    %2763 = vmatpush1.bf16.msra.mxu0 %v2541
    %2764 = vmatprep.subr.bf16.mxu0 0
    %2765 = vmatpush1.bf16.msra.mxu0 %v2542
    %2766 = vmatprep.subr.bf16.mxu0 0
    %2767 = vmatpush1.bf16.msra.mxu0 %v2543
    %2768 = vmatprep.mubr.bf16.mxu0 %v2004
    %2769 = vmatmul.mubr.bf16.gmra.mrb[0].mxu0 %v2003
    %v2770 = vpop.f32.mrb[0].mxu0
    %v2771 = vadd.f32 %v2731, %v2770
    %v2772 = vpop.f32.mrb[0].mxu0
    %v2773 = vpop.f32.mrb[0].mxu0
    %v2774 = vpop.f32.mrb[0].mxu0
    %2775 = vdwg.mxu0
    %2776 = vmatprep.subr.bf16.mxu0 0
    %2777 = vmatpush1.bf16.msra.mxu0 %v2544
    %2778 = vmatprep.subr.bf16.mxu0 0
    %2779 = vmatpush1.bf16.msra.mxu0 %v2545
    %2780 = vmatprep.subr.bf16.mxu0 0
    %2781 = vmatpush1.bf16.msra.mxu0 %v2546
    %2782 = vmatprep.subr.bf16.mxu0 0
    %2783 = vmatpush1.bf16.msra.mxu0 %v2547
    %2784 = vmatprep.subr.bf16.mxu0 0
    %2785 = vmatpush1.bf16.msra.mxu0 %v2548
    %2786 = vmatprep.subr.bf16.mxu0 0
    %2787 = vmatpush1.bf16.msra.mxu0 %v2549
    %2788 = vmatprep.subr.bf16.mxu0 0
    %2789 = vmatpush1.bf16.msra.mxu0 %v2550
    %2790 = vmatprep.subr.bf16.mxu0 0
    %2791 = vmatpush1.bf16.msra.mxu0 %v2551
    %2792 = vmatprep.subr.bf16.mxu0 0
    %2793 = vmatpush1.bf16.msra.mxu0 %v2552
    %2794 = vmatprep.subr.bf16.mxu0 0
    %2795 = vmatpush1.bf16.msra.mxu0 %v2553
    %2796 = vmatprep.subr.bf16.mxu0 0
    %2797 = vmatpush1.bf16.msra.mxu0 %v2554
    %2798 = vmatprep.subr.bf16.mxu0 0
    %2799 = vmatpush1.bf16.msra.mxu0 %v2555
    %2800 = vmatprep.subr.bf16.mxu0 0
    %2801 = vmatpush1.bf16.msra.mxu0 %v2556
    %2802 = vmatprep.subr.bf16.mxu0 0
    %2803 = vmatpush1.bf16.msra.mxu0 %v2557
    %2804 = vmatprep.subr.bf16.mxu0 0
    %2805 = vmatpush1.bf16.msra.mxu0 %v2558
    %2806 = vmatprep.subr.bf16.mxu0 0
    %2807 = vmatpush1.bf16.msra.mxu0 %v2559
    %2808 = vmatprep.mubr.bf16.mxu0 %v2006
    %2809 = vmatmul.mubr.bf16.gmra.mrb[0].mxu0 %v2005
    %v2810 = vpop.f32.mrb[0].mxu0
    %v2811 = vadd.f32 %v2771, %v2810
    %v2812 = vpop.f32.mrb[0].mxu0
    %v2813 = vpop.f32.mrb[0].mxu0
    %v2814 = vpop.f32.mrb[0].mxu0
    %2815 = vdwg.mxu0
    %2816 = vmatprep.subr.bf16.mxu0 0
    %2817 = vmatpush1.bf16.msra.mxu0 %v2560
    %2818 = vmatprep.subr.bf16.mxu0 0
    %2819 = vmatpush1.bf16.msra.mxu0 %v2561
    %2820 = vmatprep.subr.bf16.mxu0 0
    %2821 = vmatpush1.bf16.msra.mxu0 %v2562
    %2822 = vmatprep.subr.bf16.mxu0 0
    %2823 = vmatpush1.bf16.msra.mxu0 %v2563
    %2824 = vmatprep.subr.bf16.mxu0 0
    %2825 = vmatpush1.bf16.msra.mxu0 %v2564
    %2826 = vmatprep.subr.bf16.mxu0 0
    %2827 = vmatpush1.bf16.msra.mxu0 %v2565
    %2828 = vmatprep.subr.bf16.mxu0 0
    %2829 = vmatpush1.bf16.msra.mxu0 %v2566
    %2830 = vmatprep.subr.bf16.mxu0 0
    %2831 = vmatpush1.bf16.msra.mxu0 %v2567
    %2832 = vmatprep.subr.bf16.mxu0 0
    %2833 = vmatpush1.bf16.msra.mxu0 %v2568
    %2834 = vmatprep.subr.bf16.mxu0 0
    %2835 = vmatpush1.bf16.msra.mxu0 %v2569
    %2836 = vmatprep.subr.bf16.mxu0 0
    %2837 = vmatpush1.bf16.msra.mxu0 %v2570
    %2838 = vmatprep.subr.bf16.mxu0 0
    %2839 = vmatpush1.bf16.msra.mxu0 %v2571
    %2840 = vmatprep.subr.bf16.mxu0 0
    %2841 = vmatpush1.bf16.msra.mxu0 %v2572
    %2842 = vmatprep.subr.bf16.mxu0 0
    %2843 = vmatpush1.bf16.msra.mxu0 %v2573
    %2844 = vmatprep.subr.bf16.mxu0 0
    %2845 = vmatpush1.bf16.msra.mxu0 %v2574
    %2846 = vmatprep.subr.bf16.mxu0 0
    %2847 = vmatpush1.bf16.msra.mxu0 %v2575
    %2848 = vmatprep.mubr.bf16.mxu0 %v2008
    %2849 = vmatmul.mubr.bf16.gmra.mrb[0].mxu0 %v2007
    %v2850 = vpop.f32.mrb[0].mxu0
    %v2851 = vadd.f32 %v2811, %v2850
    %v2852 = vpop.f32.mrb[0].mxu0
    %v2853 = vpop.f32.mrb[0].mxu0
    %v2854 = vpop.f32.mrb[0].mxu0
    %2855 = vdwg.mxu0
    %v2856 = vmax.f32 %v2851, 0.0
    %v2857 = vpack.c.bf16 %v2856, %v2856
    %v2858 = vld [vmem:[#allocation14] sm:$0xf]
    %v2859 = vld [vmem:[#allocation14 + $0x4] sm:$0xf]
    %v2860 = vld [vmem:[#allocation14 + $0x8] sm:$0xf]
    %v2861 = vld [vmem:[#allocation14 + $0xc] sm:$0xf]
    %v2862 = vld [vmem:[#allocation14 + $0x10] sm:$0xf]
    %v2863 = vld [vmem:[#allocation14 + $0x14] sm:$0xf]
    %v2864 = vld [vmem:[#allocation14 + $0x18] sm:$0xf]
    %v2865 = vld [vmem:[#allocation14 + $0x1c] sm:$0xf]
    %v2866 = vld [vmem:[#allocation14 + $0x20] sm:$0xf]
    %v2867 = vld [vmem:[#allocation14 + $0x24] sm:$0xf]
    %v2868 = vld [vmem:[#allocation14 + $0x28] sm:$0xf]
    %v2869 = vld [vmem:[#allocation14 + $0x2c] sm:$0xf]
    %v2870 = vld [vmem:[#allocation14 + $0x30] sm:$0xf]
    %v2871 = vld [vmem:[#allocation14 + $0x34] sm:$0xf]
    %v2872 = vld [vmem:[#allocation14 + $0x38] sm:$0xf]
    %v2873 = vld [vmem:[#allocation14 + $0x3c] sm:$0xf]
    %v2874 = vld [vmem:[#allocation16] sm:$0x1]
    %v2876 = vlaneseq
    %v2877 = vshrl.u32 %v2876, 7
    %v2878 = vsub.s32 0, %v2877
    %v2879 = vrot.slane %v2874, %v2878
    %v2897 = vunpack.c.l.b16 %v2858
    %v2898 = vunpack.c.l.b16 %v2859
    %v2899 = vunpack.c.l.b16 %v2860
    %v2900 = vunpack.c.l.b16 %v2861
    %v2901 = vunpack.c.l.b16 %v2862
    %v2902 = vunpack.c.l.b16 %v2863
    %v2903 = vunpack.c.l.b16 %v2864
    %v2904 = vunpack.c.l.b16 %v2865
    %v2905 = vunpack.c.l.b16 %v2866
    %v2906 = vunpack.c.l.b16 %v2867
    %v2907 = vunpack.c.l.b16 %v2868
    %v2908 = vunpack.c.l.b16 %v2869
    %v2909 = vunpack.c.l.b16 %v2870
    %v2910 = vunpack.c.l.b16 %v2871
    %v2911 = vunpack.c.l.b16 %v2872
    %v2912 = vunpack.c.l.b16 %v2873
    %v2913 = vpack.c.b16 %v2898, %v2897
    %v2914 = vpack.c.b16 %v2900, %v2899
    %v2915 = vpack.c.b16 %v2902, %v2901
    %v2916 = vpack.c.b16 %v2904, %v2903
    %v2917 = vpack.c.b16 %v2906, %v2905
    %v2918 = vpack.c.b16 %v2908, %v2907
    %v2919 = vpack.c.b16 %v2910, %v2909
    %v2920 = vpack.c.b16 %v2912, %v2911
    %2929 = vmatprep.subr.bf16.mxu0 0
    %2930 = vmatpush1.bf16.msra.mxu0 %v2913
    %2931 = vmatprep.subr.bf16.mxu0 0
    %2932 = vmatpush1.bf16.msra.mxu0 %v2914
    %2933 = vmatprep.subr.bf16.mxu0 0
    %2934 = vmatpush1.bf16.msra.mxu0 %v2915
    %2935 = vmatprep.subr.bf16.mxu0 0
    %2936 = vmatpush1.bf16.msra.mxu0 %v2916
    %2937 = vmatprep.subr.bf16.mxu0 0
    %2938 = vmatpush1.bf16.msra.mxu0 %v2917
    %2939 = vmatprep.subr.bf16.mxu0 0
    %2940 = vmatpush1.bf16.msra.mxu0 %v2918
    %2941 = vmatprep.subr.bf16.mxu0 0
    %2942 = vmatpush1.bf16.msra.mxu0 %v2919
    %2943 = vmatprep.subr.bf16.mxu0 0
    %2944 = vmatpush1.bf16.msra.mxu0 %v2920
    %2945 = vmatprep.subr.bf16.mxu0 0
    %2946 = vmatpush1.bf16.msra.mxu0 0
    %2947 = vmatprep.subr.bf16.mxu0 0
    %2948 = vmatpush1.bf16.msra.mxu0 0
    %2949 = vmatprep.subr.bf16.mxu0 0
    %2950 = vmatpush1.bf16.msra.mxu0 0
    %2951 = vmatprep.subr.bf16.mxu0 0
    %2952 = vmatpush1.bf16.msra.mxu0 0
    %2953 = vmatprep.subr.bf16.mxu0 0
    %2954 = vmatpush1.bf16.msra.mxu0 0
    %2955 = vmatprep.subr.bf16.mxu0 0
    %2956 = vmatpush1.bf16.msra.mxu0 0
    %2957 = vmatprep.subr.bf16.mxu0 0
    %2958 = vmatpush1.bf16.msra.mxu0 0
    %2959 = vmatprep.subr.bf16.mxu0 0
    %2960 = vmatpush1.bf16.msra.mxu0 0
    %2961 = vmatprep.mubr.bf16.mxu0 0
    %2962 = vmatmul.mubr.bf16.gmra.mrb[0].mxu0 %v2857
    %v2963 = vpop.f32.mrb[0].mxu0
    %v2964 = vadd.f32 %v2879, %v2963
    %v2965 = vpop.f32.mrb[0].mxu0
    %v2966 = vpop.f32.mrb[0].mxu0
    %v2967 = vpop.f32.mrb[0].mxu0
    %2968 = vdwg.mxu0
    %v2969 = vmax.f32 %v2964, 0.0
    %v2970 = vpack.c.bf16 %v2969, %v2969
    %v2971 = vld [vmem:[#allocation17] sm:$0xf]
    %v2972 = vld [vmem:[#allocation17 + $0x4] sm:$0xf]
    %v2973 = vld [vmem:[#allocation17 + $0x8] sm:$0xf]
    %v2974 = vld [vmem:[#allocation17 + $0xc] sm:$0xf]
    %v2975 = vld [vmem:[#allocation17 + $0x10] sm:$0xf]
    %v2976 = vld [vmem:[#allocation17 + $0x14] sm:$0xf]
    %v2977 = vld [vmem:[#allocation17 + $0x18] sm:$0xf]
    %v2978 = vld [vmem:[#allocation17 + $0x1c] sm:$0xf]
    %v2979 = vld [vmem:[#allocation17 + $0x20] sm:$0xf]
    %v2980 = vld [vmem:[#allocation17 + $0x24] sm:$0xf]
    %v2981 = vld [vmem:[#allocation17 + $0x28] sm:$0xf]
    %v2982 = vld [vmem:[#allocation17 + $0x2c] sm:$0xf]
    %v2983 = vld [vmem:[#allocation17 + $0x30] sm:$0xf]
    %v2984 = vld [vmem:[#allocation17 + $0x34] sm:$0xf]
    %v2985 = vld [vmem:[#allocation17 + $0x38] sm:$0xf]
    %v2986 = vld [vmem:[#allocation17 + $0x3c] sm:$0xf]
    %v2987 = vld [vmem:[#allocation19] sm:$0x1]
    %v2989 = vlaneseq
    %v2990 = vshrl.u32 %v2989, 7
    %v2991 = vsub.s32 0, %v2990
    %v2992 = vrot.slane %v2987, %v2991
    %v3010 = vunpack.c.l.b16 %v2971
    %v3011 = vunpack.c.l.b16 %v2972
    %v3012 = vunpack.c.l.b16 %v2973
    %v3013 = vunpack.c.l.b16 %v2974
    %v3014 = vunpack.c.l.b16 %v2975
    %v3015 = vunpack.c.l.b16 %v2976
    %v3016 = vunpack.c.l.b16 %v2977
    %v3017 = vunpack.c.l.b16 %v2978
    %v3018 = vunpack.c.l.b16 %v2979
    %v3019 = vunpack.c.l.b16 %v2980
    %v3020 = vunpack.c.l.b16 %v2981
    %v3021 = vunpack.c.l.b16 %v2982
    %v3022 = vunpack.c.l.b16 %v2983
    %v3023 = vunpack.c.l.b16 %v2984
    %v3024 = vunpack.c.l.b16 %v2985
    %v3025 = vunpack.c.l.b16 %v2986
    %v3026 = vpack.c.b16 %v3011, %v3010
    %v3027 = vpack.c.b16 %v3013, %v3012
    %v3028 = vpack.c.b16 %v3015, %v3014
    %v3029 = vpack.c.b16 %v3017, %v3016
    %v3030 = vpack.c.b16 %v3019, %v3018
    %v3031 = vpack.c.b16 %v3021, %v3020
    %v3032 = vpack.c.b16 %v3023, %v3022
    %v3033 = vpack.c.b16 %v3025, %v3024
    %3042 = vmatprep.subr.bf16.mxu0 0
    %3043 = vmatpush1.bf16.msra.mxu0 %v3026
    %3044 = vmatprep.subr.bf16.mxu0 0
    %3045 = vmatpush1.bf16.msra.mxu0 %v3027
    %3046 = vmatprep.subr.bf16.mxu0 0
    %3047 = vmatpush1.bf16.msra.mxu0 %v3028
    %3048 = vmatprep.subr.bf16.mxu0 0
    %3049 = vmatpush1.bf16.msra.mxu0 %v3029
    %3050 = vmatprep.subr.bf16.mxu0 0
    %3051 = vmatpush1.bf16.msra.mxu0 %v3030
    %3052 = vmatprep.subr.bf16.mxu0 0
    %3053 = vmatpush1.bf16.msra.mxu0 %v3031
    %3054 = vmatprep.subr.bf16.mxu0 0
    %3055 = vmatpush1.bf16.msra.mxu0 %v3032
    %3056 = vmatprep.subr.bf16.mxu0 0
    %3057 = vmatpush1.bf16.msra.mxu0 %v3033
    %3058 = vmatprep.subr.bf16.mxu0 0
    %3059 = vmatpush1.bf16.msra.mxu0 0
    %3060 = vmatprep.subr.bf16.mxu0 0
    %3061 = vmatpush1.bf16.msra.mxu0 0
    %3062 = vmatprep.subr.bf16.mxu0 0
    %3063 = vmatpush1.bf16.msra.mxu0 0
    %3064 = vmatprep.subr.bf16.mxu0 0
    %3065 = vmatpush1.bf16.msra.mxu0 0
    %3066 = vmatprep.subr.bf16.mxu0 0
    %3067 = vmatpush1.bf16.msra.mxu0 0
    %3068 = vmatprep.subr.bf16.mxu0 0
    %3069 = vmatpush1.bf16.msra.mxu0 0
    %3070 = vmatprep.subr.bf16.mxu0 0
    %3071 = vmatpush1.bf16.msra.mxu0 0
    %3072 = vmatprep.subr.bf16.mxu0 0
    %3073 = vmatpush1.bf16.msra.mxu0 0
    %3074 = vmatprep.mubr.bf16.mxu0 0
    %3075 = vmatmul.mubr.bf16.gmra.mrb[0].mxu0 %v2970
    %v3076 = vpop.f32.mrb[0].mxu0
    %v3077 = vadd.f32 %v2992, %v3076
    %v3078 = vpop.f32.mrb[0].mxu0
    %v3079 = vpop.f32.mrb[0].mxu0
    %v3080 = vpop.f32.mrb[0].mxu0
    %3081 = vdwg.mxu0
    %3082 = vmax.xlane.f32.xlu0 %v3077
    %v3083 = vpop.xlane.xlu0 %3082
    %v3084 = vsub.f32 %v3077, %v3083
    %v3085 = vmul.f32 %v3084, 1.442695
    %v3086 = vpow.pop %v3085
    %3087 = vadd.xlane.f32.xlu0 %v3086
    %v3088 = vpop.xlane.xlu0 %3087
    %v3089 = vlog2.pop %v3088
    %v3090 = vmul.f32 %v3089, 0.6931472
    %v3091 = vsub.f32 %v3084, %v3090
    %3092 = vst [vmem:[#allocation20] sm:$0xff] %v3091
    // Predicated region
    $region90: #{lenet_forward.1} parent=1 // pred_check
      _
    $region91: #{lenet_forward.1} parent=1 // pred_check_branch
      %3094 = sbr.rel (0) target = $region93
    $region92: #{lenet_forward.1} parent=1 // pred_region
      %s3096 = ssub.s32 128, 128
      %3097 = vsyncadd [#allocation4], %s3096
      %s3099 = sshll.u32 [#allocation20], 4
      %s3100 = int_to_ptr.vmem [resolvable:$true] %s3099
      %3102 = dma.vmem_to_hbm [thread:$0]  %s3100, 128, %s11, [#allocation4]
    $region93: #{lenet_forward.1} parent=1 // pred_fallthru
      _
    // Predicated region
    $region94: #{lenet_forward.1} parent=1 // pred_check
      _
    $region95: #{lenet_forward.1} parent=1 // pred_check_branch
      %3104 = sbr.rel (0) target = $region97
    $region96: #{lenet_forward.1} parent=1 // pred_region
      %3105 = dma.done [#allocation4], 128
    $region97: #{lenet_forward.1} parent=1 // pred_fallthru
      _
    %3106 = vsyncpa [#allocation3], 1
    %3107 = vsyncpa [#allocation6], 1
    %3108 = vsyncpa [#allocation9], 1
    %3109 = vsyncpa [#allocation12], 1
    %3110 = vsyncpa [#allocation15], 1
    %3111 = vsyncpa [#allocation18], 1
    %3112 = vsyncpa [#allocation4], 1

</llo_original>
